<compile_context>
chip_gen: v6e
topology: v6e:2x2x1
jax: 0.10.0
libtpu: 0.0.40
codegen_flags: <defaults>
</compile_context>

<pallas_src>
import functools
import math

import jax
import jax.numpy as jnp
from jax.experimental import pallas as pl
from jax.experimental.pallas import tpu as pltpu


def _efa_kernel(x_ref, wkv_ref, wq_ref, r1c_ref, wo_ref, kscale_ref, o_ref, *,
                num_heads, head_dim, n_entities, fold):
    """One grid step = `tile` folded rows; each folded row packs `fold` original
    (b,t,a) slices of N entities x D features along the lane axis."""
    D = num_heads * head_dim
    E = num_heads * head_dim * head_dim          # flattened (h, i, j) lane axis
    FD = fold * D
    tile = x_ref.shape[0]

    wkv = wkv_ref[...]                           # [D, 2E] bf16: fused K|V proj + (h,i,j) expansion
    wq = wq_ref[...]                             # [D, E]  bf16: fused, pre-scaled Q proj + expansion
    kscale = kscale_ref[0, 0]                    # f32 scalar: max_row ||Wk||_1

    # Hoisted stabilizer ingredient: per-row max|x| over the whole 640-lane folded row.
    mx = jnp.max(jnp.abs(x_ref[...]), axis=-1, keepdims=True).astype(jnp.float32)  # [tile, 1]

    acc = jnp.zeros((tile, FD), jnp.float32)     # fold slots live in disjoint 32-lane blocks

    for c in range(fold):                        # fold original rows packed on lanes
        base = c * n_entities * D
        # Q comes from entity 0 of this fold slot; head scaling folded into wq.
        qexp = jnp.dot(x_ref[:, base:base + D], wq,
                       preferred_element_type=jnp.float32)                # [tile, E]
        mq = jnp.max(jnp.abs(qexp), axis=-1, keepdims=True)               # [tile, 1]
        # Per-row upper bound on every score s = q*k of this slot: |s| <= mq * mx * ||Wk||_1.
        # Constant per row -> cancels exactly in softmax; cap keeps a loose bound harmless.
        m = jnp.minimum(mq * (mx * kscale), 80.0)                         # [tile, 1]

        r1c = r1c_ref[c]                          # [E, FD] 0/1 sum-over-j reducer -> fold-c lanes

        for n in range(n_entities):
            xn = x_ref[:, base + n * D: base + (n + 1) * D]               # [tile, D] bf16
            kv = jnp.dot(xn, wkv, preferred_element_type=jnp.float32)     # [tile, 2E]
            # feature-wise scores: s[(h,i,j)] = q_{h,i} * k_{n,h,j}
            s = qexp * kv[:, :E]
            p = jnp.exp(s - m)                                            # EUP, no overflow
            pv = p * kv[:, E:]

            den = jnp.dot(p.astype(jnp.bfloat16), r1c,
                          preferred_element_type=jnp.float32)             # [tile, FD] = sum_j p
            num = jnp.dot(pv.astype(jnp.bfloat16), r1c,
                          preferred_element_type=jnp.float32)             # [tile, FD] = sum_j p*v
            # Inactive fold lanes are exactly 0; also guards pathological full underflow.
            den = jnp.where(den > 0.0, den, 1.0)
            inv = pl.reciprocal(den, approx=True)
            inv = inv * (2.0 - den * inv)         # one Newton step -> ~f32 accuracy (cheap VPU)
            acc = acc + num * inv                 # sum over entities n, into fold-c lanes

    # Single lane-dense output projection: block-diagonal [FD, FD] Wo, 128-lane store.
    o_ref[...] = jnp.dot(acc.astype(jnp.bfloat16), wo_ref[...],
                         preferred_element_type=jnp.float32)


def entity_feature_attention(entities, wq, wk, wv, wo, *, num_heads,
                             block_rows=512, fold=4):
    """entities: [B, T, A, N, D] float32; wq/wk/wv/wo: [D_out, D_in] (torch layout).

    Returns [B, T, A, D], matching EntityFeatureAttentionLayer.forward.
    """
    entities = jnp.asarray(entities, jnp.float32)
    B, T, A, N, D = entities.shape
    assert D % num_heads == 0
    Hd = D // num_heads
    E = num_heads * Hd * Hd
    FD = fold * D
    M = B * T * A

    wq_t = jnp.asarray(wq, jnp.float32).T * (Hd ** (-0.5))   # scaling folded into Wq
    wk_t = jnp.asarray(wk, jnp.float32).T
    wv_t = jnp.asarray(wv, jnp.float32).T
    wo_t = jnp.asarray(wo, jnp.float32).T

    # (h, i, j) lane-expansion column indices (h-major, j minor) -> fused weights.
    l = jnp.arange(E)
    h_l = l // (Hd * Hd)
    i_l = (l // Hd) % Hd
    j_l = l % Hd
    WQ = wq_t[:, h_l * Hd + i_l].astype(jnp.bfloat16)                        # [D, E]
    WK = wk_t[:, h_l * Hd + j_l]                                             # [D, E]
    WV = wv_t[:, h_l * Hd + j_l]                                             # [D, E]
    WKV = jnp.concatenate([WK, WV], axis=1).astype(jnp.bfloat16)             # [D, 2E]
    # Per-fold exact 0/1 reducers: sum over j, landing in fold-c's D-lane slot of [*, FD].
    R1C = jnp.stack(
        [jax.nn.one_hot(c * D + h_l * Hd + i_l, FD, dtype=jnp.float32)
         for c in range(fold)], axis=0).astype(jnp.bfloat16)                 # [fold, E, FD]
    # Block-diagonal output projection (one lane-dense matmul for all fold slots).
    WOB = jnp.kron(jnp.eye(fold, dtype=jnp.float32), wo_t).astype(jnp.bfloat16)  # [FD, FD]
    # |k| <= max|x| * max_row ||Wk||_1 : scalar ingredient of the hoisted softmax bound.
    kscale = jnp.max(jnp.sum(jnp.abs(jnp.asarray(wk, jnp.float32)), axis=1)).reshape(1, 1)

    # Fold `fold` consecutive (b,t,a) rows onto lanes; pad rows so the grid tiles evenly.
    block_rows = max(8, (block_rows // 8) * 8)
    rows = -(-M // fold)                                       # ceil(M / fold)
    # Prefer >=2 grid steps (v7x megacore) while never exceeding block_rows.
    half = max(8, ((-(-rows // 2) + 7) // 8) * 8)
    tile = min(block_rows, half)
    rows_p = ((rows + tile - 1) // tile) * tile
    Mp = rows_p * fold

    x = entities.astype(jnp.bfloat16).reshape(M, N * D)
    if Mp != M:
        x = jnp.concatenate([x, jnp.zeros((Mp - M, N * D), jnp.bfloat16)], axis=0)
    xf = x.reshape(rows_p, fold * N * D)                        # lane-dense 640-lane input

    grid = (rows_p // tile,)

    out = pl.pallas_call(
        functools.partial(_efa_kernel, num_heads=num_heads, head_dim=Hd,
                          n_entities=N, fold=fold),
        out_shape=jax.ShapeDtypeStruct((rows_p, FD), jnp.float32),
        grid_spec=pltpu.PrefetchScalarGridSpec(
            num_scalar_prefetch=0,
            grid=grid,
            in_specs=[
                pl.BlockSpec((tile, fold * N * D), lambda g: (g, 0)),   # folded entity rows
                pl.BlockSpec((D, 2 * E), lambda g: (0, 0)),             # fused K|V weights
                pl.BlockSpec((D, E), lambda g: (0, 0)),                 # fused Q weights
                pl.BlockSpec((fold, E, FD), lambda g: (0, 0, 0)),       # per-fold reducers
                pl.BlockSpec((FD, FD), lambda g: (0, 0)),               # block-diagonal Wo
                pl.BlockSpec(memory_space=pltpu.MemorySpace.SMEM),      # kscale scalar
            ],
            out_specs=pl.BlockSpec((tile, FD), lambda g: (g, 0)),       # 128-lane dense output
        ),
        compiler_params=pltpu.CompilerParams(
            dimension_semantics=("parallel",),
            vmem_limit_bytes=32 * 1024 * 1024),
    )(xf, WKV, WQ, R1C, WOB, kscale)

    return out.reshape(Mp, D)[:M].reshape(B, T, A, D)


def _reference(entities, wq, wk, wv, wo, num_heads):
    """Pure-JAX transcription of the torch forward (f32 'ground truth')."""
    B, T, A, N, D = entities.shape
    Hd = D // num_heads
    scaling = Hd ** (-0.5)
    hi = jax.lax.Precision.HIGHEST
    q = jnp.einsum('...d,ed->...e', entities[..., 0, :], wq, precision=hi)
    k = jnp.einsum('...d,ed->...e', entities, wk, precision=hi)
    v = jnp.einsum('...d,ed->...e', entities, wv, precision=hi)
    qh = q.reshape(B, T, A, num_heads, Hd) * scaling
    kh = k.reshape(B, T, A, N, num_heads, Hd)
    vh = v.reshape(B, T, A, N, num_heads, Hd)
    scores = jnp.einsum('btahi,btanhj->btahnij', qh, kh, precision=hi)
    p = jax.nn.softmax(scores, axis=-1)
    attn = jnp.einsum('btahnij,btanhj->btahi', p, vh, precision=hi)  # sums over n and j
    attn = attn.reshape(B, T, A, D)
    return jnp.einsum('...d,ed->...e', attn, wo, precision=hi)


if __name__ == "__main__":
    def run_case(B, T, A, N, D, H, case):
        key = jax.random.fold_in(jax.random.PRNGKey(0), case)
        k0, k1, k2, k3, k4 = jax.random.split(key, 5)
        entities = jax.random.normal(k0, (B, T, A, N, D), dtype=jnp.float32)
        bound = 1.0 / math.sqrt(D)   # deterministic stand-in for nn.Linear init
        wq = jax.random.uniform(k1, (D, D), jnp.float32, -bound, bound)
        wk = jax.random.uniform(k2, (D, D), jnp.float32, -bound, bound)
        wv = jax.random.uniform(k3, (D, D), jnp.float32, -bound, bound)
        wo = jax.random.uniform(k4, (D, D), jnp.float32, -bound, bound)

        out = jax.block_until_ready(
            entity_feature_attention(entities, wq, wk, wv, wo, num_heads=H))
        ref = _reference(entities, wq, wk, wv, wo, H)
        assert out.shape == (B, T, A, D)
        err = float(jnp.max(jnp.abs(out - ref)))
        # Kernel matmuls are single-pass bf16; reference is full-f32 (HIGHEST) einsums.
        assert jnp.allclose(out, ref, rtol=2e-2, atol=3e-2), err

    # small shape from the module spec
    run_case(2, 3, 2, 5, 32, 4, case=0)
    # larger, non-multiple-of-fold shape: exercises row padding + a 2-step grid (megacore)
    run_case(5, 43, 5, 5, 32, 4, case=1)
    print("KERNEL_OK")
</pallas_src>

<mosaic_0001>
module attributes {stable_mosaic.version = 11 : i64} {
  func.func @_efa_kernel(%arg0: i32, %arg1: memref<8x640xbf16, #tpu.memory_space<vmem>>, %arg2: memref<32x512xbf16, #tpu.memory_space<vmem>>, %arg3: memref<32x256xbf16, #tpu.memory_space<vmem>>, %arg4: memref<4x256x128xbf16, #tpu.memory_space<vmem>>, %arg5: memref<128x128xbf16, #tpu.memory_space<vmem>>, %arg6: memref<1x1xf32, #tpu.memory_space<smem>>, %arg7: memref<8x128xf32, #tpu.memory_space<vmem>>) attributes {dimension_semantics = [#tpu.dimension_semantics<parallel>], iteration_bounds = array<i64: 1>, scalar_prefetch = 0 : i64, scratch_operands = 0 : i64, tpu.core_type = #tpu.core_type<tc>, window_params = [{transform_indices = @transform_0, window_bounds = array<i64: 8, 640>}, {pipeline_mode = #tpu.pipeline_mode<synchronous>, transform_indices = @transform_1, window_bounds = array<i64: 32, 512>}, {pipeline_mode = #tpu.pipeline_mode<synchronous>, transform_indices = @transform_2, window_bounds = array<i64: 32, 256>}, {pipeline_mode = #tpu.pipeline_mode<synchronous>, transform_indices = @transform_3, window_bounds = array<i64: 4, 256, 128>}, {pipeline_mode = #tpu.pipeline_mode<synchronous>, transform_indices = @transform_4, window_bounds = array<i64: 128, 128>}, {transform_indices = @transform_5, window_bounds = array<i64: 1, 1>}, {transform_indices = @transform_6, window_bounds = array<i64: 8, 128>}]} {
    %c0 = arith.constant 0 : index
    %c0_0 = arith.constant 0 : index
    %0 = vector.load %arg2[%c0, %c0_0] : memref<32x512xbf16, #tpu.memory_space<vmem>>, vector<32x512xbf16>
    %c0_1 = arith.constant 0 : index
    %c0_2 = arith.constant 0 : index
    %1 = vector.load %arg3[%c0_1, %c0_2] : memref<32x256xbf16, #tpu.memory_space<vmem>>, vector<32x256xbf16>
    %c0_3 = arith.constant 0 : index
    %c0_4 = arith.constant 0 : index
    %2 = memref.load %arg6[%c0_3, %c0_4] : memref<1x1xf32, #tpu.memory_space<smem>>
    %c0_5 = arith.constant 0 : index
    %c0_6 = arith.constant 0 : index
    %3 = vector.load %arg1[%c0_5, %c0_6] : memref<8x640xbf16, #tpu.memory_space<vmem>>, vector<8x640xbf16>
    %4 = math.absf %3 : vector<8x640xbf16>
    %cst = arith.constant dense<0xFF80> : vector<8xbf16>
    %5 = vector.multi_reduction <maximumf>, %4, %cst [1] : vector<8x640xbf16> to vector<8xbf16>
    %6 = vector.shape_cast %5 : vector<8xbf16> to vector<8x1xbf16>
    %7 = arith.extf %6 : vector<8x1xbf16> to vector<8x1xf32>
    %cst_7 = arith.constant 0.000000e+00 : f32
    %8 = vector.broadcast %cst_7 : f32 to vector<8x128xf32>
    %c0_8 = arith.constant 0 : index
    %c0_9 = arith.constant 0 : index
    %9 = vector.load %arg1[%c0_8, %c0_9] : memref<8x640xbf16, #tpu.memory_space<vmem>>, vector<8x32xbf16>
    %cst_10 = arith.constant dense<0.000000e+00> : vector<8x256xf32>
    %10 = tpu.matmul %9, %1, %cst_10 {dimension_numbers = #tpu.dot_dimension_numbers<[1], [0], [0], [1], [0, 0, 1, 1], [], []>} : vector<8x32xbf16>, vector<32x256xbf16>, vector<8x256xf32> -> vector<8x256xf32>
    %11 = math.absf %10 : vector<8x256xf32>
    %cst_11 = arith.constant dense<0xFF800000> : vector<8xf32>
    %12 = vector.multi_reduction <maximumf>, %11, %cst_11 [1] : vector<8x256xf32> to vector<8xf32>
    %13 = vector.shape_cast %12 : vector<8xf32> to vector<8x1xf32>
    %14 = vector.broadcast %2 : f32 to vector<8x1xf32>
    %15 = arith.mulf %7, %14 : vector<8x1xf32>
    %16 = arith.mulf %13, %15 : vector<8x1xf32>
    %cst_12 = arith.constant 8.000000e+01 : f32
    %17 = vector.broadcast %cst_12 : f32 to vector<8x1xf32>
    %18 = arith.minimumf %16, %17 : vector<8x1xf32>
    %c0_13 = arith.constant 0 : index
    %c0_14 = arith.constant 0 : index
    %c0_15 = arith.constant 0 : index
    %19 = vector.load %arg4[%c0_13, %c0_14, %c0_15] : memref<4x256x128xbf16, #tpu.memory_space<vmem>>, vector<1x256x128xbf16>
    %20 = vector.shape_cast %19 : vector<1x256x128xbf16> to vector<256x128xbf16>
    %c0_16 = arith.constant 0 : index
    %c0_17 = arith.constant 0 : index
    %21 = vector.load %arg1[%c0_16, %c0_17] : memref<8x640xbf16, #tpu.memory_space<vmem>>, vector<8x32xbf16>
    %cst_18 = arith.constant dense<0.000000e+00> : vector<8x512xf32>
    %22 = tpu.matmul %21, %0, %cst_18 {dimension_numbers = #tpu.dot_dimension_numbers<[1], [0], [0], [1], [0, 0, 1, 1], [], []>} : vector<8x32xbf16>, vector<32x512xbf16>, vector<8x512xf32> -> vector<8x512xf32>
    %23 = vector.extract_strided_slice %22 {offsets = [0, 0], sizes = [8, 256], strides = [1, 1]} : vector<8x512xf32> to vector<8x256xf32>
    %24 = arith.mulf %10, %23 : vector<8x256xf32>
    %25 = vector.broadcast %18 : vector<8x1xf32> to vector<8x256xf32>
    %26 = arith.subf %24, %25 : vector<8x256xf32>
    %27 = math.exp %26 : vector<8x256xf32>
    %28 = vector.extract_strided_slice %22 {offsets = [0, 256], sizes = [8, 256], strides = [1, 1]} : vector<8x512xf32> to vector<8x256xf32>
    %29 = arith.mulf %27, %28 : vector<8x256xf32>
    %30 = arith.truncf %27 : vector<8x256xf32> to vector<8x256xbf16>
    %cst_19 = arith.constant dense<0.000000e+00> : vector<8x128xf32>
    %31 = tpu.matmul %30, %20, %cst_19 {dimension_numbers = #tpu.dot_dimension_numbers<[1], [0], [0], [1], [0, 0, 1, 1], [], []>} : vector<8x256xbf16>, vector<256x128xbf16>, vector<8x128xf32> -> vector<8x128xf32>
    %32 = arith.truncf %29 : vector<8x256xf32> to vector<8x256xbf16>
    %cst_20 = arith.constant dense<0.000000e+00> : vector<8x128xf32>
    %33 = tpu.matmul %32, %20, %cst_20 {dimension_numbers = #tpu.dot_dimension_numbers<[1], [0], [0], [1], [0, 0, 1, 1], [], []>} : vector<8x256xbf16>, vector<256x128xbf16>, vector<8x128xf32> -> vector<8x128xf32>
    %cst_21 = arith.constant 0.000000e+00 : f32
    %34 = vector.broadcast %cst_21 : f32 to vector<8x128xf32>
    %35 = arith.cmpf ogt, %31, %34 : vector<8x128xf32>
    %cst_22 = arith.constant 1.000000e+00 : f32
    %36 = vector.broadcast %cst_22 : f32 to vector<8x128xf32>
    %37 = arith.select %35, %31, %36 : vector<8x128xi1>, vector<8x128xf32>
    %38 = tpu.reciprocal %37 {approx = true} : vector<8x128xf32> -> vector<8x128xf32>
    %39 = arith.mulf %37, %38 : vector<8x128xf32>
    %cst_23 = arith.constant 2.000000e+00 : f32
    %40 = vector.broadcast %cst_23 : f32 to vector<8x128xf32>
    %41 = arith.subf %40, %39 : vector<8x128xf32>
    %42 = arith.mulf %38, %41 : vector<8x128xf32>
    %43 = arith.mulf %33, %42 : vector<8x128xf32>
    %44 = arith.addf %8, %43 : vector<8x128xf32>
    %c0_24 = arith.constant 0 : index
    %c32 = arith.constant 32 : index
    %45 = vector.load %arg1[%c0_24, %c32] : memref<8x640xbf16, #tpu.memory_space<vmem>>, vector<8x32xbf16>
    %cst_25 = arith.constant dense<0.000000e+00> : vector<8x512xf32>
    %46 = tpu.matmul %45, %0, %cst_25 {dimension_numbers = #tpu.dot_dimension_numbers<[1], [0], [0], [1], [0, 0, 1, 1], [], []>} : vector<8x32xbf16>, vector<32x512xbf16>, vector<8x512xf32> -> vector<8x512xf32>
    %47 = vector.extract_strided_slice %46 {offsets = [0, 0], sizes = [8, 256], strides = [1, 1]} : vector<8x512xf32> to vector<8x256xf32>
    %48 = arith.mulf %10, %47 : vector<8x256xf32>
    %49 = vector.broadcast %18 : vector<8x1xf32> to vector<8x256xf32>
    %50 = arith.subf %48, %49 : vector<8x256xf32>
    %51 = math.exp %50 : vector<8x256xf32>
    %52 = vector.extract_strided_slice %46 {offsets = [0, 256], sizes = [8, 256], strides = [1, 1]} : vector<8x512xf32> to vector<8x256xf32>
    %53 = arith.mulf %51, %52 : vector<8x256xf32>
    %54 = arith.truncf %51 : vector<8x256xf32> to vector<8x256xbf16>
    %cst_26 = arith.constant dense<0.000000e+00> : vector<8x128xf32>
    %55 = tpu.matmul %54, %20, %cst_26 {dimension_numbers = #tpu.dot_dimension_numbers<[1], [0], [0], [1], [0, 0, 1, 1], [], []>} : vector<8x256xbf16>, vector<256x128xbf16>, vector<8x128xf32> -> vector<8x128xf32>
    %56 = arith.truncf %53 : vector<8x256xf32> to vector<8x256xbf16>
    %cst_27 = arith.constant dense<0.000000e+00> : vector<8x128xf32>
    %57 = tpu.matmul %56, %20, %cst_27 {dimension_numbers = #tpu.dot_dimension_numbers<[1], [0], [0], [1], [0, 0, 1, 1], [], []>} : vector<8x256xbf16>, vector<256x128xbf16>, vector<8x128xf32> -> vector<8x128xf32>
    %cst_28 = arith.constant 0.000000e+00 : f32
    %58 = vector.broadcast %cst_28 : f32 to vector<8x128xf32>
    %59 = arith.cmpf ogt, %55, %58 : vector<8x128xf32>
    %cst_29 = arith.constant 1.000000e+00 : f32
    %60 = vector.broadcast %cst_29 : f32 to vector<8x128xf32>
    %61 = arith.select %59, %55, %60 : vector<8x128xi1>, vector<8x128xf32>
    %62 = tpu.reciprocal %61 {approx = true} : vector<8x128xf32> -> vector<8x128xf32>
    %63 = arith.mulf %61, %62 : vector<8x128xf32>
    %cst_30 = arith.constant 2.000000e+00 : f32
    %64 = vector.broadcast %cst_30 : f32 to vector<8x128xf32>
    %65 = arith.subf %64, %63 : vector<8x128xf32>
    %66 = arith.mulf %62, %65 : vector<8x128xf32>
    %67 = arith.mulf %57, %66 : vector<8x128xf32>
    %68 = arith.addf %44, %67 : vector<8x128xf32>
    %c0_31 = arith.constant 0 : index
    %c64 = arith.constant 64 : index
    %69 = vector.load %arg1[%c0_31, %c64] : memref<8x640xbf16, #tpu.memory_space<vmem>>, vector<8x32xbf16>
    %cst_32 = arith.constant dense<0.000000e+00> : vector<8x512xf32>
    %70 = tpu.matmul %69, %0, %cst_32 {dimension_numbers = #tpu.dot_dimension_numbers<[1], [0], [0], [1], [0, 0, 1, 1], [], []>} : vector<8x32xbf16>, vector<32x512xbf16>, vector<8x512xf32> -> vector<8x512xf32>
    %71 = vector.extract_strided_slice %70 {offsets = [0, 0], sizes = [8, 256], strides = [1, 1]} : vector<8x512xf32> to vector<8x256xf32>
    %72 = arith.mulf %10, %71 : vector<8x256xf32>
    %73 = vector.broadcast %18 : vector<8x1xf32> to vector<8x256xf32>
    %74 = arith.subf %72, %73 : vector<8x256xf32>
    %75 = math.exp %74 : vector<8x256xf32>
    %76 = vector.extract_strided_slice %70 {offsets = [0, 256], sizes = [8, 256], strides = [1, 1]} : vector<8x512xf32> to vector<8x256xf32>
    %77 = arith.mulf %75, %76 : vector<8x256xf32>
    %78 = arith.truncf %75 : vector<8x256xf32> to vector<8x256xbf16>
    %cst_33 = arith.constant dense<0.000000e+00> : vector<8x128xf32>
    %79 = tpu.matmul %78, %20, %cst_33 {dimension_numbers = #tpu.dot_dimension_numbers<[1], [0], [0], [1], [0, 0, 1, 1], [], []>} : vector<8x256xbf16>, vector<256x128xbf16>, vector<8x128xf32> -> vector<8x128xf32>
    %80 = arith.truncf %77 : vector<8x256xf32> to vector<8x256xbf16>
    %cst_34 = arith.constant dense<0.000000e+00> : vector<8x128xf32>
    %81 = tpu.matmul %80, %20, %cst_34 {dimension_numbers = #tpu.dot_dimension_numbers<[1], [0], [0], [1], [0, 0, 1, 1], [], []>} : vector<8x256xbf16>, vector<256x128xbf16>, vector<8x128xf32> -> vector<8x128xf32>
    %cst_35 = arith.constant 0.000000e+00 : f32
    %82 = vector.broadcast %cst_35 : f32 to vector<8x128xf32>
    %83 = arith.cmpf ogt, %79, %82 : vector<8x128xf32>
    %cst_36 = arith.constant 1.000000e+00 : f32
    %84 = vector.broadcast %cst_36 : f32 to vector<8x128xf32>
    %85 = arith.select %83, %79, %84 : vector<8x128xi1>, vector<8x128xf32>
    %86 = tpu.reciprocal %85 {approx = true} : vector<8x128xf32> -> vector<8x128xf32>
    %87 = arith.mulf %85, %86 : vector<8x128xf32>
    %cst_37 = arith.constant 2.000000e+00 : f32
    %88 = vector.broadcast %cst_37 : f32 to vector<8x128xf32>
    %89 = arith.subf %88, %87 : vector<8x128xf32>
    %90 = arith.mulf %86, %89 : vector<8x128xf32>
    %91 = arith.mulf %81, %90 : vector<8x128xf32>
    %92 = arith.addf %68, %91 : vector<8x128xf32>
    %c0_38 = arith.constant 0 : index
    %c96 = arith.constant 96 : index
    %93 = vector.load %arg1[%c0_38, %c96] : memref<8x640xbf16, #tpu.memory_space<vmem>>, vector<8x32xbf16>
    %cst_39 = arith.constant dense<0.000000e+00> : vector<8x512xf32>
    %94 = tpu.matmul %93, %0, %cst_39 {dimension_numbers = #tpu.dot_dimension_numbers<[1], [0], [0], [1], [0, 0, 1, 1], [], []>} : vector<8x32xbf16>, vector<32x512xbf16>, vector<8x512xf32> -> vector<8x512xf32>
    %95 = vector.extract_strided_slice %94 {offsets = [0, 0], sizes = [8, 256], strides = [1, 1]} : vector<8x512xf32> to vector<8x256xf32>
    %96 = arith.mulf %10, %95 : vector<8x256xf32>
    %97 = vector.broadcast %18 : vector<8x1xf32> to vector<8x256xf32>
    %98 = arith.subf %96, %97 : vector<8x256xf32>
    %99 = math.exp %98 : vector<8x256xf32>
    %100 = vector.extract_strided_slice %94 {offsets = [0, 256], sizes = [8, 256], strides = [1, 1]} : vector<8x512xf32> to vector<8x256xf32>
    %101 = arith.mulf %99, %100 : vector<8x256xf32>
    %102 = arith.truncf %99 : vector<8x256xf32> to vector<8x256xbf16>
    %cst_40 = arith.constant dense<0.000000e+00> : vector<8x128xf32>
    %103 = tpu.matmul %102, %20, %cst_40 {dimension_numbers = #tpu.dot_dimension_numbers<[1], [0], [0], [1], [0, 0, 1, 1], [], []>} : vector<8x256xbf16>, vector<256x128xbf16>, vector<8x128xf32> -> vector<8x128xf32>
    %104 = arith.truncf %101 : vector<8x256xf32> to vector<8x256xbf16>
    %cst_41 = arith.constant dense<0.000000e+00> : vector<8x128xf32>
    %105 = tpu.matmul %104, %20, %cst_41 {dimension_numbers = #tpu.dot_dimension_numbers<[1], [0], [0], [1], [0, 0, 1, 1], [], []>} : vector<8x256xbf16>, vector<256x128xbf16>, vector<8x128xf32> -> vector<8x128xf32>
    %cst_42 = arith.constant 0.000000e+00 : f32
    %106 = vector.broadcast %cst_42 : f32 to vector<8x128xf32>
    %107 = arith.cmpf ogt, %103, %106 : vector<8x128xf32>
    %cst_43 = arith.constant 1.000000e+00 : f32
    %108 = vector.broadcast %cst_43 : f32 to vector<8x128xf32>
    %109 = arith.select %107, %103, %108 : vector<8x128xi1>, vector<8x128xf32>
    %110 = tpu.reciprocal %109 {approx = true} : vector<8x128xf32> -> vector<8x128xf32>
    %111 = arith.mulf %109, %110 : vector<8x128xf32>
    %cst_44 = arith.constant 2.000000e+00 : f32
    %112 = vector.broadcast %cst_44 : f32 to vector<8x128xf32>
    %113 = arith.subf %112, %111 : vector<8x128xf32>
    %114 = arith.mulf %110, %113 : vector<8x128xf32>
    %115 = arith.mulf %105, %114 : vector<8x128xf32>
    %116 = arith.addf %92, %115 : vector<8x128xf32>
    %c0_45 = arith.constant 0 : index
    %c128 = arith.constant 128 : index
    %117 = vector.load %arg1[%c0_45, %c128] : memref<8x640xbf16, #tpu.memory_space<vmem>>, vector<8x32xbf16>
    %cst_46 = arith.constant dense<0.000000e+00> : vector<8x512xf32>
    %118 = tpu.matmul %117, %0, %cst_46 {dimension_numbers = #tpu.dot_dimension_numbers<[1], [0], [0], [1], [0, 0, 1, 1], [], []>} : vector<8x32xbf16>, vector<32x512xbf16>, vector<8x512xf32> -> vector<8x512xf32>
    %119 = vector.extract_strided_slice %118 {offsets = [0, 0], sizes = [8, 256], strides = [1, 1]} : vector<8x512xf32> to vector<8x256xf32>
    %120 = arith.mulf %10, %119 : vector<8x256xf32>
    %121 = vector.broadcast %18 : vector<8x1xf32> to vector<8x256xf32>
    %122 = arith.subf %120, %121 : vector<8x256xf32>
    %123 = math.exp %122 : vector<8x256xf32>
    %124 = vector.extract_strided_slice %118 {offsets = [0, 256], sizes = [8, 256], strides = [1, 1]} : vector<8x512xf32> to vector<8x256xf32>
    %125 = arith.mulf %123, %124 : vector<8x256xf32>
    %126 = arith.truncf %123 : vector<8x256xf32> to vector<8x256xbf16>
    %cst_47 = arith.constant dense<0.000000e+00> : vector<8x128xf32>
    %127 = tpu.matmul %126, %20, %cst_47 {dimension_numbers = #tpu.dot_dimension_numbers<[1], [0], [0], [1], [0, 0, 1, 1], [], []>} : vector<8x256xbf16>, vector<256x128xbf16>, vector<8x128xf32> -> vector<8x128xf32>
    %128 = arith.truncf %125 : vector<8x256xf32> to vector<8x256xbf16>
    %cst_48 = arith.constant dense<0.000000e+00> : vector<8x128xf32>
    %129 = tpu.matmul %128, %20, %cst_48 {dimension_numbers = #tpu.dot_dimension_numbers<[1], [0], [0], [1], [0, 0, 1, 1], [], []>} : vector<8x256xbf16>, vector<256x128xbf16>, vector<8x128xf32> -> vector<8x128xf32>
    %cst_49 = arith.constant 0.000000e+00 : f32
    %130 = vector.broadcast %cst_49 : f32 to vector<8x128xf32>
    %131 = arith.cmpf ogt, %127, %130 : vector<8x128xf32>
    %cst_50 = arith.constant 1.000000e+00 : f32
    %132 = vector.broadcast %cst_50 : f32 to vector<8x128xf32>
    %133 = arith.select %131, %127, %132 : vector<8x128xi1>, vector<8x128xf32>
    %134 = tpu.reciprocal %133 {approx = true} : vector<8x128xf32> -> vector<8x128xf32>
    %135 = arith.mulf %133, %134 : vector<8x128xf32>
    %cst_51 = arith.constant 2.000000e+00 : f32
    %136 = vector.broadcast %cst_51 : f32 to vector<8x128xf32>
    %137 = arith.subf %136, %135 : vector<8x128xf32>
    %138 = arith.mulf %134, %137 : vector<8x128xf32>
    %139 = arith.mulf %129, %138 : vector<8x128xf32>
    %140 = arith.addf %116, %139 : vector<8x128xf32>
    %c0_52 = arith.constant 0 : index
    %c160 = arith.constant 160 : index
    %141 = vector.load %arg1[%c0_52, %c160] : memref<8x640xbf16, #tpu.memory_space<vmem>>, vector<8x32xbf16>
    %cst_53 = arith.constant dense<0.000000e+00> : vector<8x256xf32>
    %142 = tpu.matmul %141, %1, %cst_53 {dimension_numbers = #tpu.dot_dimension_numbers<[1], [0], [0], [1], [0, 0, 1, 1], [], []>} : vector<8x32xbf16>, vector<32x256xbf16>, vector<8x256xf32> -> vector<8x256xf32>
    %143 = math.absf %142 : vector<8x256xf32>
    %cst_54 = arith.constant dense<0xFF800000> : vector<8xf32>
    %144 = vector.multi_reduction <maximumf>, %143, %cst_54 [1] : vector<8x256xf32> to vector<8xf32>
    %145 = vector.shape_cast %144 : vector<8xf32> to vector<8x1xf32>
    %146 = vector.broadcast %2 : f32 to vector<8x1xf32>
    %147 = arith.mulf %7, %146 : vector<8x1xf32>
    %148 = arith.mulf %145, %147 : vector<8x1xf32>
    %cst_55 = arith.constant 8.000000e+01 : f32
    %149 = vector.broadcast %cst_55 : f32 to vector<8x1xf32>
    %150 = arith.minimumf %148, %149 : vector<8x1xf32>
    %c1 = arith.constant 1 : index
    %c0_56 = arith.constant 0 : index
    %c0_57 = arith.constant 0 : index
    %151 = vector.load %arg4[%c1, %c0_56, %c0_57] : memref<4x256x128xbf16, #tpu.memory_space<vmem>>, vector<1x256x128xbf16>
    %152 = vector.shape_cast %151 : vector<1x256x128xbf16> to vector<256x128xbf16>
    %c0_58 = arith.constant 0 : index
    %c160_59 = arith.constant 160 : index
    %153 = vector.load %arg1[%c0_58, %c160_59] : memref<8x640xbf16, #tpu.memory_space<vmem>>, vector<8x32xbf16>
    %cst_60 = arith.constant dense<0.000000e+00> : vector<8x512xf32>
    %154 = tpu.matmul %153, %0, %cst_60 {dimension_numbers = #tpu.dot_dimension_numbers<[1], [0], [0], [1], [0, 0, 1, 1], [], []>} : vector<8x32xbf16>, vector<32x512xbf16>, vector<8x512xf32> -> vector<8x512xf32>
    %155 = vector.extract_strided_slice %154 {offsets = [0, 0], sizes = [8, 256], strides = [1, 1]} : vector<8x512xf32> to vector<8x256xf32>
    %156 = arith.mulf %142, %155 : vector<8x256xf32>
    %157 = vector.broadcast %150 : vector<8x1xf32> to vector<8x256xf32>
    %158 = arith.subf %156, %157 : vector<8x256xf32>
    %159 = math.exp %158 : vector<8x256xf32>
    %160 = vector.extract_strided_slice %154 {offsets = [0, 256], sizes = [8, 256], strides = [1, 1]} : vector<8x512xf32> to vector<8x256xf32>
    %161 = arith.mulf %159, %160 : vector<8x256xf32>
    %162 = arith.truncf %159 : vector<8x256xf32> to vector<8x256xbf16>
    %cst_61 = arith.constant dense<0.000000e+00> : vector<8x128xf32>
    %163 = tpu.matmul %162, %152, %cst_61 {dimension_numbers = #tpu.dot_dimension_numbers<[1], [0], [0], [1], [0, 0, 1, 1], [], []>} : vector<8x256xbf16>, vector<256x128xbf16>, vector<8x128xf32> -> vector<8x128xf32>
    %164 = arith.truncf %161 : vector<8x256xf32> to vector<8x256xbf16>
    %cst_62 = arith.constant dense<0.000000e+00> : vector<8x128xf32>
    %165 = tpu.matmul %164, %152, %cst_62 {dimension_numbers = #tpu.dot_dimension_numbers<[1], [0], [0], [1], [0, 0, 1, 1], [], []>} : vector<8x256xbf16>, vector<256x128xbf16>, vector<8x128xf32> -> vector<8x128xf32>
    %cst_63 = arith.constant 0.000000e+00 : f32
    %166 = vector.broadcast %cst_63 : f32 to vector<8x128xf32>
    %167 = arith.cmpf ogt, %163, %166 : vector<8x128xf32>
    %cst_64 = arith.constant 1.000000e+00 : f32
    %168 = vector.broadcast %cst_64 : f32 to vector<8x128xf32>
    %169 = arith.select %167, %163, %168 : vector<8x128xi1>, vector<8x128xf32>
    %170 = tpu.reciprocal %169 {approx = true} : vector<8x128xf32> -> vector<8x128xf32>
    %171 = arith.mulf %169, %170 : vector<8x128xf32>
    %cst_65 = arith.constant 2.000000e+00 : f32
    %172 = vector.broadcast %cst_65 : f32 to vector<8x128xf32>
    %173 = arith.subf %172, %171 : vector<8x128xf32>
    %174 = arith.mulf %170, %173 : vector<8x128xf32>
    %175 = arith.mulf %165, %174 : vector<8x128xf32>
    %176 = arith.addf %140, %175 : vector<8x128xf32>
    %c0_66 = arith.constant 0 : index
    %c192 = arith.constant 192 : index
    %177 = vector.load %arg1[%c0_66, %c192] : memref<8x640xbf16, #tpu.memory_space<vmem>>, vector<8x32xbf16>
    %cst_67 = arith.constant dense<0.000000e+00> : vector<8x512xf32>
    %178 = tpu.matmul %177, %0, %cst_67 {dimension_numbers = #tpu.dot_dimension_numbers<[1], [0], [0], [1], [0, 0, 1, 1], [], []>} : vector<8x32xbf16>, vector<32x512xbf16>, vector<8x512xf32> -> vector<8x512xf32>
    %179 = vector.extract_strided_slice %178 {offsets = [0, 0], sizes = [8, 256], strides = [1, 1]} : vector<8x512xf32> to vector<8x256xf32>
    %180 = arith.mulf %142, %179 : vector<8x256xf32>
    %181 = vector.broadcast %150 : vector<8x1xf32> to vector<8x256xf32>
    %182 = arith.subf %180, %181 : vector<8x256xf32>
    %183 = math.exp %182 : vector<8x256xf32>
    %184 = vector.extract_strided_slice %178 {offsets = [0, 256], sizes = [8, 256], strides = [1, 1]} : vector<8x512xf32> to vector<8x256xf32>
    %185 = arith.mulf %183, %184 : vector<8x256xf32>
    %186 = arith.truncf %183 : vector<8x256xf32> to vector<8x256xbf16>
    %cst_68 = arith.constant dense<0.000000e+00> : vector<8x128xf32>
    %187 = tpu.matmul %186, %152, %cst_68 {dimension_numbers = #tpu.dot_dimension_numbers<[1], [0], [0], [1], [0, 0, 1, 1], [], []>} : vector<8x256xbf16>, vector<256x128xbf16>, vector<8x128xf32> -> vector<8x128xf32>
    %188 = arith.truncf %185 : vector<8x256xf32> to vector<8x256xbf16>
    %cst_69 = arith.constant dense<0.000000e+00> : vector<8x128xf32>
    %189 = tpu.matmul %188, %152, %cst_69 {dimension_numbers = #tpu.dot_dimension_numbers<[1], [0], [0], [1], [0, 0, 1, 1], [], []>} : vector<8x256xbf16>, vector<256x128xbf16>, vector<8x128xf32> -> vector<8x128xf32>
    %cst_70 = arith.constant 0.000000e+00 : f32
    %190 = vector.broadcast %cst_70 : f32 to vector<8x128xf32>
    %191 = arith.cmpf ogt, %187, %190 : vector<8x128xf32>
    %cst_71 = arith.constant 1.000000e+00 : f32
    %192 = vector.broadcast %cst_71 : f32 to vector<8x128xf32>
    %193 = arith.select %191, %187, %192 : vector<8x128xi1>, vector<8x128xf32>
    %194 = tpu.reciprocal %193 {approx = true} : vector<8x128xf32> -> vector<8x128xf32>
    %195 = arith.mulf %193, %194 : vector<8x128xf32>
    %cst_72 = arith.constant 2.000000e+00 : f32
    %196 = vector.broadcast %cst_72 : f32 to vector<8x128xf32>
    %197 = arith.subf %196, %195 : vector<8x128xf32>
    %198 = arith.mulf %194, %197 : vector<8x128xf32>
    %199 = arith.mulf %189, %198 : vector<8x128xf32>
    %200 = arith.addf %176, %199 : vector<8x128xf32>
    %c0_73 = arith.constant 0 : index
    %c224 = arith.constant 224 : index
    %201 = vector.load %arg1[%c0_73, %c224] : memref<8x640xbf16, #tpu.memory_space<vmem>>, vector<8x32xbf16>
    %cst_74 = arith.constant dense<0.000000e+00> : vector<8x512xf32>
    %202 = tpu.matmul %201, %0, %cst_74 {dimension_numbers = #tpu.dot_dimension_numbers<[1], [0], [0], [1], [0, 0, 1, 1], [], []>} : vector<8x32xbf16>, vector<32x512xbf16>, vector<8x512xf32> -> vector<8x512xf32>
    %203 = vector.extract_strided_slice %202 {offsets = [0, 0], sizes = [8, 256], strides = [1, 1]} : vector<8x512xf32> to vector<8x256xf32>
    %204 = arith.mulf %142, %203 : vector<8x256xf32>
    %205 = vector.broadcast %150 : vector<8x1xf32> to vector<8x256xf32>
    %206 = arith.subf %204, %205 : vector<8x256xf32>
    %207 = math.exp %206 : vector<8x256xf32>
    %208 = vector.extract_strided_slice %202 {offsets = [0, 256], sizes = [8, 256], strides = [1, 1]} : vector<8x512xf32> to vector<8x256xf32>
    %209 = arith.mulf %207, %208 : vector<8x256xf32>
    %210 = arith.truncf %207 : vector<8x256xf32> to vector<8x256xbf16>
    %cst_75 = arith.constant dense<0.000000e+00> : vector<8x128xf32>
    %211 = tpu.matmul %210, %152, %cst_75 {dimension_numbers = #tpu.dot_dimension_numbers<[1], [0], [0], [1], [0, 0, 1, 1], [], []>} : vector<8x256xbf16>, vector<256x128xbf16>, vector<8x128xf32> -> vector<8x128xf32>
    %212 = arith.truncf %209 : vector<8x256xf32> to vector<8x256xbf16>
    %cst_76 = arith.constant dense<0.000000e+00> : vector<8x128xf32>
    %213 = tpu.matmul %212, %152, %cst_76 {dimension_numbers = #tpu.dot_dimension_numbers<[1], [0], [0], [1], [0, 0, 1, 1], [], []>} : vector<8x256xbf16>, vector<256x128xbf16>, vector<8x128xf32> -> vector<8x128xf32>
    %cst_77 = arith.constant 0.000000e+00 : f32
    %214 = vector.broadcast %cst_77 : f32 to vector<8x128xf32>
    %215 = arith.cmpf ogt, %211, %214 : vector<8x128xf32>
    %cst_78 = arith.constant 1.000000e+00 : f32
    %216 = vector.broadcast %cst_78 : f32 to vector<8x128xf32>
    %217 = arith.select %215, %211, %216 : vector<8x128xi1>, vector<8x128xf32>
    %218 = tpu.reciprocal %217 {approx = true} : vector<8x128xf32> -> vector<8x128xf32>
    %219 = arith.mulf %217, %218 : vector<8x128xf32>
    %cst_79 = arith.constant 2.000000e+00 : f32
    %220 = vector.broadcast %cst_79 : f32 to vector<8x128xf32>
    %221 = arith.subf %220, %219 : vector<8x128xf32>
    %222 = arith.mulf %218, %221 : vector<8x128xf32>
    %223 = arith.mulf %213, %222 : vector<8x128xf32>
    %224 = arith.addf %200, %223 : vector<8x128xf32>
    %c0_80 = arith.constant 0 : index
    %c256 = arith.constant 256 : index
    %225 = vector.load %arg1[%c0_80, %c256] : memref<8x640xbf16, #tpu.memory_space<vmem>>, vector<8x32xbf16>
    %cst_81 = arith.constant dense<0.000000e+00> : vector<8x512xf32>
    %226 = tpu.matmul %225, %0, %cst_81 {dimension_numbers = #tpu.dot_dimension_numbers<[1], [0], [0], [1], [0, 0, 1, 1], [], []>} : vector<8x32xbf16>, vector<32x512xbf16>, vector<8x512xf32> -> vector<8x512xf32>
    %227 = vector.extract_strided_slice %226 {offsets = [0, 0], sizes = [8, 256], strides = [1, 1]} : vector<8x512xf32> to vector<8x256xf32>
    %228 = arith.mulf %142, %227 : vector<8x256xf32>
    %229 = vector.broadcast %150 : vector<8x1xf32> to vector<8x256xf32>
    %230 = arith.subf %228, %229 : vector<8x256xf32>
    %231 = math.exp %230 : vector<8x256xf32>
    %232 = vector.extract_strided_slice %226 {offsets = [0, 256], sizes = [8, 256], strides = [1, 1]} : vector<8x512xf32> to vector<8x256xf32>
    %233 = arith.mulf %231, %232 : vector<8x256xf32>
    %234 = arith.truncf %231 : vector<8x256xf32> to vector<8x256xbf16>
    %cst_82 = arith.constant dense<0.000000e+00> : vector<8x128xf32>
    %235 = tpu.matmul %234, %152, %cst_82 {dimension_numbers = #tpu.dot_dimension_numbers<[1], [0], [0], [1], [0, 0, 1, 1], [], []>} : vector<8x256xbf16>, vector<256x128xbf16>, vector<8x128xf32> -> vector<8x128xf32>
    %236 = arith.truncf %233 : vector<8x256xf32> to vector<8x256xbf16>
    %cst_83 = arith.constant dense<0.000000e+00> : vector<8x128xf32>
    %237 = tpu.matmul %236, %152, %cst_83 {dimension_numbers = #tpu.dot_dimension_numbers<[1], [0], [0], [1], [0, 0, 1, 1], [], []>} : vector<8x256xbf16>, vector<256x128xbf16>, vector<8x128xf32> -> vector<8x128xf32>
    %cst_84 = arith.constant 0.000000e+00 : f32
    %238 = vector.broadcast %cst_84 : f32 to vector<8x128xf32>
    %239 = arith.cmpf ogt, %235, %238 : vector<8x128xf32>
    %cst_85 = arith.constant 1.000000e+00 : f32
    %240 = vector.broadcast %cst_85 : f32 to vector<8x128xf32>
    %241 = arith.select %239, %235, %240 : vector<8x128xi1>, vector<8x128xf32>
    %242 = tpu.reciprocal %241 {approx = true} : vector<8x128xf32> -> vector<8x128xf32>
    %243 = arith.mulf %241, %242 : vector<8x128xf32>
    %cst_86 = arith.constant 2.000000e+00 : f32
    %244 = vector.broadcast %cst_86 : f32 to vector<8x128xf32>
    %245 = arith.subf %244, %243 : vector<8x128xf32>
    %246 = arith.mulf %242, %245 : vector<8x128xf32>
    %247 = arith.mulf %237, %246 : vector<8x128xf32>
    %248 = arith.addf %224, %247 : vector<8x128xf32>
    %c0_87 = arith.constant 0 : index
    %c288 = arith.constant 288 : index
    %249 = vector.load %arg1[%c0_87, %c288] : memref<8x640xbf16, #tpu.memory_space<vmem>>, vector<8x32xbf16>
    %cst_88 = arith.constant dense<0.000000e+00> : vector<8x512xf32>
    %250 = tpu.matmul %249, %0, %cst_88 {dimension_numbers = #tpu.dot_dimension_numbers<[1], [0], [0], [1], [0, 0, 1, 1], [], []>} : vector<8x32xbf16>, vector<32x512xbf16>, vector<8x512xf32> -> vector<8x512xf32>
    %251 = vector.extract_strided_slice %250 {offsets = [0, 0], sizes = [8, 256], strides = [1, 1]} : vector<8x512xf32> to vector<8x256xf32>
    %252 = arith.mulf %142, %251 : vector<8x256xf32>
    %253 = vector.broadcast %150 : vector<8x1xf32> to vector<8x256xf32>
    %254 = arith.subf %252, %253 : vector<8x256xf32>
    %255 = math.exp %254 : vector<8x256xf32>
    %256 = vector.extract_strided_slice %250 {offsets = [0, 256], sizes = [8, 256], strides = [1, 1]} : vector<8x512xf32> to vector<8x256xf32>
    %257 = arith.mulf %255, %256 : vector<8x256xf32>
    %258 = arith.truncf %255 : vector<8x256xf32> to vector<8x256xbf16>
    %cst_89 = arith.constant dense<0.000000e+00> : vector<8x128xf32>
    %259 = tpu.matmul %258, %152, %cst_89 {dimension_numbers = #tpu.dot_dimension_numbers<[1], [0], [0], [1], [0, 0, 1, 1], [], []>} : vector<8x256xbf16>, vector<256x128xbf16>, vector<8x128xf32> -> vector<8x128xf32>
    %260 = arith.truncf %257 : vector<8x256xf32> to vector<8x256xbf16>
    %cst_90 = arith.constant dense<0.000000e+00> : vector<8x128xf32>
    %261 = tpu.matmul %260, %152, %cst_90 {dimension_numbers = #tpu.dot_dimension_numbers<[1], [0], [0], [1], [0, 0, 1, 1], [], []>} : vector<8x256xbf16>, vector<256x128xbf16>, vector<8x128xf32> -> vector<8x128xf32>
    %cst_91 = arith.constant 0.000000e+00 : f32
    %262 = vector.broadcast %cst_91 : f32 to vector<8x128xf32>
    %263 = arith.cmpf ogt, %259, %262 : vector<8x128xf32>
    %cst_92 = arith.constant 1.000000e+00 : f32
    %264 = vector.broadcast %cst_92 : f32 to vector<8x128xf32>
    %265 = arith.select %263, %259, %264 : vector<8x128xi1>, vector<8x128xf32>
    %266 = tpu.reciprocal %265 {approx = true} : vector<8x128xf32> -> vector<8x128xf32>
    %267 = arith.mulf %265, %266 : vector<8x128xf32>
    %cst_93 = arith.constant 2.000000e+00 : f32
    %268 = vector.broadcast %cst_93 : f32 to vector<8x128xf32>
    %269 = arith.subf %268, %267 : vector<8x128xf32>
    %270 = arith.mulf %266, %269 : vector<8x128xf32>
    %271 = arith.mulf %261, %270 : vector<8x128xf32>
    %272 = arith.addf %248, %271 : vector<8x128xf32>
    %c0_94 = arith.constant 0 : index
    %c320 = arith.constant 320 : index
    %273 = vector.load %arg1[%c0_94, %c320] : memref<8x640xbf16, #tpu.memory_space<vmem>>, vector<8x32xbf16>
    %cst_95 = arith.constant dense<0.000000e+00> : vector<8x256xf32>
    %274 = tpu.matmul %273, %1, %cst_95 {dimension_numbers = #tpu.dot_dimension_numbers<[1], [0], [0], [1], [0, 0, 1, 1], [], []>} : vector<8x32xbf16>, vector<32x256xbf16>, vector<8x256xf32> -> vector<8x256xf32>
    %275 = math.absf %274 : vector<8x256xf32>
    %cst_96 = arith.constant dense<0xFF800000> : vector<8xf32>
    %276 = vector.multi_reduction <maximumf>, %275, %cst_96 [1] : vector<8x256xf32> to vector<8xf32>
    %277 = vector.shape_cast %276 : vector<8xf32> to vector<8x1xf32>
    %278 = vector.broadcast %2 : f32 to vector<8x1xf32>
    %279 = arith.mulf %7, %278 : vector<8x1xf32>
    %280 = arith.mulf %277, %279 : vector<8x1xf32>
    %cst_97 = arith.constant 8.000000e+01 : f32
    %281 = vector.broadcast %cst_97 : f32 to vector<8x1xf32>
    %282 = arith.minimumf %280, %281 : vector<8x1xf32>
    %c2 = arith.constant 2 : index
    %c0_98 = arith.constant 0 : index
    %c0_99 = arith.constant 0 : index
    %283 = vector.load %arg4[%c2, %c0_98, %c0_99] : memref<4x256x128xbf16, #tpu.memory_space<vmem>>, vector<1x256x128xbf16>
    %284 = vector.shape_cast %283 : vector<1x256x128xbf16> to vector<256x128xbf16>
    %c0_100 = arith.constant 0 : index
    %c320_101 = arith.constant 320 : index
    %285 = vector.load %arg1[%c0_100, %c320_101] : memref<8x640xbf16, #tpu.memory_space<vmem>>, vector<8x32xbf16>
    %cst_102 = arith.constant dense<0.000000e+00> : vector<8x512xf32>
    %286 = tpu.matmul %285, %0, %cst_102 {dimension_numbers = #tpu.dot_dimension_numbers<[1], [0], [0], [1], [0, 0, 1, 1], [], []>} : vector<8x32xbf16>, vector<32x512xbf16>, vector<8x512xf32> -> vector<8x512xf32>
    %287 = vector.extract_strided_slice %286 {offsets = [0, 0], sizes = [8, 256], strides = [1, 1]} : vector<8x512xf32> to vector<8x256xf32>
    %288 = arith.mulf %274, %287 : vector<8x256xf32>
    %289 = vector.broadcast %282 : vector<8x1xf32> to vector<8x256xf32>
    %290 = arith.subf %288, %289 : vector<8x256xf32>
    %291 = math.exp %290 : vector<8x256xf32>
    %292 = vector.extract_strided_slice %286 {offsets = [0, 256], sizes = [8, 256], strides = [1, 1]} : vector<8x512xf32> to vector<8x256xf32>
    %293 = arith.mulf %291, %292 : vector<8x256xf32>
    %294 = arith.truncf %291 : vector<8x256xf32> to vector<8x256xbf16>
    %cst_103 = arith.constant dense<0.000000e+00> : vector<8x128xf32>
    %295 = tpu.matmul %294, %284, %cst_103 {dimension_numbers = #tpu.dot_dimension_numbers<[1], [0], [0], [1], [0, 0, 1, 1], [], []>} : vector<8x256xbf16>, vector<256x128xbf16>, vector<8x128xf32> -> vector<8x128xf32>
    %296 = arith.truncf %293 : vector<8x256xf32> to vector<8x256xbf16>
    %cst_104 = arith.constant dense<0.000000e+00> : vector<8x128xf32>
    %297 = tpu.matmul %296, %284, %cst_104 {dimension_numbers = #tpu.dot_dimension_numbers<[1], [0], [0], [1], [0, 0, 1, 1], [], []>} : vector<8x256xbf16>, vector<256x128xbf16>, vector<8x128xf32> -> vector<8x128xf32>
    %cst_105 = arith.constant 0.000000e+00 : f32
    %298 = vector.broadcast %cst_105 : f32 to vector<8x128xf32>
    %299 = arith.cmpf ogt, %295, %298 : vector<8x128xf32>
    %cst_106 = arith.constant 1.000000e+00 : f32
    %300 = vector.broadcast %cst_106 : f32 to vector<8x128xf32>
    %301 = arith.select %299, %295, %300 : vector<8x128xi1>, vector<8x128xf32>
    %302 = tpu.reciprocal %301 {approx = true} : vector<8x128xf32> -> vector<8x128xf32>
    %303 = arith.mulf %301, %302 : vector<8x128xf32>
    %cst_107 = arith.constant 2.000000e+00 : f32
    %304 = vector.broadcast %cst_107 : f32 to vector<8x128xf32>
    %305 = arith.subf %304, %303 : vector<8x128xf32>
    %306 = arith.mulf %302, %305 : vector<8x128xf32>
    %307 = arith.mulf %297, %306 : vector<8x128xf32>
    %308 = arith.addf %272, %307 : vector<8x128xf32>
    %c0_108 = arith.constant 0 : index
    %c352 = arith.constant 352 : index
    %309 = vector.load %arg1[%c0_108, %c352] : memref<8x640xbf16, #tpu.memory_space<vmem>>, vector<8x32xbf16>
    %cst_109 = arith.constant dense<0.000000e+00> : vector<8x512xf32>
    %310 = tpu.matmul %309, %0, %cst_109 {dimension_numbers = #tpu.dot_dimension_numbers<[1], [0], [0], [1], [0, 0, 1, 1], [], []>} : vector<8x32xbf16>, vector<32x512xbf16>, vector<8x512xf32> -> vector<8x512xf32>
    %311 = vector.extract_strided_slice %310 {offsets = [0, 0], sizes = [8, 256], strides = [1, 1]} : vector<8x512xf32> to vector<8x256xf32>
    %312 = arith.mulf %274, %311 : vector<8x256xf32>
    %313 = vector.broadcast %282 : vector<8x1xf32> to vector<8x256xf32>
    %314 = arith.subf %312, %313 : vector<8x256xf32>
    %315 = math.exp %314 : vector<8x256xf32>
    %316 = vector.extract_strided_slice %310 {offsets = [0, 256], sizes = [8, 256], strides = [1, 1]} : vector<8x512xf32> to vector<8x256xf32>
    %317 = arith.mulf %315, %316 : vector<8x256xf32>
    %318 = arith.truncf %315 : vector<8x256xf32> to vector<8x256xbf16>
    %cst_110 = arith.constant dense<0.000000e+00> : vector<8x128xf32>
    %319 = tpu.matmul %318, %284, %cst_110 {dimension_numbers = #tpu.dot_dimension_numbers<[1], [0], [0], [1], [0, 0, 1, 1], [], []>} : vector<8x256xbf16>, vector<256x128xbf16>, vector<8x128xf32> -> vector<8x128xf32>
    %320 = arith.truncf %317 : vector<8x256xf32> to vector<8x256xbf16>
    %cst_111 = arith.constant dense<0.000000e+00> : vector<8x128xf32>
    %321 = tpu.matmul %320, %284, %cst_111 {dimension_numbers = #tpu.dot_dimension_numbers<[1], [0], [0], [1], [0, 0, 1, 1], [], []>} : vector<8x256xbf16>, vector<256x128xbf16>, vector<8x128xf32> -> vector<8x128xf32>
    %cst_112 = arith.constant 0.000000e+00 : f32
    %322 = vector.broadcast %cst_112 : f32 to vector<8x128xf32>
    %323 = arith.cmpf ogt, %319, %322 : vector<8x128xf32>
    %cst_113 = arith.constant 1.000000e+00 : f32
    %324 = vector.broadcast %cst_113 : f32 to vector<8x128xf32>
    %325 = arith.select %323, %319, %324 : vector<8x128xi1>, vector<8x128xf32>
    %326 = tpu.reciprocal %325 {approx = true} : vector<8x128xf32> -> vector<8x128xf32>
    %327 = arith.mulf %325, %326 : vector<8x128xf32>
    %cst_114 = arith.constant 2.000000e+00 : f32
    %328 = vector.broadcast %cst_114 : f32 to vector<8x128xf32>
    %329 = arith.subf %328, %327 : vector<8x128xf32>
    %330 = arith.mulf %326, %329 : vector<8x128xf32>
    %331 = arith.mulf %321, %330 : vector<8x128xf32>
    %332 = arith.addf %308, %331 : vector<8x128xf32>
    %c0_115 = arith.constant 0 : index
    %c384 = arith.constant 384 : index
    %333 = vector.load %arg1[%c0_115, %c384] : memref<8x640xbf16, #tpu.memory_space<vmem>>, vector<8x32xbf16>
    %cst_116 = arith.constant dense<0.000000e+00> : vector<8x512xf32>
    %334 = tpu.matmul %333, %0, %cst_116 {dimension_numbers = #tpu.dot_dimension_numbers<[1], [0], [0], [1], [0, 0, 1, 1], [], []>} : vector<8x32xbf16>, vector<32x512xbf16>, vector<8x512xf32> -> vector<8x512xf32>
    %335 = vector.extract_strided_slice %334 {offsets = [0, 0], sizes = [8, 256], strides = [1, 1]} : vector<8x512xf32> to vector<8x256xf32>
    %336 = arith.mulf %274, %335 : vector<8x256xf32>
    %337 = vector.broadcast %282 : vector<8x1xf32> to vector<8x256xf32>
    %338 = arith.subf %336, %337 : vector<8x256xf32>
    %339 = math.exp %338 : vector<8x256xf32>
    %340 = vector.extract_strided_slice %334 {offsets = [0, 256], sizes = [8, 256], strides = [1, 1]} : vector<8x512xf32> to vector<8x256xf32>
    %341 = arith.mulf %339, %340 : vector<8x256xf32>
    %342 = arith.truncf %339 : vector<8x256xf32> to vector<8x256xbf16>
    %cst_117 = arith.constant dense<0.000000e+00> : vector<8x128xf32>
    %343 = tpu.matmul %342, %284, %cst_117 {dimension_numbers = #tpu.dot_dimension_numbers<[1], [0], [0], [1], [0, 0, 1, 1], [], []>} : vector<8x256xbf16>, vector<256x128xbf16>, vector<8x128xf32> -> vector<8x128xf32>
    %344 = arith.truncf %341 : vector<8x256xf32> to vector<8x256xbf16>
    %cst_118 = arith.constant dense<0.000000e+00> : vector<8x128xf32>
    %345 = tpu.matmul %344, %284, %cst_118 {dimension_numbers = #tpu.dot_dimension_numbers<[1], [0], [0], [1], [0, 0, 1, 1], [], []>} : vector<8x256xbf16>, vector<256x128xbf16>, vector<8x128xf32> -> vector<8x128xf32>
    %cst_119 = arith.constant 0.000000e+00 : f32
    %346 = vector.broadcast %cst_119 : f32 to vector<8x128xf32>
    %347 = arith.cmpf ogt, %343, %346 : vector<8x128xf32>
    %cst_120 = arith.constant 1.000000e+00 : f32
    %348 = vector.broadcast %cst_120 : f32 to vector<8x128xf32>
    %349 = arith.select %347, %343, %348 : vector<8x128xi1>, vector<8x128xf32>
    %350 = tpu.reciprocal %349 {approx = true} : vector<8x128xf32> -> vector<8x128xf32>
    %351 = arith.mulf %349, %350 : vector<8x128xf32>
    %cst_121 = arith.constant 2.000000e+00 : f32
    %352 = vector.broadcast %cst_121 : f32 to vector<8x128xf32>
    %353 = arith.subf %352, %351 : vector<8x128xf32>
    %354 = arith.mulf %350, %353 : vector<8x128xf32>
    %355 = arith.mulf %345, %354 : vector<8x128xf32>
    %356 = arith.addf %332, %355 : vector<8x128xf32>
    %c0_122 = arith.constant 0 : index
    %c416 = arith.constant 416 : index
    %357 = vector.load %arg1[%c0_122, %c416] : memref<8x640xbf16, #tpu.memory_space<vmem>>, vector<8x32xbf16>
    %cst_123 = arith.constant dense<0.000000e+00> : vector<8x512xf32>
    %358 = tpu.matmul %357, %0, %cst_123 {dimension_numbers = #tpu.dot_dimension_numbers<[1], [0], [0], [1], [0, 0, 1, 1], [], []>} : vector<8x32xbf16>, vector<32x512xbf16>, vector<8x512xf32> -> vector<8x512xf32>
    %359 = vector.extract_strided_slice %358 {offsets = [0, 0], sizes = [8, 256], strides = [1, 1]} : vector<8x512xf32> to vector<8x256xf32>
    %360 = arith.mulf %274, %359 : vector<8x256xf32>
    %361 = vector.broadcast %282 : vector<8x1xf32> to vector<8x256xf32>
    %362 = arith.subf %360, %361 : vector<8x256xf32>
    %363 = math.exp %362 : vector<8x256xf32>
    %364 = vector.extract_strided_slice %358 {offsets = [0, 256], sizes = [8, 256], strides = [1, 1]} : vector<8x512xf32> to vector<8x256xf32>
    %365 = arith.mulf %363, %364 : vector<8x256xf32>
    %366 = arith.truncf %363 : vector<8x256xf32> to vector<8x256xbf16>
    %cst_124 = arith.constant dense<0.000000e+00> : vector<8x128xf32>
    %367 = tpu.matmul %366, %284, %cst_124 {dimension_numbers = #tpu.dot_dimension_numbers<[1], [0], [0], [1], [0, 0, 1, 1], [], []>} : vector<8x256xbf16>, vector<256x128xbf16>, vector<8x128xf32> -> vector<8x128xf32>
    %368 = arith.truncf %365 : vector<8x256xf32> to vector<8x256xbf16>
    %cst_125 = arith.constant dense<0.000000e+00> : vector<8x128xf32>
    %369 = tpu.matmul %368, %284, %cst_125 {dimension_numbers = #tpu.dot_dimension_numbers<[1], [0], [0], [1], [0, 0, 1, 1], [], []>} : vector<8x256xbf16>, vector<256x128xbf16>, vector<8x128xf32> -> vector<8x128xf32>
    %cst_126 = arith.constant 0.000000e+00 : f32
    %370 = vector.broadcast %cst_126 : f32 to vector<8x128xf32>
    %371 = arith.cmpf ogt, %367, %370 : vector<8x128xf32>
    %cst_127 = arith.constant 1.000000e+00 : f32
    %372 = vector.broadcast %cst_127 : f32 to vector<8x128xf32>
    %373 = arith.select %371, %367, %372 : vector<8x128xi1>, vector<8x128xf32>
    %374 = tpu.reciprocal %373 {approx = true} : vector<8x128xf32> -> vector<8x128xf32>
    %375 = arith.mulf %373, %374 : vector<8x128xf32>
    %cst_128 = arith.constant 2.000000e+00 : f32
    %376 = vector.broadcast %cst_128 : f32 to vector<8x128xf32>
    %377 = arith.subf %376, %375 : vector<8x128xf32>
    %378 = arith.mulf %374, %377 : vector<8x128xf32>
    %379 = arith.mulf %369, %378 : vector<8x128xf32>
    %380 = arith.addf %356, %379 : vector<8x128xf32>
    %c0_129 = arith.constant 0 : index
    %c448 = arith.constant 448 : index
    %381 = vector.load %arg1[%c0_129, %c448] : memref<8x640xbf16, #tpu.memory_space<vmem>>, vector<8x32xbf16>
    %cst_130 = arith.constant dense<0.000000e+00> : vector<8x512xf32>
    %382 = tpu.matmul %381, %0, %cst_130 {dimension_numbers = #tpu.dot_dimension_numbers<[1], [0], [0], [1], [0, 0, 1, 1], [], []>} : vector<8x32xbf16>, vector<32x512xbf16>, vector<8x512xf32> -> vector<8x512xf32>
    %383 = vector.extract_strided_slice %382 {offsets = [0, 0], sizes = [8, 256], strides = [1, 1]} : vector<8x512xf32> to vector<8x256xf32>
    %384 = arith.mulf %274, %383 : vector<8x256xf32>
    %385 = vector.broadcast %282 : vector<8x1xf32> to vector<8x256xf32>
    %386 = arith.subf %384, %385 : vector<8x256xf32>
    %387 = math.exp %386 : vector<8x256xf32>
    %388 = vector.extract_strided_slice %382 {offsets = [0, 256], sizes = [8, 256], strides = [1, 1]} : vector<8x512xf32> to vector<8x256xf32>
    %389 = arith.mulf %387, %388 : vector<8x256xf32>
    %390 = arith.truncf %387 : vector<8x256xf32> to vector<8x256xbf16>
    %cst_131 = arith.constant dense<0.000000e+00> : vector<8x128xf32>
    %391 = tpu.matmul %390, %284, %cst_131 {dimension_numbers = #tpu.dot_dimension_numbers<[1], [0], [0], [1], [0, 0, 1, 1], [], []>} : vector<8x256xbf16>, vector<256x128xbf16>, vector<8x128xf32> -> vector<8x128xf32>
    %392 = arith.truncf %389 : vector<8x256xf32> to vector<8x256xbf16>
    %cst_132 = arith.constant dense<0.000000e+00> : vector<8x128xf32>
    %393 = tpu.matmul %392, %284, %cst_132 {dimension_numbers = #tpu.dot_dimension_numbers<[1], [0], [0], [1], [0, 0, 1, 1], [], []>} : vector<8x256xbf16>, vector<256x128xbf16>, vector<8x128xf32> -> vector<8x128xf32>
    %cst_133 = arith.constant 0.000000e+00 : f32
    %394 = vector.broadcast %cst_133 : f32 to vector<8x128xf32>
    %395 = arith.cmpf ogt, %391, %394 : vector<8x128xf32>
    %cst_134 = arith.constant 1.000000e+00 : f32
    %396 = vector.broadcast %cst_134 : f32 to vector<8x128xf32>
    %397 = arith.select %395, %391, %396 : vector<8x128xi1>, vector<8x128xf32>
    %398 = tpu.reciprocal %397 {approx = true} : vector<8x128xf32> -> vector<8x128xf32>
    %399 = arith.mulf %397, %398 : vector<8x128xf32>
    %cst_135 = arith.constant 2.000000e+00 : f32
    %400 = vector.broadcast %cst_135 : f32 to vector<8x128xf32>
    %401 = arith.subf %400, %399 : vector<8x128xf32>
    %402 = arith.mulf %398, %401 : vector<8x128xf32>
    %403 = arith.mulf %393, %402 : vector<8x128xf32>
    %404 = arith.addf %380, %403 : vector<8x128xf32>
    %c0_136 = arith.constant 0 : index
    %c480 = arith.constant 480 : index
    %405 = vector.load %arg1[%c0_136, %c480] : memref<8x640xbf16, #tpu.memory_space<vmem>>, vector<8x32xbf16>
    %cst_137 = arith.constant dense<0.000000e+00> : vector<8x256xf32>
    %406 = tpu.matmul %405, %1, %cst_137 {dimension_numbers = #tpu.dot_dimension_numbers<[1], [0], [0], [1], [0, 0, 1, 1], [], []>} : vector<8x32xbf16>, vector<32x256xbf16>, vector<8x256xf32> -> vector<8x256xf32>
    %407 = math.absf %406 : vector<8x256xf32>
    %cst_138 = arith.constant dense<0xFF800000> : vector<8xf32>
    %408 = vector.multi_reduction <maximumf>, %407, %cst_138 [1] : vector<8x256xf32> to vector<8xf32>
    %409 = vector.shape_cast %408 : vector<8xf32> to vector<8x1xf32>
    %410 = vector.broadcast %2 : f32 to vector<8x1xf32>
    %411 = arith.mulf %7, %410 : vector<8x1xf32>
    %412 = arith.mulf %409, %411 : vector<8x1xf32>
    %cst_139 = arith.constant 8.000000e+01 : f32
    %413 = vector.broadcast %cst_139 : f32 to vector<8x1xf32>
    %414 = arith.minimumf %412, %413 : vector<8x1xf32>
    %c3 = arith.constant 3 : index
    %c0_140 = arith.constant 0 : index
    %c0_141 = arith.constant 0 : index
    %415 = vector.load %arg4[%c3, %c0_140, %c0_141] : memref<4x256x128xbf16, #tpu.memory_space<vmem>>, vector<1x256x128xbf16>
    %416 = vector.shape_cast %415 : vector<1x256x128xbf16> to vector<256x128xbf16>
    %c0_142 = arith.constant 0 : index
    %c480_143 = arith.constant 480 : index
    %417 = vector.load %arg1[%c0_142, %c480_143] : memref<8x640xbf16, #tpu.memory_space<vmem>>, vector<8x32xbf16>
    %cst_144 = arith.constant dense<0.000000e+00> : vector<8x512xf32>
    %418 = tpu.matmul %417, %0, %cst_144 {dimension_numbers = #tpu.dot_dimension_numbers<[1], [0], [0], [1], [0, 0, 1, 1], [], []>} : vector<8x32xbf16>, vector<32x512xbf16>, vector<8x512xf32> -> vector<8x512xf32>
    %419 = vector.extract_strided_slice %418 {offsets = [0, 0], sizes = [8, 256], strides = [1, 1]} : vector<8x512xf32> to vector<8x256xf32>
    %420 = arith.mulf %406, %419 : vector<8x256xf32>
    %421 = vector.broadcast %414 : vector<8x1xf32> to vector<8x256xf32>
    %422 = arith.subf %420, %421 : vector<8x256xf32>
    %423 = math.exp %422 : vector<8x256xf32>
    %424 = vector.extract_strided_slice %418 {offsets = [0, 256], sizes = [8, 256], strides = [1, 1]} : vector<8x512xf32> to vector<8x256xf32>
    %425 = arith.mulf %423, %424 : vector<8x256xf32>
    %426 = arith.truncf %423 : vector<8x256xf32> to vector<8x256xbf16>
    %cst_145 = arith.constant dense<0.000000e+00> : vector<8x128xf32>
    %427 = tpu.matmul %426, %416, %cst_145 {dimension_numbers = #tpu.dot_dimension_numbers<[1], [0], [0], [1], [0, 0, 1, 1], [], []>} : vector<8x256xbf16>, vector<256x128xbf16>, vector<8x128xf32> -> vector<8x128xf32>
    %428 = arith.truncf %425 : vector<8x256xf32> to vector<8x256xbf16>
    %cst_146 = arith.constant dense<0.000000e+00> : vector<8x128xf32>
    %429 = tpu.matmul %428, %416, %cst_146 {dimension_numbers = #tpu.dot_dimension_numbers<[1], [0], [0], [1], [0, 0, 1, 1], [], []>} : vector<8x256xbf16>, vector<256x128xbf16>, vector<8x128xf32> -> vector<8x128xf32>
    %cst_147 = arith.constant 0.000000e+00 : f32
    %430 = vector.broadcast %cst_147 : f32 to vector<8x128xf32>
    %431 = arith.cmpf ogt, %427, %430 : vector<8x128xf32>
    %cst_148 = arith.constant 1.000000e+00 : f32
    %432 = vector.broadcast %cst_148 : f32 to vector<8x128xf32>
    %433 = arith.select %431, %427, %432 : vector<8x128xi1>, vector<8x128xf32>
    %434 = tpu.reciprocal %433 {approx = true} : vector<8x128xf32> -> vector<8x128xf32>
    %435 = arith.mulf %433, %434 : vector<8x128xf32>
    %cst_149 = arith.constant 2.000000e+00 : f32
    %436 = vector.broadcast %cst_149 : f32 to vector<8x128xf32>
    %437 = arith.subf %436, %435 : vector<8x128xf32>
    %438 = arith.mulf %434, %437 : vector<8x128xf32>
    %439 = arith.mulf %429, %438 : vector<8x128xf32>
    %440 = arith.addf %404, %439 : vector<8x128xf32>
    %c0_150 = arith.constant 0 : index
    %c512 = arith.constant 512 : index
    %441 = vector.load %arg1[%c0_150, %c512] : memref<8x640xbf16, #tpu.memory_space<vmem>>, vector<8x32xbf16>
    %cst_151 = arith.constant dense<0.000000e+00> : vector<8x512xf32>
    %442 = tpu.matmul %441, %0, %cst_151 {dimension_numbers = #tpu.dot_dimension_numbers<[1], [0], [0], [1], [0, 0, 1, 1], [], []>} : vector<8x32xbf16>, vector<32x512xbf16>, vector<8x512xf32> -> vector<8x512xf32>
    %443 = vector.extract_strided_slice %442 {offsets = [0, 0], sizes = [8, 256], strides = [1, 1]} : vector<8x512xf32> to vector<8x256xf32>
    %444 = arith.mulf %406, %443 : vector<8x256xf32>
    %445 = vector.broadcast %414 : vector<8x1xf32> to vector<8x256xf32>
    %446 = arith.subf %444, %445 : vector<8x256xf32>
    %447 = math.exp %446 : vector<8x256xf32>
    %448 = vector.extract_strided_slice %442 {offsets = [0, 256], sizes = [8, 256], strides = [1, 1]} : vector<8x512xf32> to vector<8x256xf32>
    %449 = arith.mulf %447, %448 : vector<8x256xf32>
    %450 = arith.truncf %447 : vector<8x256xf32> to vector<8x256xbf16>
    %cst_152 = arith.constant dense<0.000000e+00> : vector<8x128xf32>
    %451 = tpu.matmul %450, %416, %cst_152 {dimension_numbers = #tpu.dot_dimension_numbers<[1], [0], [0], [1], [0, 0, 1, 1], [], []>} : vector<8x256xbf16>, vector<256x128xbf16>, vector<8x128xf32> -> vector<8x128xf32>
    %452 = arith.truncf %449 : vector<8x256xf32> to vector<8x256xbf16>
    %cst_153 = arith.constant dense<0.000000e+00> : vector<8x128xf32>
    %453 = tpu.matmul %452, %416, %cst_153 {dimension_numbers = #tpu.dot_dimension_numbers<[1], [0], [0], [1], [0, 0, 1, 1], [], []>} : vector<8x256xbf16>, vector<256x128xbf16>, vector<8x128xf32> -> vector<8x128xf32>
    %cst_154 = arith.constant 0.000000e+00 : f32
    %454 = vector.broadcast %cst_154 : f32 to vector<8x128xf32>
    %455 = arith.cmpf ogt, %451, %454 : vector<8x128xf32>
    %cst_155 = arith.constant 1.000000e+00 : f32
    %456 = vector.broadcast %cst_155 : f32 to vector<8x128xf32>
    %457 = arith.select %455, %451, %456 : vector<8x128xi1>, vector<8x128xf32>
    %458 = tpu.reciprocal %457 {approx = true} : vector<8x128xf32> -> vector<8x128xf32>
    %459 = arith.mulf %457, %458 : vector<8x128xf32>
    %cst_156 = arith.constant 2.000000e+00 : f32
    %460 = vector.broadcast %cst_156 : f32 to vector<8x128xf32>
    %461 = arith.subf %460, %459 : vector<8x128xf32>
    %462 = arith.mulf %458, %461 : vector<8x128xf32>
    %463 = arith.mulf %453, %462 : vector<8x128xf32>
    %464 = arith.addf %440, %463 : vector<8x128xf32>
    %c0_157 = arith.constant 0 : index
    %c544 = arith.constant 544 : index
    %465 = vector.load %arg1[%c0_157, %c544] : memref<8x640xbf16, #tpu.memory_space<vmem>>, vector<8x32xbf16>
    %cst_158 = arith.constant dense<0.000000e+00> : vector<8x512xf32>
    %466 = tpu.matmul %465, %0, %cst_158 {dimension_numbers = #tpu.dot_dimension_numbers<[1], [0], [0], [1], [0, 0, 1, 1], [], []>} : vector<8x32xbf16>, vector<32x512xbf16>, vector<8x512xf32> -> vector<8x512xf32>
    %467 = vector.extract_strided_slice %466 {offsets = [0, 0], sizes = [8, 256], strides = [1, 1]} : vector<8x512xf32> to vector<8x256xf32>
    %468 = arith.mulf %406, %467 : vector<8x256xf32>
    %469 = vector.broadcast %414 : vector<8x1xf32> to vector<8x256xf32>
    %470 = arith.subf %468, %469 : vector<8x256xf32>
    %471 = math.exp %470 : vector<8x256xf32>
    %472 = vector.extract_strided_slice %466 {offsets = [0, 256], sizes = [8, 256], strides = [1, 1]} : vector<8x512xf32> to vector<8x256xf32>
    %473 = arith.mulf %471, %472 : vector<8x256xf32>
    %474 = arith.truncf %471 : vector<8x256xf32> to vector<8x256xbf16>
    %cst_159 = arith.constant dense<0.000000e+00> : vector<8x128xf32>
    %475 = tpu.matmul %474, %416, %cst_159 {dimension_numbers = #tpu.dot_dimension_numbers<[1], [0], [0], [1], [0, 0, 1, 1], [], []>} : vector<8x256xbf16>, vector<256x128xbf16>, vector<8x128xf32> -> vector<8x128xf32>
    %476 = arith.truncf %473 : vector<8x256xf32> to vector<8x256xbf16>
    %cst_160 = arith.constant dense<0.000000e+00> : vector<8x128xf32>
    %477 = tpu.matmul %476, %416, %cst_160 {dimension_numbers = #tpu.dot_dimension_numbers<[1], [0], [0], [1], [0, 0, 1, 1], [], []>} : vector<8x256xbf16>, vector<256x128xbf16>, vector<8x128xf32> -> vector<8x128xf32>
    %cst_161 = arith.constant 0.000000e+00 : f32
    %478 = vector.broadcast %cst_161 : f32 to vector<8x128xf32>
    %479 = arith.cmpf ogt, %475, %478 : vector<8x128xf32>
    %cst_162 = arith.constant 1.000000e+00 : f32
    %480 = vector.broadcast %cst_162 : f32 to vector<8x128xf32>
    %481 = arith.select %479, %475, %480 : vector<8x128xi1>, vector<8x128xf32>
    %482 = tpu.reciprocal %481 {approx = true} : vector<8x128xf32> -> vector<8x128xf32>
    %483 = arith.mulf %481, %482 : vector<8x128xf32>
    %cst_163 = arith.constant 2.000000e+00 : f32
    %484 = vector.broadcast %cst_163 : f32 to vector<8x128xf32>
    %485 = arith.subf %484, %483 : vector<8x128xf32>
    %486 = arith.mulf %482, %485 : vector<8x128xf32>
    %487 = arith.mulf %477, %486 : vector<8x128xf32>
    %488 = arith.addf %464, %487 : vector<8x128xf32>
    %c0_164 = arith.constant 0 : index
    %c576 = arith.constant 576 : index
    %489 = vector.load %arg1[%c0_164, %c576] : memref<8x640xbf16, #tpu.memory_space<vmem>>, vector<8x32xbf16>
    %cst_165 = arith.constant dense<0.000000e+00> : vector<8x512xf32>
    %490 = tpu.matmul %489, %0, %cst_165 {dimension_numbers = #tpu.dot_dimension_numbers<[1], [0], [0], [1], [0, 0, 1, 1], [], []>} : vector<8x32xbf16>, vector<32x512xbf16>, vector<8x512xf32> -> vector<8x512xf32>
    %491 = vector.extract_strided_slice %490 {offsets = [0, 0], sizes = [8, 256], strides = [1, 1]} : vector<8x512xf32> to vector<8x256xf32>
    %492 = arith.mulf %406, %491 : vector<8x256xf32>
    %493 = vector.broadcast %414 : vector<8x1xf32> to vector<8x256xf32>
    %494 = arith.subf %492, %493 : vector<8x256xf32>
    %495 = math.exp %494 : vector<8x256xf32>
    %496 = vector.extract_strided_slice %490 {offsets = [0, 256], sizes = [8, 256], strides = [1, 1]} : vector<8x512xf32> to vector<8x256xf32>
    %497 = arith.mulf %495, %496 : vector<8x256xf32>
    %498 = arith.truncf %495 : vector<8x256xf32> to vector<8x256xbf16>
    %cst_166 = arith.constant dense<0.000000e+00> : vector<8x128xf32>
    %499 = tpu.matmul %498, %416, %cst_166 {dimension_numbers = #tpu.dot_dimension_numbers<[1], [0], [0], [1], [0, 0, 1, 1], [], []>} : vector<8x256xbf16>, vector<256x128xbf16>, vector<8x128xf32> -> vector<8x128xf32>
    %500 = arith.truncf %497 : vector<8x256xf32> to vector<8x256xbf16>
    %cst_167 = arith.constant dense<0.000000e+00> : vector<8x128xf32>
    %501 = tpu.matmul %500, %416, %cst_167 {dimension_numbers = #tpu.dot_dimension_numbers<[1], [0], [0], [1], [0, 0, 1, 1], [], []>} : vector<8x256xbf16>, vector<256x128xbf16>, vector<8x128xf32> -> vector<8x128xf32>
    %cst_168 = arith.constant 0.000000e+00 : f32
    %502 = vector.broadcast %cst_168 : f32 to vector<8x128xf32>
    %503 = arith.cmpf ogt, %499, %502 : vector<8x128xf32>
    %cst_169 = arith.constant 1.000000e+00 : f32
    %504 = vector.broadcast %cst_169 : f32 to vector<8x128xf32>
    %505 = arith.select %503, %499, %504 : vector<8x128xi1>, vector<8x128xf32>
    %506 = tpu.reciprocal %505 {approx = true} : vector<8x128xf32> -> vector<8x128xf32>
    %507 = arith.mulf %505, %506 : vector<8x128xf32>
    %cst_170 = arith.constant 2.000000e+00 : f32
    %508 = vector.broadcast %cst_170 : f32 to vector<8x128xf32>
    %509 = arith.subf %508, %507 : vector<8x128xf32>
    %510 = arith.mulf %506, %509 : vector<8x128xf32>
    %511 = arith.mulf %501, %510 : vector<8x128xf32>
    %512 = arith.addf %488, %511 : vector<8x128xf32>
    %c0_171 = arith.constant 0 : index
    %c608 = arith.constant 608 : index
    %513 = vector.load %arg1[%c0_171, %c608] : memref<8x640xbf16, #tpu.memory_space<vmem>>, vector<8x32xbf16>
    %cst_172 = arith.constant dense<0.000000e+00> : vector<8x512xf32>
    %514 = tpu.matmul %513, %0, %cst_172 {dimension_numbers = #tpu.dot_dimension_numbers<[1], [0], [0], [1], [0, 0, 1, 1], [], []>} : vector<8x32xbf16>, vector<32x512xbf16>, vector<8x512xf32> -> vector<8x512xf32>
    %515 = vector.extract_strided_slice %514 {offsets = [0, 0], sizes = [8, 256], strides = [1, 1]} : vector<8x512xf32> to vector<8x256xf32>
    %516 = arith.mulf %406, %515 : vector<8x256xf32>
    %517 = vector.broadcast %414 : vector<8x1xf32> to vector<8x256xf32>
    %518 = arith.subf %516, %517 : vector<8x256xf32>
    %519 = math.exp %518 : vector<8x256xf32>
    %520 = vector.extract_strided_slice %514 {offsets = [0, 256], sizes = [8, 256], strides = [1, 1]} : vector<8x512xf32> to vector<8x256xf32>
    %521 = arith.mulf %519, %520 : vector<8x256xf32>
    %522 = arith.truncf %519 : vector<8x256xf32> to vector<8x256xbf16>
    %cst_173 = arith.constant dense<0.000000e+00> : vector<8x128xf32>
    %523 = tpu.matmul %522, %416, %cst_173 {dimension_numbers = #tpu.dot_dimension_numbers<[1], [0], [0], [1], [0, 0, 1, 1], [], []>} : vector<8x256xbf16>, vector<256x128xbf16>, vector<8x128xf32> -> vector<8x128xf32>
    %524 = arith.truncf %521 : vector<8x256xf32> to vector<8x256xbf16>
    %cst_174 = arith.constant dense<0.000000e+00> : vector<8x128xf32>
    %525 = tpu.matmul %524, %416, %cst_174 {dimension_numbers = #tpu.dot_dimension_numbers<[1], [0], [0], [1], [0, 0, 1, 1], [], []>} : vector<8x256xbf16>, vector<256x128xbf16>, vector<8x128xf32> -> vector<8x128xf32>
    %cst_175 = arith.constant 0.000000e+00 : f32
    %526 = vector.broadcast %cst_175 : f32 to vector<8x128xf32>
    %527 = arith.cmpf ogt, %523, %526 : vector<8x128xf32>
    %cst_176 = arith.constant 1.000000e+00 : f32
    %528 = vector.broadcast %cst_176 : f32 to vector<8x128xf32>
    %529 = arith.select %527, %523, %528 : vector<8x128xi1>, vector<8x128xf32>
    %530 = tpu.reciprocal %529 {approx = true} : vector<8x128xf32> -> vector<8x128xf32>
    %531 = arith.mulf %529, %530 : vector<8x128xf32>
    %cst_177 = arith.constant 2.000000e+00 : f32
    %532 = vector.broadcast %cst_177 : f32 to vector<8x128xf32>
    %533 = arith.subf %532, %531 : vector<8x128xf32>
    %534 = arith.mulf %530, %533 : vector<8x128xf32>
    %535 = arith.mulf %525, %534 : vector<8x128xf32>
    %536 = arith.addf %512, %535 : vector<8x128xf32>
    %537 = arith.truncf %536 : vector<8x128xf32> to vector<8x128xbf16>
    %c0_178 = arith.constant 0 : index
    %c0_179 = arith.constant 0 : index
    %538 = vector.load %arg5[%c0_178, %c0_179] : memref<128x128xbf16, #tpu.memory_space<vmem>>, vector<128x128xbf16>
    %cst_180 = arith.constant dense<0.000000e+00> : vector<8x128xf32>
    %539 = tpu.matmul %537, %538, %cst_180 {dimension_numbers = #tpu.dot_dimension_numbers<[1], [0], [0], [1], [0, 0, 1, 1], [], []>} : vector<8x128xbf16>, vector<128x128xbf16>, vector<8x128xf32> -> vector<8x128xf32>
    %c0_181 = arith.constant 0 : index
    %c0_182 = arith.constant 0 : index
    %540 = vector.load %arg7[%c0_181, %c0_182] : memref<8x128xf32, #tpu.memory_space<vmem>>, vector<8x128xf32>
    tpu.vector_store %arg7[%c0_181, %c0_182], %539 {strides = array<i32>} : memref<8x128xf32, #tpu.memory_space<vmem>>, vector<8x128xf32>,
    return
  }
  func.func @transform_0(%arg0: i32) -> (i32, i32) {
    %c0_i32 = arith.constant 0 : i32
    %c0_i32_0 = arith.constant 0 : i32
    return %arg0, %c0_i32 : i32, i32
  }
  func.func @transform_1(%arg0: i32) -> (i32, i32) {
    %c0_i32 = arith.constant 0 : i32
    %c0_i32_0 = arith.constant 0 : i32
    %c0_i32_1 = arith.constant 0 : i32
    return %c0_i32, %c0_i32_0 : i32, i32
  }
  func.func @transform_2(%arg0: i32) -> (i32, i32) {
    %c0_i32 = arith.constant 0 : i32
    %c0_i32_0 = arith.constant 0 : i32
    %c0_i32_1 = arith.constant 0 : i32
    return %c0_i32, %c0_i32_0 : i32, i32
  }
  func.func @transform_3(%arg0: i32) -> (i32, i32, i32) {
    %c0_i32 = arith.constant 0 : i32
    %c0_i32_0 = arith.constant 0 : i32
    %c0_i32_1 = arith.constant 0 : i32
    %c0_i32_2 = arith.constant 0 : i32
    return %c0_i32, %c0_i32_0, %c0_i32_1 : i32, i32, i32
  }
  func.func @transform_4(%arg0: i32) -> (i32, i32) {
    %c0_i32 = arith.constant 0 : i32
    %c0_i32_0 = arith.constant 0 : i32
    %c0_i32_1 = arith.constant 0 : i32
    return %c0_i32, %c0_i32_0 : i32, i32
  }
  func.func @transform_5(%arg0: i32) -> (i32, i32) {
    %c0_i32 = arith.constant 0 : i32
    %c0_i32_0 = arith.constant 0 : i32
    %c0_i32_1 = arith.constant 0 : i32
    return %c0_i32, %c0_i32_0 : i32, i32
  }
  func.func @transform_6(%arg0: i32) -> (i32, i32) {
    %c0_i32 = arith.constant 0 : i32
    %c0_i32_0 = arith.constant 0 : i32
    return %arg0, %c0_i32 : i32, i32
  }
}

</mosaic_0001>

<llo_original>
// kernel: tpu_custom_call.1
$region0: #{tpu_custom_call.1}
  #allocation0 [shape = 'u32[]', space=smem, size = 0x4, offset = 0x4, fixed_abs, tag = 'smem constant byte address 0x4 - core index']
  #allocation1 [shape = 'u32[144,128]{1,0:T(1,128)}', space=vmem, size = 0x12000, scoped, tag = 'internal scratch']
  #allocation2 [shape = 'f32[1,1]{1,0:T(1,128)S(6)}', space=smem, size = 0x200, scoped, tag = 'scoped memory for tpu_custom_call.1']
  %s0 = inlined_call_operand.hbm [shape: bf16[8,640], index: 0, kind: input, shape index: {}]
  %s1 = inlined_call_operand.hbm [shape: bf16[32,512], index: 1, kind: input, shape index: {}]
  %s2 = inlined_call_operand.hbm [shape: bf16[32,256], index: 2, kind: input, shape index: {}]
  %s3 = inlined_call_operand.hbm [shape: bf16[4,256,128], index: 3, kind: input, shape index: {}]
  %s4 = inlined_call_operand.hbm [shape: bf16[128,128], index: 4, kind: input, shape index: {}]
  %s5 = inlined_call_operand.<no memory space> [shape: f32[1,1], index: 5, kind: input, shape index: {}]
  %s6 = inlined_call_operand.hbm [shape: f32[8,128], index: 6, kind: output, shape index: {}]
  %s7 = sld [smem:[#allocation0]]
  $region54: #{tpu_custom_call.1} parent=0
    _
  %s9 = ssub.s32 1, %s7
  %s10 = scalar_select 0, %s9, %s7
  %11 = sst [smem:[#allocation2]] %s5
  $region1: #{tpu_custom_call.1} parent=0
    #allocation3 [shape = 'u8[10240]{0}', space=vmem, size = 0x2800, scoped, tag = 'input window, operand 0, single buffered']
    #allocation4 [shape = 's32[1]{0}', space=sflag, size = 0x4, scoped, tag = 'scoped memory for tpu_custom_call.1']
    #allocation5 [shape = 's32[1]{0}', space=sflag, size = 0x4, scoped, tag = 'scoped memory for tpu_custom_call.1']
    #allocation6 [shape = 'u8[32768]{0}', space=vmem, size = 0x8000, scoped, tag = 'input window, operand 1, single buffered']
    #allocation7 [shape = 's32[1]{0}', space=sflag, size = 0x4, scoped, tag = 'scoped memory for tpu_custom_call.1']
    #allocation8 [shape = 'u8[16384]{0}', space=vmem, size = 0x4000, scoped, tag = 'input window, operand 2, single buffered']
    #allocation9 [shape = 'u8[262144]{0}', space=vmem, size = 0x40000, scoped, tag = 'input window, operand 3, single buffered']
    #allocation10 [shape = 's32[1]{0}', space=sflag, size = 0x4, scoped, tag = 'scoped memory for tpu_custom_call.1']
    #allocation11 [shape = 'u8[32768]{0}', space=vmem, size = 0x8000, scoped, tag = 'input window, operand 4, single buffered']
    #allocation12 [shape = 'u8[4096]{0}', space=vmem, size = 0x1000, scoped, tag = 'output window, operand 0, single buffered']
    %12 = vsyncpa [#allocation4], 0
    %13 = vsyncpa [#allocation7], 0
    %14 = vsyncpa [#allocation10], 0
    %15 = vsyncpa [#allocation5], 0
    // Predicated region
    $region2: #{tpu_custom_call.1} parent=1 // pred_check
      _
    $region3: #{tpu_custom_call.1} parent=1 // pred_check_branch
      %17 = sbr.rel (0) target = $region5
    $region4: #{tpu_custom_call.1} parent=1 // pred_region
      %s19 = ssub.s32 320, 320
      %20 = vsyncadd [#allocation4], %s19
      %s22 = sshll.u32 [#allocation3], 4
      %s23 = int_to_ptr.vmem [resolvable:$true] %s22
      %25 = dma.hbm_to_vmem [thread:$0]  %s0, 320, %s23, [#allocation4]
    $region5: #{tpu_custom_call.1} parent=1 // pred_fallthru
      _
    // Predicated region
    $region6: #{tpu_custom_call.1} parent=1 // pred_check
      _
    $region7: #{tpu_custom_call.1} parent=1 // pred_check_branch
      %27 = sbr.rel (0) target = $region9
    $region8: #{tpu_custom_call.1} parent=1 // pred_region
      %s29 = ssub.s32 1024, 1024
      %30 = vsyncadd [#allocation7], %s29
      %s31 = sshll.u32 [#allocation6], 4
      %s32 = int_to_ptr.vmem [resolvable:$true] %s31
      %37 = dma.hbm_to_vmem [thread:$0]  %s1, 1024, %s32, [#allocation7], 256, 256, 16
    $region9: #{tpu_custom_call.1} parent=1 // pred_fallthru
      _
    // Predicated region
    $region10: #{tpu_custom_call.1} parent=1 // pred_check
      _
    $region11: #{tpu_custom_call.1} parent=1 // pred_check_branch
      %39 = sbr.rel (0) target = $region13
    $region12: #{tpu_custom_call.1} parent=1 // pred_region
      %s41 = ssub.s32 512, 512
      %42 = vsyncadd [#allocation7], %s41
      %s43 = sshll.u32 [#allocation8], 4
      %s44 = int_to_ptr.vmem [resolvable:$true] %s43
      %49 = dma.hbm_to_vmem [thread:$0]  %s2, 512, %s44, [#allocation7], 128, 128, 8
    $region13: #{tpu_custom_call.1} parent=1 // pred_fallthru
      _
    // Predicated region
    $region14: #{tpu_custom_call.1} parent=1 // pred_check
      _
    $region15: #{tpu_custom_call.1} parent=1 // pred_check_branch
      %51 = sbr.rel (0) target = $region17
    $region16: #{tpu_custom_call.1} parent=1 // pred_region
      %s53 = ssub.s32 8192, 8192
      %54 = vsyncadd [#allocation10], %s53
      %s55 = sshll.u32 [#allocation9], 4
      %s56 = int_to_ptr.vmem [resolvable:$true] %s55
      %61 = dma.hbm_to_vmem [thread:$0]  %s3, 8192, %s56, [#allocation10], 64, 64, 4
    $region17: #{tpu_custom_call.1} parent=1 // pred_fallthru
      _
    // Predicated region
    $region18: #{tpu_custom_call.1} parent=1 // pred_check
      _
    $region19: #{tpu_custom_call.1} parent=1 // pred_check_branch
      %63 = sbr.rel (0) target = $region21
    $region20: #{tpu_custom_call.1} parent=1 // pred_region
      %s65 = ssub.s32 1024, 1024
      %66 = vsyncadd [#allocation10], %s65
      %s67 = sshll.u32 [#allocation11], 4
      %s68 = int_to_ptr.vmem [resolvable:$true] %s67
      %73 = dma.hbm_to_vmem [thread:$0]  %s4, 1024, %s68, [#allocation10], 64, 64, 4
    $region21: #{tpu_custom_call.1} parent=1 // pred_fallthru
      _
    // Predicated region
    $region22: #{tpu_custom_call.1} parent=1 // pred_check
      _
    $region23: #{tpu_custom_call.1} parent=1 // pred_check_branch
      %75 = sbr.rel (0) target = $region25
    $region24: #{tpu_custom_call.1} parent=1 // pred_region
      _
    $region25: #{tpu_custom_call.1} parent=1 // pred_fallthru
      _
    // Predicated region
    $region26: #{tpu_custom_call.1} parent=1 // pred_check
      _
    $region27: #{tpu_custom_call.1} parent=1 // pred_check_branch
      %77 = sbr.rel (0) target = $region29
    $region28: #{tpu_custom_call.1} parent=1 // pred_region
      %78 = dma.done [#allocation4], 320
    $region29: #{tpu_custom_call.1} parent=1 // pred_fallthru
      _
    // Predicated region
    $region30: #{tpu_custom_call.1} parent=1 // pred_check
      _
    $region31: #{tpu_custom_call.1} parent=1 // pred_check_branch
      %80 = sbr.rel (0) target = $region33
    $region32: #{tpu_custom_call.1} parent=1 // pred_region
      %81 = dma.done [#allocation7], 1024
    $region33: #{tpu_custom_call.1} parent=1 // pred_fallthru
      _
    // Predicated region
    $region34: #{tpu_custom_call.1} parent=1 // pred_check
      _
    $region35: #{tpu_custom_call.1} parent=1 // pred_check_branch
      %83 = sbr.rel (0) target = $region37
    $region36: #{tpu_custom_call.1} parent=1 // pred_region
      %84 = dma.done [#allocation7], 512
    $region37: #{tpu_custom_call.1} parent=1 // pred_fallthru
      _
    // Predicated region
    $region38: #{tpu_custom_call.1} parent=1 // pred_check
      _
    $region39: #{tpu_custom_call.1} parent=1 // pred_check_branch
      %86 = sbr.rel (0) target = $region41
    $region40: #{tpu_custom_call.1} parent=1 // pred_region
      %87 = dma.done [#allocation10], 8192
    $region41: #{tpu_custom_call.1} parent=1 // pred_fallthru
      _
    // Predicated region
    $region42: #{tpu_custom_call.1} parent=1 // pred_check
      _
    $region43: #{tpu_custom_call.1} parent=1 // pred_check_branch
      %89 = sbr.rel (0) target = $region45
    $region44: #{tpu_custom_call.1} parent=1 // pred_region
      %90 = dma.done [#allocation10], 1024
    $region45: #{tpu_custom_call.1} parent=1 // pred_fallthru
      _
    %v93 = vld [vmem:[#allocation6] sm:$0xff]
    %v94 = vld [vmem:[#allocation6 + $0x8] sm:$0xff]
    %v95 = vld [vmem:[#allocation6 + $0x10] sm:$0xff]
    %v96 = vld [vmem:[#allocation6 + $0x18] sm:$0xff]
    %v97 = vld [vmem:[#allocation6 + $0x20] sm:$0xff]
    %v98 = vld [vmem:[#allocation6 + $0x28] sm:$0xff]
    %v99 = vld [vmem:[#allocation6 + $0x30] sm:$0xff]
    %v100 = vld [vmem:[#allocation6 + $0x38] sm:$0xff]
    %v101 = vld [vmem:[#allocation8] sm:$0xff]
    %v102 = vld [vmem:[#allocation8 + $0x8] sm:$0xff]
    %v103 = vld [vmem:[#allocation8 + $0x10] sm:$0xff]
    %v104 = vld [vmem:[#allocation8 + $0x18] sm:$0xff]
    %s105 = sld [smem:[#allocation2]]
    %v106 = vld [vmem:[#allocation3] sm:$0xff]
    %v107 = vld [vmem:[#allocation3 + $0x8] sm:$0xff]
    %v108 = vld [vmem:[#allocation3 + $0x10] sm:$0xf]
    %v109 = vand.u32 2147450879, %v106
    %v110 = vand.u32 2147450879, %v107
    %v111 = vand.u32 2147450879, %v108
    %v115 = vunpack.c.l.b16 %v109
    %v116 = vunpack.c.h.b16 %v109
    %v117 = vunpack.c.l.b16 %v110
    %v118 = vunpack.c.h.b16 %v110
    %v119 = vunpack.c.l.b16 %v111
    %v120 = vpack.c.b16 %v115, %v115
    %v121 = vpack.c.b16 %v116, %v116
    %v122 = vpack.c.b16 %v117, %v117
    %v123 = vpack.c.b16 %v118, %v118
    %v124 = vpack.c.b16 %v119, %v119
    %vm125 = vcmask 1043456
    %v128 = vsel %vm125, %v120, 4286644096
    %v131 = vsel %vm125, %v121, 4286644096
    %v134 = vsel %vm125, %v122, 4286644096
    %v137 = vsel %vm125, %v123, 4286644096
    %v140 = vsel %vm125, %v124, 4286644096
    %v142 = vmax.bf16 %v128, %v140
    %v143 = vmax.bf16 %v142, %v131
    %v144 = vmax.bf16 %v134, %v137
    %v145 = vmax.bf16 %v143, %v144
    %146 = vmax.xlane.bf16.xlu0 %v145
    %v147 = vpop.xlane.xlu0 %146
    %v148 = vunpack.c.l.bf16 %v147
    %v149 = vld [vmem:[#allocation3] sm:$0xf]
    %v154 = vunpack.c.l.b16 %v101
    %v155 = vunpack.c.h.b16 %v101
    %v156 = vunpack.c.l.b16 %v102
    %v157 = vunpack.c.h.b16 %v102
    %v158 = vunpack.c.l.b16 %v103
    %v159 = vunpack.c.h.b16 %v103
    %v160 = vunpack.c.l.b16 %v104
    %v161 = vunpack.c.h.b16 %v104
    %v162 = vpack.c.b16 %v156, %v154
    %v163 = vpack.c.b16 %v157, %v155
    %v164 = vpack.c.b16 %v160, %v158
    %v165 = vpack.c.b16 %v161, %v159
    %vm170 = vcmask 261120
    %v172 = vsel %vm170, %v149, 0
    %174 = vmatprep.subr.bf16.mxu0 0
    %175 = vmatpush1.bf16.msra.mxu0 0
    %176 = vmatprep.subr.bf16.mxu0 0
    %177 = vmatpush1.bf16.msra.mxu0 0
    %178 = vmatprep.subr.bf16.mxu0 0
    %179 = vmatpush1.bf16.msra.mxu0 0
    %180 = vmatprep.subr.bf16.mxu0 0
    %181 = vmatpush1.bf16.msra.mxu0 0
    %182 = vmatprep.subr.bf16.mxu0 0
    %183 = vmatpush1.bf16.msra.mxu0 0
    %184 = vmatprep.subr.bf16.mxu0 0
    %185 = vmatpush1.bf16.msra.mxu0 0
    %186 = vmatprep.subr.bf16.mxu0 %v165
    %187 = vmatpush1.bf16.msra.mxu0 %v164
    %188 = vmatprep.subr.bf16.mxu0 %v163
    %189 = vmatpush1.bf16.msra.mxu0 %v162
    %190 = vmatprep.subr.bf16.mxu0 0
    %191 = vmatpush2.bf16.msra.mxu0 0
    %192 = vmatprep.subr.bf16.mxu0 0
    %193 = vmatpush2.bf16.msra.mxu0 0
    %194 = vmatprep.subr.bf16.mxu0 0
    %195 = vmatpush2.bf16.msra.mxu0 0
    %196 = vmatprep.subr.bf16.mxu0 0
    %197 = vmatpush2.bf16.msra.mxu0 0
    %198 = vmatprep.subr.bf16.mxu0 0
    %199 = vmatpush2.bf16.msra.mxu0 0
    %200 = vmatprep.subr.bf16.mxu0 0
    %201 = vmatpush2.bf16.msra.mxu0 0
    %202 = vmatprep.subr.bf16.mxu0 0
    %203 = vmatpush2.bf16.msra.mxu0 0
    %204 = vmatprep.subr.bf16.mxu0 0
    %205 = vmatpush2.bf16.msra.mxu0 0
    %206 = vmatprep.mubr.bf16.mxu0 0
    %207 = vmatmul.mubr.bf16.gmra.mxu0 %v172
    %v208 = vpop.f32.mrf.mxu0
    %v209 = vadd.f32 0.0, %v208
    %v210 = vpop.f32.mrf.mxu0
    %v211 = vadd.f32 0.0, %v210
    %v212 = vpop.f32.mrf.mxu0
    %v213 = vpop.f32.mrf.mxu0
    %214 = vdwg.mxu0
    %v215 = vand.u32 2147483647, %v209
    %v216 = vand.u32 2147483647, %v211
    %v217 = vmax.f32 %v215, %v216
    %218 = vmax.xlane.f32.xlu0 %v217
    %v219 = vpop.xlane.xlu0 %218
    %v220 = vstv %s105
    %v221 = vmul.f32 %v148, %v220
    %v222 = vmul.f32 %v219, %v221
    %v223 = vmin.f32 %v222, 80.0
    %v224 = vld [vmem:[#allocation9] sm:$0xf]
    %v225 = vld [vmem:[#allocation9 + $0x4] sm:$0xf]
    %v226 = vld [vmem:[#allocation9 + $0x8] sm:$0xf]
    %v227 = vld [vmem:[#allocation9 + $0xc] sm:$0xf]
    %v228 = vld [vmem:[#allocation9 + $0x10] sm:$0xf]
    %v229 = vld [vmem:[#allocation9 + $0x14] sm:$0xf]
    %v230 = vld [vmem:[#allocation9 + $0x18] sm:$0xf]
    %v231 = vld [vmem:[#allocation9 + $0x1c] sm:$0xf]
    %v232 = vld [vmem:[#allocation9 + $0x20] sm:$0xf]
    %v233 = vld [vmem:[#allocation9 + $0x24] sm:$0xf]
    %v234 = vld [vmem:[#allocation9 + $0x28] sm:$0xf]
    %v235 = vld [vmem:[#allocation9 + $0x2c] sm:$0xf]
    %v236 = vld [vmem:[#allocation9 + $0x30] sm:$0xf]
    %v237 = vld [vmem:[#allocation9 + $0x34] sm:$0xf]
    %v238 = vld [vmem:[#allocation9 + $0x38] sm:$0xf]
    %v239 = vld [vmem:[#allocation9 + $0x3c] sm:$0xf]
    %v240 = vld [vmem:[#allocation9 + $0x40] sm:$0xf]
    %v241 = vld [vmem:[#allocation9 + $0x44] sm:$0xf]
    %v242 = vld [vmem:[#allocation9 + $0x48] sm:$0xf]
    %v243 = vld [vmem:[#allocation9 + $0x4c] sm:$0xf]
    %v244 = vld [vmem:[#allocation9 + $0x50] sm:$0xf]
    %v245 = vld [vmem:[#allocation9 + $0x54] sm:$0xf]
    %v246 = vld [vmem:[#allocation9 + $0x58] sm:$0xf]
    %v247 = vld [vmem:[#allocation9 + $0x5c] sm:$0xf]
    %v248 = vld [vmem:[#allocation9 + $0x60] sm:$0xf]
    %v249 = vld [vmem:[#allocation9 + $0x64] sm:$0xf]
    %v250 = vld [vmem:[#allocation9 + $0x68] sm:$0xf]
    %v251 = vld [vmem:[#allocation9 + $0x6c] sm:$0xf]
    %v252 = vld [vmem:[#allocation9 + $0x70] sm:$0xf]
    %v253 = vld [vmem:[#allocation9 + $0x74] sm:$0xf]
    %v254 = vld [vmem:[#allocation9 + $0x78] sm:$0xf]
    %v255 = vld [vmem:[#allocation9 + $0x7c] sm:$0xf]
    %v264 = vunpack.c.l.b16 %v93
    %v265 = vunpack.c.h.b16 %v93
    %v266 = vunpack.c.l.b16 %v94
    %v267 = vunpack.c.h.b16 %v94
    %v268 = vunpack.c.l.b16 %v95
    %v269 = vunpack.c.h.b16 %v95
    %v270 = vunpack.c.l.b16 %v96
    %v271 = vunpack.c.h.b16 %v96
    %v272 = vunpack.c.l.b16 %v97
    %v273 = vunpack.c.h.b16 %v97
    %v274 = vunpack.c.l.b16 %v98
    %v275 = vunpack.c.h.b16 %v98
    %v276 = vunpack.c.l.b16 %v99
    %v277 = vunpack.c.h.b16 %v99
    %v278 = vunpack.c.l.b16 %v100
    %v279 = vunpack.c.h.b16 %v100
    %v280 = vpack.c.b16 %v268, %v264
    %v281 = vpack.c.b16 %v269, %v265
    %v282 = vpack.c.b16 %v270, %v266
    %v283 = vpack.c.b16 %v271, %v267
    %v284 = vpack.c.b16 %v276, %v272
    %v285 = vpack.c.b16 %v277, %v273
    %v286 = vpack.c.b16 %v278, %v274
    %v287 = vpack.c.b16 %v279, %v275
    %296 = vmatprep.subr.bf16.mxu0 0
    %297 = vmatpush1.bf16.msra.mxu0 0
    %298 = vmatprep.subr.bf16.mxu0 0
    %299 = vmatpush1.bf16.msra.mxu0 0
    %300 = vmatprep.subr.bf16.mxu0 0
    %301 = vmatpush1.bf16.msra.mxu0 0
    %302 = vmatprep.subr.bf16.mxu0 0
    %303 = vmatpush1.bf16.msra.mxu0 0
    %304 = vmatprep.subr.bf16.mxu0 0
    %305 = vmatpush1.bf16.msra.mxu0 0
    %306 = vmatprep.subr.bf16.mxu0 0
    %307 = vmatpush1.bf16.msra.mxu0 0
    %308 = vmatprep.subr.bf16.mxu0 %v285
    %309 = vmatpush1.bf16.msra.mxu0 %v284
    %310 = vmatprep.subr.bf16.mxu0 %v281
    %311 = vmatpush1.bf16.msra.mxu0 %v280
    %312 = vmatprep.subr.bf16.mxu0 0
    %313 = vmatpush2.bf16.msra.mxu0 0
    %314 = vmatprep.subr.bf16.mxu0 0
    %315 = vmatpush2.bf16.msra.mxu0 0
    %316 = vmatprep.subr.bf16.mxu0 0
    %317 = vmatpush2.bf16.msra.mxu0 0
    %318 = vmatprep.subr.bf16.mxu0 0
    %319 = vmatpush2.bf16.msra.mxu0 0
    %320 = vmatprep.subr.bf16.mxu0 0
    %321 = vmatpush2.bf16.msra.mxu0 0
    %322 = vmatprep.subr.bf16.mxu0 0
    %323 = vmatpush2.bf16.msra.mxu0 0
    %324 = vmatprep.subr.bf16.mxu0 0
    %325 = vmatpush2.bf16.msra.mxu0 0
    %326 = vmatprep.subr.bf16.mxu0 0
    %327 = vmatpush2.bf16.msra.mxu0 0
    %328 = vmatprep.mubr.bf16.mxu0 0
    %329 = vmatmul.mubr.bf16.gmra.mxu0 %v172
    %v330 = vpop.f32.mrf.mxu0
    %v331 = vadd.f32 0.0, %v330
    %v332 = vpop.f32.mrf.mxu0
    %v333 = vadd.f32 0.0, %v332
    %v334 = vpop.f32.mrf.mxu0
    %v335 = vpop.f32.mrf.mxu0
    %336 = vdwg.mxu0
    %337 = vmatprep.subr.bf16.mxu0 0
    %338 = vmatpush1.bf16.msra.mxu0 0
    %339 = vmatprep.subr.bf16.mxu0 0
    %340 = vmatpush1.bf16.msra.mxu0 0
    %341 = vmatprep.subr.bf16.mxu0 0
    %342 = vmatpush1.bf16.msra.mxu0 0
    %343 = vmatprep.subr.bf16.mxu0 0
    %344 = vmatpush1.bf16.msra.mxu0 0
    %345 = vmatprep.subr.bf16.mxu0 0
    %346 = vmatpush1.bf16.msra.mxu0 0
    %347 = vmatprep.subr.bf16.mxu0 0
    %348 = vmatpush1.bf16.msra.mxu0 0
    %349 = vmatprep.subr.bf16.mxu0 %v287
    %350 = vmatpush1.bf16.msra.mxu0 %v286
    %351 = vmatprep.subr.bf16.mxu0 %v283
    %352 = vmatpush1.bf16.msra.mxu0 %v282
    %353 = vmatprep.subr.bf16.mxu0 0
    %354 = vmatpush2.bf16.msra.mxu0 0
    %355 = vmatprep.subr.bf16.mxu0 0
    %356 = vmatpush2.bf16.msra.mxu0 0
    %357 = vmatprep.subr.bf16.mxu0 0
    %358 = vmatpush2.bf16.msra.mxu0 0
    %359 = vmatprep.subr.bf16.mxu0 0
    %360 = vmatpush2.bf16.msra.mxu0 0
    %361 = vmatprep.subr.bf16.mxu0 0
    %362 = vmatpush2.bf16.msra.mxu0 0
    %363 = vmatprep.subr.bf16.mxu0 0
    %364 = vmatpush2.bf16.msra.mxu0 0
    %365 = vmatprep.subr.bf16.mxu0 0
    %366 = vmatpush2.bf16.msra.mxu0 0
    %367 = vmatprep.subr.bf16.mxu0 0
    %368 = vmatpush2.bf16.msra.mxu0 0
    %369 = vmatprep.mubr.bf16.mxu0 0
    %370 = vmatmul.mubr.bf16.gmra.mxu0 %v172
    %v371 = vpop.f32.mrf.mxu0
    %v372 = vadd.f32 0.0, %v371
    %v373 = vpop.f32.mrf.mxu0
    %v374 = vadd.f32 0.0, %v373
    %v375 = vpop.f32.mrf.mxu0
    %v376 = vpop.f32.mrf.mxu0
    %377 = vdwg.mxu0
    %v378 = vmul.f32 %v209, %v331
    %v379 = vmul.f32 %v211, %v333
    %v380 = vsub.f32 %v378, %v223
    %v381 = vsub.f32 %v379, %v223
    %v382 = vmul.f32 %v380, 1.442695
    %v383 = vpow.pop %v382
    %v384 = vmul.f32 %v381, 1.442695
    %v385 = vpow.pop %v384
    %v386 = vmul.f32 %v383, %v372
    %v387 = vmul.f32 %v385, %v374
    %v388 = vpack.c.bf16 %v383, %v383
    %v389 = vpack.c.bf16 %v385, %v385
    %v422 = vunpack.c.l.b16 %v224
    %v423 = vunpack.c.l.b16 %v225
    %v424 = vunpack.c.l.b16 %v226
    %v425 = vunpack.c.l.b16 %v227
    %v426 = vunpack.c.l.b16 %v228
    %v427 = vunpack.c.l.b16 %v229
    %v428 = vunpack.c.l.b16 %v230
    %v429 = vunpack.c.l.b16 %v231
    %v430 = vunpack.c.l.b16 %v232
    %v431 = vunpack.c.l.b16 %v233
    %v432 = vunpack.c.l.b16 %v234
    %v433 = vunpack.c.l.b16 %v235
    %v434 = vunpack.c.l.b16 %v236
    %v435 = vunpack.c.l.b16 %v237
    %v436 = vunpack.c.l.b16 %v238
    %v437 = vunpack.c.l.b16 %v239
    %v438 = vunpack.c.l.b16 %v240
    %v439 = vunpack.c.l.b16 %v241
    %v440 = vunpack.c.l.b16 %v242
    %v441 = vunpack.c.l.b16 %v243
    %v442 = vunpack.c.l.b16 %v244
    %v443 = vunpack.c.l.b16 %v245
    %v444 = vunpack.c.l.b16 %v246
    %v445 = vunpack.c.l.b16 %v247
    %v446 = vunpack.c.l.b16 %v248
    %v447 = vunpack.c.l.b16 %v249
    %v448 = vunpack.c.l.b16 %v250
    %v449 = vunpack.c.l.b16 %v251
    %v450 = vunpack.c.l.b16 %v252
    %v451 = vunpack.c.l.b16 %v253
    %v452 = vunpack.c.l.b16 %v254
    %v453 = vunpack.c.l.b16 %v255
    %v454 = vpack.c.b16 %v423, %v422
    %v455 = vpack.c.b16 %v425, %v424
    %v456 = vpack.c.b16 %v427, %v426
    %v457 = vpack.c.b16 %v429, %v428
    %v458 = vpack.c.b16 %v431, %v430
    %v459 = vpack.c.b16 %v433, %v432
    %v460 = vpack.c.b16 %v435, %v434
    %v461 = vpack.c.b16 %v437, %v436
    %v462 = vpack.c.b16 %v439, %v438
    %v463 = vpack.c.b16 %v441, %v440
    %v464 = vpack.c.b16 %v443, %v442
    %v465 = vpack.c.b16 %v445, %v444
    %v466 = vpack.c.b16 %v447, %v446
    %v467 = vpack.c.b16 %v449, %v448
    %v468 = vpack.c.b16 %v451, %v450
    %v469 = vpack.c.b16 %v453, %v452
    %486 = vmatprep.subr.bf16.mxu0 0
    %487 = vmatpush1.bf16.msra.mxu0 %v461
    %488 = vmatprep.subr.bf16.mxu0 0
    %489 = vmatpush1.bf16.msra.mxu0 %v460
    %490 = vmatprep.subr.bf16.mxu0 0
    %491 = vmatpush1.bf16.msra.mxu0 %v459
    %492 = vmatprep.subr.bf16.mxu0 0
    %493 = vmatpush1.bf16.msra.mxu0 %v458
    %494 = vmatprep.subr.bf16.mxu0 0
    %495 = vmatpush1.bf16.msra.mxu0 %v457
    %496 = vmatprep.subr.bf16.mxu0 0
    %497 = vmatpush1.bf16.msra.mxu0 %v456
    %498 = vmatprep.subr.bf16.mxu0 0
    %499 = vmatpush1.bf16.msra.mxu0 %v455
    %500 = vmatprep.subr.bf16.mxu0 0
    %501 = vmatpush1.bf16.msra.mxu0 %v454
    %502 = vmatprep.subr.bf16.mxu0 0
    %503 = vmatpush2.bf16.msra.mxu0 %v469
    %504 = vmatprep.subr.bf16.mxu0 0
    %505 = vmatpush2.bf16.msra.mxu0 %v468
    %506 = vmatprep.subr.bf16.mxu0 0
    %507 = vmatpush2.bf16.msra.mxu0 %v467
    %508 = vmatprep.subr.bf16.mxu0 0
    %509 = vmatpush2.bf16.msra.mxu0 %v466
    %510 = vmatprep.subr.bf16.mxu0 0
    %511 = vmatpush2.bf16.msra.mxu0 %v465
    %512 = vmatprep.subr.bf16.mxu0 0
    %513 = vmatpush2.bf16.msra.mxu0 %v464
    %514 = vmatprep.subr.bf16.mxu0 0
    %515 = vmatpush2.bf16.msra.mxu0 %v463
    %516 = vmatprep.subr.bf16.mxu0 0
    %517 = vmatpush2.bf16.msra.mxu0 %v462
    %518 = vmatprep.mubr.bf16.mxu0 %v389
    %519 = vmatmul.mubr.bf16.gmra.mxu0 %v388
    %v520 = vpop.f32.mrf.mxu0
    %v521 = vadd.f32 0.0, %v520
    %v522 = vpop.f32.mrf.mxu0
    %v523 = vpop.f32.mrf.mxu0
    %v524 = vpop.f32.mrf.mxu0
    %525 = vdwg.mxu0
    %v526 = vpack.c.bf16 %v386, %v386
    %v527 = vpack.c.bf16 %v387, %v387
    %528 = vmatprep.subr.bf16.mxu0 0
    %529 = vmatpush1.bf16.msra.mxu0 %v461
    %530 = vmatprep.subr.bf16.mxu0 0
    %531 = vmatpush1.bf16.msra.mxu0 %v460
    %532 = vmatprep.subr.bf16.mxu0 0
    %533 = vmatpush1.bf16.msra.mxu0 %v459
    %534 = vmatprep.subr.bf16.mxu0 0
    %535 = vmatpush1.bf16.msra.mxu0 %v458
    %536 = vmatprep.subr.bf16.mxu0 0
    %537 = vmatpush1.bf16.msra.mxu0 %v457
    %538 = vmatprep.subr.bf16.mxu0 0
    %539 = vmatpush1.bf16.msra.mxu0 %v456
    %540 = vmatprep.subr.bf16.mxu0 0
    %541 = vmatpush1.bf16.msra.mxu0 %v455
    %542 = vmatprep.subr.bf16.mxu0 0
    %543 = vmatpush1.bf16.msra.mxu0 %v454
    %544 = vmatprep.subr.bf16.mxu0 0
    %545 = vmatpush2.bf16.msra.mxu0 %v469
    %546 = vmatprep.subr.bf16.mxu0 0
    %547 = vmatpush2.bf16.msra.mxu0 %v468
    %548 = vmatprep.subr.bf16.mxu0 0
    %549 = vmatpush2.bf16.msra.mxu0 %v467
    %550 = vmatprep.subr.bf16.mxu0 0
    %551 = vmatpush2.bf16.msra.mxu0 %v466
    %552 = vmatprep.subr.bf16.mxu0 0
    %553 = vmatpush2.bf16.msra.mxu0 %v465
    %554 = vmatprep.subr.bf16.mxu0 0
    %555 = vmatpush2.bf16.msra.mxu0 %v464
    %556 = vmatprep.subr.bf16.mxu0 0
    %557 = vmatpush2.bf16.msra.mxu0 %v463
    %558 = vmatprep.subr.bf16.mxu0 0
    %559 = vmatpush2.bf16.msra.mxu0 %v462
    %560 = vmatprep.mubr.bf16.mxu0 %v527
    %561 = vmatmul.mubr.bf16.gmra.mxu0 %v526
    %v562 = vpop.f32.mrf.mxu0
    %v563 = vadd.f32 0.0, %v562
    %v564 = vpop.f32.mrf.mxu0
    %v565 = vpop.f32.mrf.mxu0
    %v566 = vpop.f32.mrf.mxu0
    %567 = vdwg.mxu0
    %vm568 = vcmp.gt.f32.partialorder %v521, 0.0
    %v569 = vsel %vm568, %v521, 1.0
    %v570 = vrcp.pop %v569
    %v571 = vmul.f32 %v569, %v570
    %v572 = vsub.f32 2.0, %v571
    %v573 = vmul.f32 %v570, %v572
    %v574 = vmul.f32 %v563, %v573
    %v575 = vadd.f32 %v574, 0.0
    %v577 = vunpack.c.l.b16 %v149
    %v578 = vpack.c.b16 %v577, %v577
    %579 = vrot.lane.b32.xlu0 %v578, 96
    %v580 = vpop.permute.xlu0 %579
    %v582 = vsel %vm170, %v580, 0
    %584 = vmatprep.subr.bf16.mxu0 0
    %585 = vmatpush1.bf16.msra.mxu0 0
    %586 = vmatprep.subr.bf16.mxu0 0
    %587 = vmatpush1.bf16.msra.mxu0 0
    %588 = vmatprep.subr.bf16.mxu0 0
    %589 = vmatpush1.bf16.msra.mxu0 0
    %590 = vmatprep.subr.bf16.mxu0 0
    %591 = vmatpush1.bf16.msra.mxu0 0
    %592 = vmatprep.subr.bf16.mxu0 0
    %593 = vmatpush1.bf16.msra.mxu0 0
    %594 = vmatprep.subr.bf16.mxu0 0
    %595 = vmatpush1.bf16.msra.mxu0 0
    %596 = vmatprep.subr.bf16.mxu0 %v285
    %597 = vmatpush1.bf16.msra.mxu0 %v284
    %598 = vmatprep.subr.bf16.mxu0 %v281
    %599 = vmatpush1.bf16.msra.mxu0 %v280
    %600 = vmatprep.subr.bf16.mxu0 0
    %601 = vmatpush2.bf16.msra.mxu0 0
    %602 = vmatprep.subr.bf16.mxu0 0
    %603 = vmatpush2.bf16.msra.mxu0 0
    %604 = vmatprep.subr.bf16.mxu0 0
    %605 = vmatpush2.bf16.msra.mxu0 0
    %606 = vmatprep.subr.bf16.mxu0 0
    %607 = vmatpush2.bf16.msra.mxu0 0
    %608 = vmatprep.subr.bf16.mxu0 0
    %609 = vmatpush2.bf16.msra.mxu0 0
    %610 = vmatprep.subr.bf16.mxu0 0
    %611 = vmatpush2.bf16.msra.mxu0 0
    %612 = vmatprep.subr.bf16.mxu0 0
    %613 = vmatpush2.bf16.msra.mxu0 0
    %614 = vmatprep.subr.bf16.mxu0 0
    %615 = vmatpush2.bf16.msra.mxu0 0
    %616 = vmatprep.mubr.bf16.mxu0 0
    %617 = vmatmul.mubr.bf16.gmra.mxu0 %v582
    %v618 = vpop.f32.mrf.mxu0
    %v619 = vadd.f32 0.0, %v618
    %v620 = vpop.f32.mrf.mxu0
    %v621 = vadd.f32 0.0, %v620
    %v622 = vpop.f32.mrf.mxu0
    %v623 = vpop.f32.mrf.mxu0
    %624 = vdwg.mxu0
    %625 = vmatprep.subr.bf16.mxu0 0
    %626 = vmatpush1.bf16.msra.mxu0 0
    %627 = vmatprep.subr.bf16.mxu0 0
    %628 = vmatpush1.bf16.msra.mxu0 0
    %629 = vmatprep.subr.bf16.mxu0 0
    %630 = vmatpush1.bf16.msra.mxu0 0
    %631 = vmatprep.subr.bf16.mxu0 0
    %632 = vmatpush1.bf16.msra.mxu0 0
    %633 = vmatprep.subr.bf16.mxu0 0
    %634 = vmatpush1.bf16.msra.mxu0 0
    %635 = vmatprep.subr.bf16.mxu0 0
    %636 = vmatpush1.bf16.msra.mxu0 0
    %637 = vmatprep.subr.bf16.mxu0 %v287
    %638 = vmatpush1.bf16.msra.mxu0 %v286
    %639 = vmatprep.subr.bf16.mxu0 %v283
    %640 = vmatpush1.bf16.msra.mxu0 %v282
    %641 = vmatprep.subr.bf16.mxu0 0
    %642 = vmatpush2.bf16.msra.mxu0 0
    %643 = vmatprep.subr.bf16.mxu0 0
    %644 = vmatpush2.bf16.msra.mxu0 0
    %645 = vmatprep.subr.bf16.mxu0 0
    %646 = vmatpush2.bf16.msra.mxu0 0
    %647 = vmatprep.subr.bf16.mxu0 0
    %648 = vmatpush2.bf16.msra.mxu0 0
    %649 = vmatprep.subr.bf16.mxu0 0
    %650 = vmatpush2.bf16.msra.mxu0 0
    %651 = vmatprep.subr.bf16.mxu0 0
    %652 = vmatpush2.bf16.msra.mxu0 0
    %653 = vmatprep.subr.bf16.mxu0 0
    %654 = vmatpush2.bf16.msra.mxu0 0
    %655 = vmatprep.subr.bf16.mxu0 0
    %656 = vmatpush2.bf16.msra.mxu0 0
    %657 = vmatprep.mubr.bf16.mxu0 0
    %658 = vmatmul.mubr.bf16.gmra.mxu0 %v582
    %v659 = vpop.f32.mrf.mxu0
    %v660 = vadd.f32 0.0, %v659
    %v661 = vpop.f32.mrf.mxu0
    %v662 = vadd.f32 0.0, %v661
    %v663 = vpop.f32.mrf.mxu0
    %v664 = vpop.f32.mrf.mxu0
    %665 = vdwg.mxu0
    %v666 = vmul.f32 %v209, %v619
    %v667 = vmul.f32 %v211, %v621
    %v668 = vsub.f32 %v666, %v223
    %v669 = vsub.f32 %v667, %v223
    %v670 = vmul.f32 %v668, 1.442695
    %v671 = vpow.pop %v670
    %v672 = vmul.f32 %v669, 1.442695
    %v673 = vpow.pop %v672
    %v674 = vmul.f32 %v671, %v660
    %v675 = vmul.f32 %v673, %v662
    %v676 = vpack.c.bf16 %v671, %v671
    %v677 = vpack.c.bf16 %v673, %v673
    %678 = vmatprep.subr.bf16.mxu0 0
    %679 = vmatpush1.bf16.msra.mxu0 %v461
    %680 = vmatprep.subr.bf16.mxu0 0
    %681 = vmatpush1.bf16.msra.mxu0 %v460
    %682 = vmatprep.subr.bf16.mxu0 0
    %683 = vmatpush1.bf16.msra.mxu0 %v459
    %684 = vmatprep.subr.bf16.mxu0 0
    %685 = vmatpush1.bf16.msra.mxu0 %v458
    %686 = vmatprep.subr.bf16.mxu0 0
    %687 = vmatpush1.bf16.msra.mxu0 %v457
    %688 = vmatprep.subr.bf16.mxu0 0
    %689 = vmatpush1.bf16.msra.mxu0 %v456
    %690 = vmatprep.subr.bf16.mxu0 0
    %691 = vmatpush1.bf16.msra.mxu0 %v455
    %692 = vmatprep.subr.bf16.mxu0 0
    %693 = vmatpush1.bf16.msra.mxu0 %v454
    %694 = vmatprep.subr.bf16.mxu0 0
    %695 = vmatpush2.bf16.msra.mxu0 %v469
    %696 = vmatprep.subr.bf16.mxu0 0
    %697 = vmatpush2.bf16.msra.mxu0 %v468
    %698 = vmatprep.subr.bf16.mxu0 0
    %699 = vmatpush2.bf16.msra.mxu0 %v467
    %700 = vmatprep.subr.bf16.mxu0 0
    %701 = vmatpush2.bf16.msra.mxu0 %v466
    %702 = vmatprep.subr.bf16.mxu0 0
    %703 = vmatpush2.bf16.msra.mxu0 %v465
    %704 = vmatprep.subr.bf16.mxu0 0
    %705 = vmatpush2.bf16.msra.mxu0 %v464
    %706 = vmatprep.subr.bf16.mxu0 0
    %707 = vmatpush2.bf16.msra.mxu0 %v463
    %708 = vmatprep.subr.bf16.mxu0 0
    %709 = vmatpush2.bf16.msra.mxu0 %v462
    %710 = vmatprep.mubr.bf16.mxu0 %v677
    %711 = vmatmul.mubr.bf16.gmra.mxu0 %v676
    %v712 = vpop.f32.mrf.mxu0
    %v713 = vadd.f32 0.0, %v712
    %v714 = vpop.f32.mrf.mxu0
    %v715 = vpop.f32.mrf.mxu0
    %v716 = vpop.f32.mrf.mxu0
    %717 = vdwg.mxu0
    %v718 = vpack.c.bf16 %v674, %v674
    %v719 = vpack.c.bf16 %v675, %v675
    %720 = vmatprep.subr.bf16.mxu0 0
    %721 = vmatpush1.bf16.msra.mxu0 %v461
    %722 = vmatprep.subr.bf16.mxu0 0
    %723 = vmatpush1.bf16.msra.mxu0 %v460
    %724 = vmatprep.subr.bf16.mxu0 0
    %725 = vmatpush1.bf16.msra.mxu0 %v459
    %726 = vmatprep.subr.bf16.mxu0 0
    %727 = vmatpush1.bf16.msra.mxu0 %v458
    %728 = vmatprep.subr.bf16.mxu0 0
    %729 = vmatpush1.bf16.msra.mxu0 %v457
    %730 = vmatprep.subr.bf16.mxu0 0
    %731 = vmatpush1.bf16.msra.mxu0 %v456
    %732 = vmatprep.subr.bf16.mxu0 0
    %733 = vmatpush1.bf16.msra.mxu0 %v455
    %734 = vmatprep.subr.bf16.mxu0 0
    %735 = vmatpush1.bf16.msra.mxu0 %v454
    %736 = vmatprep.subr.bf16.mxu0 0
    %737 = vmatpush2.bf16.msra.mxu0 %v469
    %738 = vmatprep.subr.bf16.mxu0 0
    %739 = vmatpush2.bf16.msra.mxu0 %v468
    %740 = vmatprep.subr.bf16.mxu0 0
    %741 = vmatpush2.bf16.msra.mxu0 %v467
    %742 = vmatprep.subr.bf16.mxu0 0
    %743 = vmatpush2.bf16.msra.mxu0 %v466
    %744 = vmatprep.subr.bf16.mxu0 0
    %745 = vmatpush2.bf16.msra.mxu0 %v465
    %746 = vmatprep.subr.bf16.mxu0 0
    %747 = vmatpush2.bf16.msra.mxu0 %v464
    %748 = vmatprep.subr.bf16.mxu0 0
    %749 = vmatpush2.bf16.msra.mxu0 %v463
    %750 = vmatprep.subr.bf16.mxu0 0
    %751 = vmatpush2.bf16.msra.mxu0 %v462
    %752 = vmatprep.mubr.bf16.mxu0 %v719
    %753 = vmatmul.mubr.bf16.gmra.mxu0 %v718
    %v754 = vpop.f32.mrf.mxu0
    %v755 = vadd.f32 0.0, %v754
    %v756 = vpop.f32.mrf.mxu0
    %v757 = vpop.f32.mrf.mxu0
    %v758 = vpop.f32.mrf.mxu0
    %759 = vdwg.mxu0
    %vm760 = vcmp.gt.f32.partialorder %v713, 0.0
    %v761 = vsel %vm760, %v713, 1.0
    %v762 = vrcp.pop %v761
    %v763 = vmul.f32 %v761, %v762
    %v764 = vsub.f32 2.0, %v763
    %v765 = vmul.f32 %v762, %v764
    %v766 = vmul.f32 %v755, %v765
    %v767 = vadd.f32 %v575, %v766
    %768 = vrot.lane.b32.xlu0 %v578, 64
    %v769 = vpop.permute.xlu0 %768
    %v771 = vsel %vm170, %v769, 0
    %773 = vmatprep.subr.bf16.mxu0 0
    %774 = vmatpush1.bf16.msra.mxu0 0
    %775 = vmatprep.subr.bf16.mxu0 0
    %776 = vmatpush1.bf16.msra.mxu0 0
    %777 = vmatprep.subr.bf16.mxu0 0
    %778 = vmatpush1.bf16.msra.mxu0 0
    %779 = vmatprep.subr.bf16.mxu0 0
    %780 = vmatpush1.bf16.msra.mxu0 0
    %781 = vmatprep.subr.bf16.mxu0 0
    %782 = vmatpush1.bf16.msra.mxu0 0
    %783 = vmatprep.subr.bf16.mxu0 0
    %784 = vmatpush1.bf16.msra.mxu0 0
    %785 = vmatprep.subr.bf16.mxu0 %v285
    %786 = vmatpush1.bf16.msra.mxu0 %v284
    %787 = vmatprep.subr.bf16.mxu0 %v281
    %788 = vmatpush1.bf16.msra.mxu0 %v280
    %789 = vmatprep.subr.bf16.mxu0 0
    %790 = vmatpush2.bf16.msra.mxu0 0
    %791 = vmatprep.subr.bf16.mxu0 0
    %792 = vmatpush2.bf16.msra.mxu0 0
    %793 = vmatprep.subr.bf16.mxu0 0
    %794 = vmatpush2.bf16.msra.mxu0 0
    %795 = vmatprep.subr.bf16.mxu0 0
    %796 = vmatpush2.bf16.msra.mxu0 0
    %797 = vmatprep.subr.bf16.mxu0 0
    %798 = vmatpush2.bf16.msra.mxu0 0
    %799 = vmatprep.subr.bf16.mxu0 0
    %800 = vmatpush2.bf16.msra.mxu0 0
    %801 = vmatprep.subr.bf16.mxu0 0
    %802 = vmatpush2.bf16.msra.mxu0 0
    %803 = vmatprep.subr.bf16.mxu0 0
    %804 = vmatpush2.bf16.msra.mxu0 0
    %805 = vmatprep.mubr.bf16.mxu0 0
    %806 = vmatmul.mubr.bf16.gmra.mxu0 %v771
    %v807 = vpop.f32.mrf.mxu0
    %v808 = vadd.f32 0.0, %v807
    %v809 = vpop.f32.mrf.mxu0
    %v810 = vadd.f32 0.0, %v809
    %v811 = vpop.f32.mrf.mxu0
    %v812 = vpop.f32.mrf.mxu0
    %813 = vdwg.mxu0
    %814 = vmatprep.subr.bf16.mxu0 0
    %815 = vmatpush1.bf16.msra.mxu0 0
    %816 = vmatprep.subr.bf16.mxu0 0
    %817 = vmatpush1.bf16.msra.mxu0 0
    %818 = vmatprep.subr.bf16.mxu0 0
    %819 = vmatpush1.bf16.msra.mxu0 0
    %820 = vmatprep.subr.bf16.mxu0 0
    %821 = vmatpush1.bf16.msra.mxu0 0
    %822 = vmatprep.subr.bf16.mxu0 0
    %823 = vmatpush1.bf16.msra.mxu0 0
    %824 = vmatprep.subr.bf16.mxu0 0
    %825 = vmatpush1.bf16.msra.mxu0 0
    %826 = vmatprep.subr.bf16.mxu0 %v287
    %827 = vmatpush1.bf16.msra.mxu0 %v286
    %828 = vmatprep.subr.bf16.mxu0 %v283
    %829 = vmatpush1.bf16.msra.mxu0 %v282
    %830 = vmatprep.subr.bf16.mxu0 0
    %831 = vmatpush2.bf16.msra.mxu0 0
    %832 = vmatprep.subr.bf16.mxu0 0
    %833 = vmatpush2.bf16.msra.mxu0 0
    %834 = vmatprep.subr.bf16.mxu0 0
    %835 = vmatpush2.bf16.msra.mxu0 0
    %836 = vmatprep.subr.bf16.mxu0 0
    %837 = vmatpush2.bf16.msra.mxu0 0
    %838 = vmatprep.subr.bf16.mxu0 0
    %839 = vmatpush2.bf16.msra.mxu0 0
    %840 = vmatprep.subr.bf16.mxu0 0
    %841 = vmatpush2.bf16.msra.mxu0 0
    %842 = vmatprep.subr.bf16.mxu0 0
    %843 = vmatpush2.bf16.msra.mxu0 0
    %844 = vmatprep.subr.bf16.mxu0 0
    %845 = vmatpush2.bf16.msra.mxu0 0
    %846 = vmatprep.mubr.bf16.mxu0 0
    %847 = vmatmul.mubr.bf16.gmra.mxu0 %v771
    %v848 = vpop.f32.mrf.mxu0
    %v849 = vadd.f32 0.0, %v848
    %v850 = vpop.f32.mrf.mxu0
    %v851 = vadd.f32 0.0, %v850
    %v852 = vpop.f32.mrf.mxu0
    %v853 = vpop.f32.mrf.mxu0
    %854 = vdwg.mxu0
    %v855 = vmul.f32 %v209, %v808
    %v856 = vmul.f32 %v211, %v810
    %v857 = vsub.f32 %v855, %v223
    %v858 = vsub.f32 %v856, %v223
    %v859 = vmul.f32 %v857, 1.442695
    %v860 = vpow.pop %v859
    %v861 = vmul.f32 %v858, 1.442695
    %v862 = vpow.pop %v861
    %v863 = vmul.f32 %v860, %v849
    %v864 = vmul.f32 %v862, %v851
    %v865 = vpack.c.bf16 %v860, %v860
    %v866 = vpack.c.bf16 %v862, %v862
    %867 = vmatprep.subr.bf16.mxu0 0
    %868 = vmatpush1.bf16.msra.mxu0 %v461
    %869 = vmatprep.subr.bf16.mxu0 0
    %870 = vmatpush1.bf16.msra.mxu0 %v460
    %871 = vmatprep.subr.bf16.mxu0 0
    %872 = vmatpush1.bf16.msra.mxu0 %v459
    %873 = vmatprep.subr.bf16.mxu0 0
    %874 = vmatpush1.bf16.msra.mxu0 %v458
    %875 = vmatprep.subr.bf16.mxu0 0
    %876 = vmatpush1.bf16.msra.mxu0 %v457
    %877 = vmatprep.subr.bf16.mxu0 0
    %878 = vmatpush1.bf16.msra.mxu0 %v456
    %879 = vmatprep.subr.bf16.mxu0 0
    %880 = vmatpush1.bf16.msra.mxu0 %v455
    %881 = vmatprep.subr.bf16.mxu0 0
    %882 = vmatpush1.bf16.msra.mxu0 %v454
    %883 = vmatprep.subr.bf16.mxu0 0
    %884 = vmatpush2.bf16.msra.mxu0 %v469
    %885 = vmatprep.subr.bf16.mxu0 0
    %886 = vmatpush2.bf16.msra.mxu0 %v468
    %887 = vmatprep.subr.bf16.mxu0 0
    %888 = vmatpush2.bf16.msra.mxu0 %v467
    %889 = vmatprep.subr.bf16.mxu0 0
    %890 = vmatpush2.bf16.msra.mxu0 %v466
    %891 = vmatprep.subr.bf16.mxu0 0
    %892 = vmatpush2.bf16.msra.mxu0 %v465
    %893 = vmatprep.subr.bf16.mxu0 0
    %894 = vmatpush2.bf16.msra.mxu0 %v464
    %895 = vmatprep.subr.bf16.mxu0 0
    %896 = vmatpush2.bf16.msra.mxu0 %v463
    %897 = vmatprep.subr.bf16.mxu0 0
    %898 = vmatpush2.bf16.msra.mxu0 %v462
    %899 = vmatprep.mubr.bf16.mxu0 %v866
    %900 = vmatmul.mubr.bf16.gmra.mxu0 %v865
    %v901 = vpop.f32.mrf.mxu0
    %v902 = vadd.f32 0.0, %v901
    %v903 = vpop.f32.mrf.mxu0
    %v904 = vpop.f32.mrf.mxu0
    %v905 = vpop.f32.mrf.mxu0
    %906 = vdwg.mxu0
    %v907 = vpack.c.bf16 %v863, %v863
    %v908 = vpack.c.bf16 %v864, %v864
    %909 = vmatprep.subr.bf16.mxu0 0
    %910 = vmatpush1.bf16.msra.mxu0 %v461
    %911 = vmatprep.subr.bf16.mxu0 0
    %912 = vmatpush1.bf16.msra.mxu0 %v460
    %913 = vmatprep.subr.bf16.mxu0 0
    %914 = vmatpush1.bf16.msra.mxu0 %v459
    %915 = vmatprep.subr.bf16.mxu0 0
    %916 = vmatpush1.bf16.msra.mxu0 %v458
    %917 = vmatprep.subr.bf16.mxu0 0
    %918 = vmatpush1.bf16.msra.mxu0 %v457
    %919 = vmatprep.subr.bf16.mxu0 0
    %920 = vmatpush1.bf16.msra.mxu0 %v456
    %921 = vmatprep.subr.bf16.mxu0 0
    %922 = vmatpush1.bf16.msra.mxu0 %v455
    %923 = vmatprep.subr.bf16.mxu0 0
    %924 = vmatpush1.bf16.msra.mxu0 %v454
    %925 = vmatprep.subr.bf16.mxu0 0
    %926 = vmatpush2.bf16.msra.mxu0 %v469
    %927 = vmatprep.subr.bf16.mxu0 0
    %928 = vmatpush2.bf16.msra.mxu0 %v468
    %929 = vmatprep.subr.bf16.mxu0 0
    %930 = vmatpush2.bf16.msra.mxu0 %v467
    %931 = vmatprep.subr.bf16.mxu0 0
    %932 = vmatpush2.bf16.msra.mxu0 %v466
    %933 = vmatprep.subr.bf16.mxu0 0
    %934 = vmatpush2.bf16.msra.mxu0 %v465
    %935 = vmatprep.subr.bf16.mxu0 0
    %936 = vmatpush2.bf16.msra.mxu0 %v464
    %937 = vmatprep.subr.bf16.mxu0 0
    %938 = vmatpush2.bf16.msra.mxu0 %v463
    %939 = vmatprep.subr.bf16.mxu0 0
    %940 = vmatpush2.bf16.msra.mxu0 %v462
    %941 = vmatprep.mubr.bf16.mxu0 %v908
    %942 = vmatmul.mubr.bf16.gmra.mxu0 %v907
    %v943 = vpop.f32.mrf.mxu0
    %v944 = vadd.f32 0.0, %v943
    %v945 = vpop.f32.mrf.mxu0
    %v946 = vpop.f32.mrf.mxu0
    %v947 = vpop.f32.mrf.mxu0
    %948 = vdwg.mxu0
    %vm949 = vcmp.gt.f32.partialorder %v902, 0.0
    %v950 = vsel %vm949, %v902, 1.0
    %v951 = vrcp.pop %v950
    %v952 = vmul.f32 %v950, %v951
    %v953 = vsub.f32 2.0, %v952
    %v954 = vmul.f32 %v951, %v953
    %v955 = vmul.f32 %v944, %v954
    %v956 = vadd.f32 %v767, %v955
    %957 = vrot.lane.b32.xlu0 %v578, 32
    %v958 = vpop.permute.xlu0 %957
    %v960 = vsel %vm170, %v958, 0
    %962 = vmatprep.subr.bf16.mxu0 0
    %963 = vmatpush1.bf16.msra.mxu0 0
    %964 = vmatprep.subr.bf16.mxu0 0
    %965 = vmatpush1.bf16.msra.mxu0 0
    %966 = vmatprep.subr.bf16.mxu0 0
    %967 = vmatpush1.bf16.msra.mxu0 0
    %968 = vmatprep.subr.bf16.mxu0 0
    %969 = vmatpush1.bf16.msra.mxu0 0
    %970 = vmatprep.subr.bf16.mxu0 0
    %971 = vmatpush1.bf16.msra.mxu0 0
    %972 = vmatprep.subr.bf16.mxu0 0
    %973 = vmatpush1.bf16.msra.mxu0 0
    %974 = vmatprep.subr.bf16.mxu0 %v285
    %975 = vmatpush1.bf16.msra.mxu0 %v284
    %976 = vmatprep.subr.bf16.mxu0 %v281
    %977 = vmatpush1.bf16.msra.mxu0 %v280
    %978 = vmatprep.subr.bf16.mxu0 0
    %979 = vmatpush2.bf16.msra.mxu0 0
    %980 = vmatprep.subr.bf16.mxu0 0
    %981 = vmatpush2.bf16.msra.mxu0 0
    %982 = vmatprep.subr.bf16.mxu0 0
    %983 = vmatpush2.bf16.msra.mxu0 0
    %984 = vmatprep.subr.bf16.mxu0 0
    %985 = vmatpush2.bf16.msra.mxu0 0
    %986 = vmatprep.subr.bf16.mxu0 0
    %987 = vmatpush2.bf16.msra.mxu0 0
    %988 = vmatprep.subr.bf16.mxu0 0
    %989 = vmatpush2.bf16.msra.mxu0 0
    %990 = vmatprep.subr.bf16.mxu0 0
    %991 = vmatpush2.bf16.msra.mxu0 0
    %992 = vmatprep.subr.bf16.mxu0 0
    %993 = vmatpush2.bf16.msra.mxu0 0
    %994 = vmatprep.mubr.bf16.mxu0 0
    %995 = vmatmul.mubr.bf16.gmra.mxu0 %v960
    %v996 = vpop.f32.mrf.mxu0
    %v997 = vadd.f32 0.0, %v996
    %v998 = vpop.f32.mrf.mxu0
    %v999 = vadd.f32 0.0, %v998
    %v1000 = vpop.f32.mrf.mxu0
    %v1001 = vpop.f32.mrf.mxu0
    %1002 = vdwg.mxu0
    %1003 = vmatprep.subr.bf16.mxu0 0
    %1004 = vmatpush1.bf16.msra.mxu0 0
    %1005 = vmatprep.subr.bf16.mxu0 0
    %1006 = vmatpush1.bf16.msra.mxu0 0
    %1007 = vmatprep.subr.bf16.mxu0 0
    %1008 = vmatpush1.bf16.msra.mxu0 0
    %1009 = vmatprep.subr.bf16.mxu0 0
    %1010 = vmatpush1.bf16.msra.mxu0 0
    %1011 = vmatprep.subr.bf16.mxu0 0
    %1012 = vmatpush1.bf16.msra.mxu0 0
    %1013 = vmatprep.subr.bf16.mxu0 0
    %1014 = vmatpush1.bf16.msra.mxu0 0
    %1015 = vmatprep.subr.bf16.mxu0 %v287
    %1016 = vmatpush1.bf16.msra.mxu0 %v286
    %1017 = vmatprep.subr.bf16.mxu0 %v283
    %1018 = vmatpush1.bf16.msra.mxu0 %v282
    %1019 = vmatprep.subr.bf16.mxu0 0
    %1020 = vmatpush2.bf16.msra.mxu0 0
    %1021 = vmatprep.subr.bf16.mxu0 0
    %1022 = vmatpush2.bf16.msra.mxu0 0
    %1023 = vmatprep.subr.bf16.mxu0 0
    %1024 = vmatpush2.bf16.msra.mxu0 0
    %1025 = vmatprep.subr.bf16.mxu0 0
    %1026 = vmatpush2.bf16.msra.mxu0 0
    %1027 = vmatprep.subr.bf16.mxu0 0
    %1028 = vmatpush2.bf16.msra.mxu0 0
    %1029 = vmatprep.subr.bf16.mxu0 0
    %1030 = vmatpush2.bf16.msra.mxu0 0
    %1031 = vmatprep.subr.bf16.mxu0 0
    %1032 = vmatpush2.bf16.msra.mxu0 0
    %1033 = vmatprep.subr.bf16.mxu0 0
    %1034 = vmatpush2.bf16.msra.mxu0 0
    %1035 = vmatprep.mubr.bf16.mxu0 0
    %1036 = vmatmul.mubr.bf16.gmra.mxu0 %v960
    %v1037 = vpop.f32.mrf.mxu0
    %v1038 = vadd.f32 0.0, %v1037
    %v1039 = vpop.f32.mrf.mxu0
    %v1040 = vadd.f32 0.0, %v1039
    %v1041 = vpop.f32.mrf.mxu0
    %v1042 = vpop.f32.mrf.mxu0
    %1043 = vdwg.mxu0
    %v1044 = vmul.f32 %v209, %v997
    %v1045 = vmul.f32 %v211, %v999
    %v1046 = vsub.f32 %v1044, %v223
    %v1047 = vsub.f32 %v1045, %v223
    %v1048 = vmul.f32 %v1046, 1.442695
    %v1049 = vpow.pop %v1048
    %v1050 = vmul.f32 %v1047, 1.442695
    %v1051 = vpow.pop %v1050
    %v1052 = vmul.f32 %v1049, %v1038
    %v1053 = vmul.f32 %v1051, %v1040
    %v1054 = vpack.c.bf16 %v1049, %v1049
    %v1055 = vpack.c.bf16 %v1051, %v1051
    %1056 = vmatprep.subr.bf16.mxu0 0
    %1057 = vmatpush1.bf16.msra.mxu0 %v461
    %1058 = vmatprep.subr.bf16.mxu0 0
    %1059 = vmatpush1.bf16.msra.mxu0 %v460
    %1060 = vmatprep.subr.bf16.mxu0 0
    %1061 = vmatpush1.bf16.msra.mxu0 %v459
    %1062 = vmatprep.subr.bf16.mxu0 0
    %1063 = vmatpush1.bf16.msra.mxu0 %v458
    %1064 = vmatprep.subr.bf16.mxu0 0
    %1065 = vmatpush1.bf16.msra.mxu0 %v457
    %1066 = vmatprep.subr.bf16.mxu0 0
    %1067 = vmatpush1.bf16.msra.mxu0 %v456
    %1068 = vmatprep.subr.bf16.mxu0 0
    %1069 = vmatpush1.bf16.msra.mxu0 %v455
    %1070 = vmatprep.subr.bf16.mxu0 0
    %1071 = vmatpush1.bf16.msra.mxu0 %v454
    %1072 = vmatprep.subr.bf16.mxu0 0
    %1073 = vmatpush2.bf16.msra.mxu0 %v469
    %1074 = vmatprep.subr.bf16.mxu0 0
    %1075 = vmatpush2.bf16.msra.mxu0 %v468
    %1076 = vmatprep.subr.bf16.mxu0 0
    %1077 = vmatpush2.bf16.msra.mxu0 %v467
    %1078 = vmatprep.subr.bf16.mxu0 0
    %1079 = vmatpush2.bf16.msra.mxu0 %v466
    %1080 = vmatprep.subr.bf16.mxu0 0
    %1081 = vmatpush2.bf16.msra.mxu0 %v465
    %1082 = vmatprep.subr.bf16.mxu0 0
    %1083 = vmatpush2.bf16.msra.mxu0 %v464
    %1084 = vmatprep.subr.bf16.mxu0 0
    %1085 = vmatpush2.bf16.msra.mxu0 %v463
    %1086 = vmatprep.subr.bf16.mxu0 0
    %1087 = vmatpush2.bf16.msra.mxu0 %v462
    %1088 = vmatprep.mubr.bf16.mxu0 %v1055
    %1089 = vmatmul.mubr.bf16.gmra.mxu0 %v1054
    %v1090 = vpop.f32.mrf.mxu0
    %v1091 = vadd.f32 0.0, %v1090
    %v1092 = vpop.f32.mrf.mxu0
    %v1093 = vpop.f32.mrf.mxu0
    %v1094 = vpop.f32.mrf.mxu0
    %1095 = vdwg.mxu0
    %v1096 = vpack.c.bf16 %v1052, %v1052
    %v1097 = vpack.c.bf16 %v1053, %v1053
    %1098 = vmatprep.subr.bf16.mxu0 0
    %1099 = vmatpush1.bf16.msra.mxu0 %v461
    %1100 = vmatprep.subr.bf16.mxu0 0
    %1101 = vmatpush1.bf16.msra.mxu0 %v460
    %1102 = vmatprep.subr.bf16.mxu0 0
    %1103 = vmatpush1.bf16.msra.mxu0 %v459
    %1104 = vmatprep.subr.bf16.mxu0 0
    %1105 = vmatpush1.bf16.msra.mxu0 %v458
    %1106 = vmatprep.subr.bf16.mxu0 0
    %1107 = vmatpush1.bf16.msra.mxu0 %v457
    %1108 = vmatprep.subr.bf16.mxu0 0
    %1109 = vmatpush1.bf16.msra.mxu0 %v456
    %1110 = vmatprep.subr.bf16.mxu0 0
    %1111 = vmatpush1.bf16.msra.mxu0 %v455
    %1112 = vmatprep.subr.bf16.mxu0 0
    %1113 = vmatpush1.bf16.msra.mxu0 %v454
    %1114 = vmatprep.subr.bf16.mxu0 0
    %1115 = vmatpush2.bf16.msra.mxu0 %v469
    %1116 = vmatprep.subr.bf16.mxu0 0
    %1117 = vmatpush2.bf16.msra.mxu0 %v468
    %1118 = vmatprep.subr.bf16.mxu0 0
    %1119 = vmatpush2.bf16.msra.mxu0 %v467
    %1120 = vmatprep.subr.bf16.mxu0 0
    %1121 = vmatpush2.bf16.msra.mxu0 %v466
    %1122 = vmatprep.subr.bf16.mxu0 0
    %1123 = vmatpush2.bf16.msra.mxu0 %v465
    %1124 = vmatprep.subr.bf16.mxu0 0
    %1125 = vmatpush2.bf16.msra.mxu0 %v464
    %1126 = vmatprep.subr.bf16.mxu0 0
    %1127 = vmatpush2.bf16.msra.mxu0 %v463
    %1128 = vmatprep.subr.bf16.mxu0 0
    %1129 = vmatpush2.bf16.msra.mxu0 %v462
    %1130 = vmatprep.mubr.bf16.mxu0 %v1097
    %1131 = vmatmul.mubr.bf16.gmra.mxu0 %v1096
    %v1132 = vpop.f32.mrf.mxu0
    %v1133 = vadd.f32 0.0, %v1132
    %v1134 = vpop.f32.mrf.mxu0
    %v1135 = vpop.f32.mrf.mxu0
    %v1136 = vpop.f32.mrf.mxu0
    %1137 = vdwg.mxu0
    %vm1138 = vcmp.gt.f32.partialorder %v1091, 0.0
    %v1139 = vsel %vm1138, %v1091, 1.0
    %v1140 = vrcp.pop %v1139
    %v1141 = vmul.f32 %v1139, %v1140
    %v1142 = vsub.f32 2.0, %v1141
    %v1143 = vmul.f32 %v1140, %v1142
    %v1144 = vmul.f32 %v1133, %v1143
    %v1145 = vadd.f32 %v956, %v1144
    %v1146 = vld [vmem:[#allocation3 + $0x4] sm:$0xf]
    %v1148 = vsel %vm170, %v1146, 0
    %1150 = vmatprep.subr.bf16.mxu0 0
    %1151 = vmatpush1.bf16.msra.mxu0 0
    %1152 = vmatprep.subr.bf16.mxu0 0
    %1153 = vmatpush1.bf16.msra.mxu0 0
    %1154 = vmatprep.subr.bf16.mxu0 0
    %1155 = vmatpush1.bf16.msra.mxu0 0
    %1156 = vmatprep.subr.bf16.mxu0 0
    %1157 = vmatpush1.bf16.msra.mxu0 0
    %1158 = vmatprep.subr.bf16.mxu0 0
    %1159 = vmatpush1.bf16.msra.mxu0 0
    %1160 = vmatprep.subr.bf16.mxu0 0
    %1161 = vmatpush1.bf16.msra.mxu0 0
    %1162 = vmatprep.subr.bf16.mxu0 %v285
    %1163 = vmatpush1.bf16.msra.mxu0 %v284
    %1164 = vmatprep.subr.bf16.mxu0 %v281
    %1165 = vmatpush1.bf16.msra.mxu0 %v280
    %1166 = vmatprep.subr.bf16.mxu0 0
    %1167 = vmatpush2.bf16.msra.mxu0 0
    %1168 = vmatprep.subr.bf16.mxu0 0
    %1169 = vmatpush2.bf16.msra.mxu0 0
    %1170 = vmatprep.subr.bf16.mxu0 0
    %1171 = vmatpush2.bf16.msra.mxu0 0
    %1172 = vmatprep.subr.bf16.mxu0 0
    %1173 = vmatpush2.bf16.msra.mxu0 0
    %1174 = vmatprep.subr.bf16.mxu0 0
    %1175 = vmatpush2.bf16.msra.mxu0 0
    %1176 = vmatprep.subr.bf16.mxu0 0
    %1177 = vmatpush2.bf16.msra.mxu0 0
    %1178 = vmatprep.subr.bf16.mxu0 0
    %1179 = vmatpush2.bf16.msra.mxu0 0
    %1180 = vmatprep.subr.bf16.mxu0 0
    %1181 = vmatpush2.bf16.msra.mxu0 0
    %1182 = vmatprep.mubr.bf16.mxu0 0
    %1183 = vmatmul.mubr.bf16.gmra.mxu0 %v1148
    %v1184 = vpop.f32.mrf.mxu0
    %v1185 = vadd.f32 0.0, %v1184
    %v1186 = vpop.f32.mrf.mxu0
    %v1187 = vadd.f32 0.0, %v1186
    %v1188 = vpop.f32.mrf.mxu0
    %v1189 = vpop.f32.mrf.mxu0
    %1190 = vdwg.mxu0
    %1191 = vmatprep.subr.bf16.mxu0 0
    %1192 = vmatpush1.bf16.msra.mxu0 0
    %1193 = vmatprep.subr.bf16.mxu0 0
    %1194 = vmatpush1.bf16.msra.mxu0 0
    %1195 = vmatprep.subr.bf16.mxu0 0
    %1196 = vmatpush1.bf16.msra.mxu0 0
    %1197 = vmatprep.subr.bf16.mxu0 0
    %1198 = vmatpush1.bf16.msra.mxu0 0
    %1199 = vmatprep.subr.bf16.mxu0 0
    %1200 = vmatpush1.bf16.msra.mxu0 0
    %1201 = vmatprep.subr.bf16.mxu0 0
    %1202 = vmatpush1.bf16.msra.mxu0 0
    %1203 = vmatprep.subr.bf16.mxu0 %v287
    %1204 = vmatpush1.bf16.msra.mxu0 %v286
    %1205 = vmatprep.subr.bf16.mxu0 %v283
    %1206 = vmatpush1.bf16.msra.mxu0 %v282
    %1207 = vmatprep.subr.bf16.mxu0 0
    %1208 = vmatpush2.bf16.msra.mxu0 0
    %1209 = vmatprep.subr.bf16.mxu0 0
    %1210 = vmatpush2.bf16.msra.mxu0 0
    %1211 = vmatprep.subr.bf16.mxu0 0
    %1212 = vmatpush2.bf16.msra.mxu0 0
    %1213 = vmatprep.subr.bf16.mxu0 0
    %1214 = vmatpush2.bf16.msra.mxu0 0
    %1215 = vmatprep.subr.bf16.mxu0 0
    %1216 = vmatpush2.bf16.msra.mxu0 0
    %1217 = vmatprep.subr.bf16.mxu0 0
    %1218 = vmatpush2.bf16.msra.mxu0 0
    %1219 = vmatprep.subr.bf16.mxu0 0
    %1220 = vmatpush2.bf16.msra.mxu0 0
    %1221 = vmatprep.subr.bf16.mxu0 0
    %1222 = vmatpush2.bf16.msra.mxu0 0
    %1223 = vmatprep.mubr.bf16.mxu0 0
    %1224 = vmatmul.mubr.bf16.gmra.mxu0 %v1148
    %v1225 = vpop.f32.mrf.mxu0
    %v1226 = vadd.f32 0.0, %v1225
    %v1227 = vpop.f32.mrf.mxu0
    %v1228 = vadd.f32 0.0, %v1227
    %v1229 = vpop.f32.mrf.mxu0
    %v1230 = vpop.f32.mrf.mxu0
    %1231 = vdwg.mxu0
    %v1232 = vmul.f32 %v209, %v1185
    %v1233 = vmul.f32 %v211, %v1187
    %v1234 = vsub.f32 %v1232, %v223
    %v1235 = vsub.f32 %v1233, %v223
    %v1236 = vmul.f32 %v1234, 1.442695
    %v1237 = vpow.pop %v1236
    %v1238 = vmul.f32 %v1235, 1.442695
    %v1239 = vpow.pop %v1238
    %v1240 = vmul.f32 %v1237, %v1226
    %v1241 = vmul.f32 %v1239, %v1228
    %v1242 = vpack.c.bf16 %v1237, %v1237
    %v1243 = vpack.c.bf16 %v1239, %v1239
    %1244 = vmatprep.subr.bf16.mxu0 0
    %1245 = vmatpush1.bf16.msra.mxu0 %v461
    %1246 = vmatprep.subr.bf16.mxu0 0
    %1247 = vmatpush1.bf16.msra.mxu0 %v460
    %1248 = vmatprep.subr.bf16.mxu0 0
    %1249 = vmatpush1.bf16.msra.mxu0 %v459
    %1250 = vmatprep.subr.bf16.mxu0 0
    %1251 = vmatpush1.bf16.msra.mxu0 %v458
    %1252 = vmatprep.subr.bf16.mxu0 0
    %1253 = vmatpush1.bf16.msra.mxu0 %v457
    %1254 = vmatprep.subr.bf16.mxu0 0
    %1255 = vmatpush1.bf16.msra.mxu0 %v456
    %1256 = vmatprep.subr.bf16.mxu0 0
    %1257 = vmatpush1.bf16.msra.mxu0 %v455
    %1258 = vmatprep.subr.bf16.mxu0 0
    %1259 = vmatpush1.bf16.msra.mxu0 %v454
    %1260 = vmatprep.subr.bf16.mxu0 0
    %1261 = vmatpush2.bf16.msra.mxu0 %v469
    %1262 = vmatprep.subr.bf16.mxu0 0
    %1263 = vmatpush2.bf16.msra.mxu0 %v468
    %1264 = vmatprep.subr.bf16.mxu0 0
    %1265 = vmatpush2.bf16.msra.mxu0 %v467
    %1266 = vmatprep.subr.bf16.mxu0 0
    %1267 = vmatpush2.bf16.msra.mxu0 %v466
    %1268 = vmatprep.subr.bf16.mxu0 0
    %1269 = vmatpush2.bf16.msra.mxu0 %v465
    %1270 = vmatprep.subr.bf16.mxu0 0
    %1271 = vmatpush2.bf16.msra.mxu0 %v464
    %1272 = vmatprep.subr.bf16.mxu0 0
    %1273 = vmatpush2.bf16.msra.mxu0 %v463
    %1274 = vmatprep.subr.bf16.mxu0 0
    %1275 = vmatpush2.bf16.msra.mxu0 %v462
    %1276 = vmatprep.mubr.bf16.mxu0 %v1243
    %1277 = vmatmul.mubr.bf16.gmra.mxu0 %v1242
    %v1278 = vpop.f32.mrf.mxu0
    %v1279 = vadd.f32 0.0, %v1278
    %v1280 = vpop.f32.mrf.mxu0
    %v1281 = vpop.f32.mrf.mxu0
    %v1282 = vpop.f32.mrf.mxu0
    %1283 = vdwg.mxu0
    %v1284 = vpack.c.bf16 %v1240, %v1240
    %v1285 = vpack.c.bf16 %v1241, %v1241
    %1286 = vmatprep.subr.bf16.mxu0 0
    %1287 = vmatpush1.bf16.msra.mxu0 %v461
    %1288 = vmatprep.subr.bf16.mxu0 0
    %1289 = vmatpush1.bf16.msra.mxu0 %v460
    %1290 = vmatprep.subr.bf16.mxu0 0
    %1291 = vmatpush1.bf16.msra.mxu0 %v459
    %1292 = vmatprep.subr.bf16.mxu0 0
    %1293 = vmatpush1.bf16.msra.mxu0 %v458
    %1294 = vmatprep.subr.bf16.mxu0 0
    %1295 = vmatpush1.bf16.msra.mxu0 %v457
    %1296 = vmatprep.subr.bf16.mxu0 0
    %1297 = vmatpush1.bf16.msra.mxu0 %v456
    %1298 = vmatprep.subr.bf16.mxu0 0
    %1299 = vmatpush1.bf16.msra.mxu0 %v455
    %1300 = vmatprep.subr.bf16.mxu0 0
    %1301 = vmatpush1.bf16.msra.mxu0 %v454
    %1302 = vmatprep.subr.bf16.mxu0 0
    %1303 = vmatpush2.bf16.msra.mxu0 %v469
    %1304 = vmatprep.subr.bf16.mxu0 0
    %1305 = vmatpush2.bf16.msra.mxu0 %v468
    %1306 = vmatprep.subr.bf16.mxu0 0
    %1307 = vmatpush2.bf16.msra.mxu0 %v467
    %1308 = vmatprep.subr.bf16.mxu0 0
    %1309 = vmatpush2.bf16.msra.mxu0 %v466
    %1310 = vmatprep.subr.bf16.mxu0 0
    %1311 = vmatpush2.bf16.msra.mxu0 %v465
    %1312 = vmatprep.subr.bf16.mxu0 0
    %1313 = vmatpush2.bf16.msra.mxu0 %v464
    %1314 = vmatprep.subr.bf16.mxu0 0
    %1315 = vmatpush2.bf16.msra.mxu0 %v463
    %1316 = vmatprep.subr.bf16.mxu0 0
    %1317 = vmatpush2.bf16.msra.mxu0 %v462
    %1318 = vmatprep.mubr.bf16.mxu0 %v1285
    %1319 = vmatmul.mubr.bf16.gmra.mxu0 %v1284
    %v1320 = vpop.f32.mrf.mxu0
    %v1321 = vadd.f32 0.0, %v1320
    %v1322 = vpop.f32.mrf.mxu0
    %v1323 = vpop.f32.mrf.mxu0
    %v1324 = vpop.f32.mrf.mxu0
    %1325 = vdwg.mxu0
    %vm1326 = vcmp.gt.f32.partialorder %v1279, 0.0
    %v1327 = vsel %vm1326, %v1279, 1.0
    %v1328 = vrcp.pop %v1327
    %v1329 = vmul.f32 %v1327, %v1328
    %v1330 = vsub.f32 2.0, %v1329
    %v1331 = vmul.f32 %v1328, %v1330
    %v1332 = vmul.f32 %v1321, %v1331
    %v1333 = vadd.f32 %v1145, %v1332
    %v1335 = vunpack.c.l.b16 %v1146
    %v1336 = vpack.c.b16 %v1335, %v1335
    %1337 = vrot.lane.b32.xlu0 %v1336, 96
    %v1338 = vpop.permute.xlu0 %1337
    %v1340 = vsel %vm170, %v1338, 0
    %1342 = vmatprep.subr.bf16.mxu0 0
    %1343 = vmatpush1.bf16.msra.mxu0 0
    %1344 = vmatprep.subr.bf16.mxu0 0
    %1345 = vmatpush1.bf16.msra.mxu0 0
    %1346 = vmatprep.subr.bf16.mxu0 0
    %1347 = vmatpush1.bf16.msra.mxu0 0
    %1348 = vmatprep.subr.bf16.mxu0 0
    %1349 = vmatpush1.bf16.msra.mxu0 0
    %1350 = vmatprep.subr.bf16.mxu0 0
    %1351 = vmatpush1.bf16.msra.mxu0 0
    %1352 = vmatprep.subr.bf16.mxu0 0
    %1353 = vmatpush1.bf16.msra.mxu0 0
    %1354 = vmatprep.subr.bf16.mxu0 %v165
    %1355 = vmatpush1.bf16.msra.mxu0 %v164
    %1356 = vmatprep.subr.bf16.mxu0 %v163
    %1357 = vmatpush1.bf16.msra.mxu0 %v162
    %1358 = vmatprep.subr.bf16.mxu0 0
    %1359 = vmatpush2.bf16.msra.mxu0 0
    %1360 = vmatprep.subr.bf16.mxu0 0
    %1361 = vmatpush2.bf16.msra.mxu0 0
    %1362 = vmatprep.subr.bf16.mxu0 0
    %1363 = vmatpush2.bf16.msra.mxu0 0
    %1364 = vmatprep.subr.bf16.mxu0 0
    %1365 = vmatpush2.bf16.msra.mxu0 0
    %1366 = vmatprep.subr.bf16.mxu0 0
    %1367 = vmatpush2.bf16.msra.mxu0 0
    %1368 = vmatprep.subr.bf16.mxu0 0
    %1369 = vmatpush2.bf16.msra.mxu0 0
    %1370 = vmatprep.subr.bf16.mxu0 0
    %1371 = vmatpush2.bf16.msra.mxu0 0
    %1372 = vmatprep.subr.bf16.mxu0 0
    %1373 = vmatpush2.bf16.msra.mxu0 0
    %1374 = vmatprep.mubr.bf16.mxu0 0
    %1375 = vmatmul.mubr.bf16.gmra.mxu0 %v1340
    %v1376 = vpop.f32.mrf.mxu0
    %v1377 = vadd.f32 0.0, %v1376
    %v1378 = vpop.f32.mrf.mxu0
    %v1379 = vadd.f32 0.0, %v1378
    %v1380 = vpop.f32.mrf.mxu0
    %v1381 = vpop.f32.mrf.mxu0
    %1382 = vdwg.mxu0
    %v1383 = vand.u32 2147483647, %v1377
    %v1384 = vand.u32 2147483647, %v1379
    %v1385 = vmax.f32 %v1383, %v1384
    %1386 = vmax.xlane.f32.xlu0 %v1385
    %v1387 = vpop.xlane.xlu0 %1386
    %v1388 = vmul.f32 %v1387, %v221
    %v1389 = vmin.f32 %v1388, 80.0
    %s1390 = scalar_lea.vmem [#allocation9], 128
    %v1391 = vld [vmem:[%s1390] sm:$0xf]
    %v1392 = vld [vmem:[%s1390 + $0x4] sm:$0xf]
    %v1393 = vld [vmem:[%s1390 + $0x8] sm:$0xf]
    %v1394 = vld [vmem:[%s1390 + $0xc] sm:$0xf]
    %v1395 = vld [vmem:[%s1390 + $0x10] sm:$0xf]
    %v1396 = vld [vmem:[%s1390 + $0x14] sm:$0xf]
    %v1397 = vld [vmem:[%s1390 + $0x18] sm:$0xf]
    %v1398 = vld [vmem:[%s1390 + $0x1c] sm:$0xf]
    %v1399 = vld [vmem:[%s1390 + $0x20] sm:$0xf]
    %v1400 = vld [vmem:[%s1390 + $0x24] sm:$0xf]
    %v1401 = vld [vmem:[%s1390 + $0x28] sm:$0xf]
    %v1402 = vld [vmem:[%s1390 + $0x2c] sm:$0xf]
    %v1403 = vld [vmem:[%s1390 + $0x30] sm:$0xf]
    %v1404 = vld [vmem:[%s1390 + $0x34] sm:$0xf]
    %v1405 = vld [vmem:[%s1390 + $0x38] sm:$0xf]
    %v1406 = vld [vmem:[%s1390 + $0x3c] sm:$0xf]
    %v1407 = vld [vmem:[%s1390 + $0x40] sm:$0xf]
    %v1408 = vld [vmem:[%s1390 + $0x44] sm:$0xf]
    %v1409 = vld [vmem:[%s1390 + $0x48] sm:$0xf]
    %v1410 = vld [vmem:[%s1390 + $0x4c] sm:$0xf]
    %v1411 = vld [vmem:[%s1390 + $0x50] sm:$0xf]
    %v1412 = vld [vmem:[%s1390 + $0x54] sm:$0xf]
    %v1413 = vld [vmem:[%s1390 + $0x58] sm:$0xf]
    %v1414 = vld [vmem:[%s1390 + $0x5c] sm:$0xf]
    %v1415 = vld [vmem:[%s1390 + $0x60] sm:$0xf]
    %v1416 = vld [vmem:[%s1390 + $0x64] sm:$0xf]
    %v1417 = vld [vmem:[%s1390 + $0x68] sm:$0xf]
    %v1418 = vld [vmem:[%s1390 + $0x6c] sm:$0xf]
    %v1419 = vld [vmem:[%s1390 + $0x70] sm:$0xf]
    %v1420 = vld [vmem:[%s1390 + $0x74] sm:$0xf]
    %v1421 = vld [vmem:[%s1390 + $0x78] sm:$0xf]
    %v1422 = vld [vmem:[%s1390 + $0x7c] sm:$0xf]
    %1423 = vmatprep.subr.bf16.mxu0 0
    %1424 = vmatpush1.bf16.msra.mxu0 0
    %1425 = vmatprep.subr.bf16.mxu0 0
    %1426 = vmatpush1.bf16.msra.mxu0 0
    %1427 = vmatprep.subr.bf16.mxu0 0
    %1428 = vmatpush1.bf16.msra.mxu0 0
    %1429 = vmatprep.subr.bf16.mxu0 0
    %1430 = vmatpush1.bf16.msra.mxu0 0
    %1431 = vmatprep.subr.bf16.mxu0 0
    %1432 = vmatpush1.bf16.msra.mxu0 0
    %1433 = vmatprep.subr.bf16.mxu0 0
    %1434 = vmatpush1.bf16.msra.mxu0 0
    %1435 = vmatprep.subr.bf16.mxu0 %v285
    %1436 = vmatpush1.bf16.msra.mxu0 %v284
    %1437 = vmatprep.subr.bf16.mxu0 %v281
    %1438 = vmatpush1.bf16.msra.mxu0 %v280
    %1439 = vmatprep.subr.bf16.mxu0 0
    %1440 = vmatpush2.bf16.msra.mxu0 0
    %1441 = vmatprep.subr.bf16.mxu0 0
    %1442 = vmatpush2.bf16.msra.mxu0 0
    %1443 = vmatprep.subr.bf16.mxu0 0
    %1444 = vmatpush2.bf16.msra.mxu0 0
    %1445 = vmatprep.subr.bf16.mxu0 0
    %1446 = vmatpush2.bf16.msra.mxu0 0
    %1447 = vmatprep.subr.bf16.mxu0 0
    %1448 = vmatpush2.bf16.msra.mxu0 0
    %1449 = vmatprep.subr.bf16.mxu0 0
    %1450 = vmatpush2.bf16.msra.mxu0 0
    %1451 = vmatprep.subr.bf16.mxu0 0
    %1452 = vmatpush2.bf16.msra.mxu0 0
    %1453 = vmatprep.subr.bf16.mxu0 0
    %1454 = vmatpush2.bf16.msra.mxu0 0
    %1455 = vmatprep.mubr.bf16.mxu0 0
    %1456 = vmatmul.mubr.bf16.gmra.mxu0 %v1340
    %v1457 = vpop.f32.mrf.mxu0
    %v1458 = vadd.f32 0.0, %v1457
    %v1459 = vpop.f32.mrf.mxu0
    %v1460 = vadd.f32 0.0, %v1459
    %v1461 = vpop.f32.mrf.mxu0
    %v1462 = vpop.f32.mrf.mxu0
    %1463 = vdwg.mxu0
    %1464 = vmatprep.subr.bf16.mxu0 0
    %1465 = vmatpush1.bf16.msra.mxu0 0
    %1466 = vmatprep.subr.bf16.mxu0 0
    %1467 = vmatpush1.bf16.msra.mxu0 0
    %1468 = vmatprep.subr.bf16.mxu0 0
    %1469 = vmatpush1.bf16.msra.mxu0 0
    %1470 = vmatprep.subr.bf16.mxu0 0
    %1471 = vmatpush1.bf16.msra.mxu0 0
    %1472 = vmatprep.subr.bf16.mxu0 0
    %1473 = vmatpush1.bf16.msra.mxu0 0
    %1474 = vmatprep.subr.bf16.mxu0 0
    %1475 = vmatpush1.bf16.msra.mxu0 0
    %1476 = vmatprep.subr.bf16.mxu0 %v287
    %1477 = vmatpush1.bf16.msra.mxu0 %v286
    %1478 = vmatprep.subr.bf16.mxu0 %v283
    %1479 = vmatpush1.bf16.msra.mxu0 %v282
    %1480 = vmatprep.subr.bf16.mxu0 0
    %1481 = vmatpush2.bf16.msra.mxu0 0
    %1482 = vmatprep.subr.bf16.mxu0 0
    %1483 = vmatpush2.bf16.msra.mxu0 0
    %1484 = vmatprep.subr.bf16.mxu0 0
    %1485 = vmatpush2.bf16.msra.mxu0 0
    %1486 = vmatprep.subr.bf16.mxu0 0
    %1487 = vmatpush2.bf16.msra.mxu0 0
    %1488 = vmatprep.subr.bf16.mxu0 0
    %1489 = vmatpush2.bf16.msra.mxu0 0
    %1490 = vmatprep.subr.bf16.mxu0 0
    %1491 = vmatpush2.bf16.msra.mxu0 0
    %1492 = vmatprep.subr.bf16.mxu0 0
    %1493 = vmatpush2.bf16.msra.mxu0 0
    %1494 = vmatprep.subr.bf16.mxu0 0
    %1495 = vmatpush2.bf16.msra.mxu0 0
    %1496 = vmatprep.mubr.bf16.mxu0 0
    %1497 = vmatmul.mubr.bf16.gmra.mxu0 %v1340
    %v1498 = vpop.f32.mrf.mxu0
    %v1499 = vadd.f32 0.0, %v1498
    %v1500 = vpop.f32.mrf.mxu0
    %v1501 = vadd.f32 0.0, %v1500
    %v1502 = vpop.f32.mrf.mxu0
    %v1503 = vpop.f32.mrf.mxu0
    %1504 = vdwg.mxu0
    %v1505 = vmul.f32 %v1377, %v1458
    %v1506 = vmul.f32 %v1379, %v1460
    %v1507 = vsub.f32 %v1505, %v1389
    %v1508 = vsub.f32 %v1506, %v1389
    %v1509 = vmul.f32 %v1507, 1.442695
    %v1510 = vpow.pop %v1509
    %v1511 = vmul.f32 %v1508, 1.442695
    %v1512 = vpow.pop %v1511
    %v1513 = vmul.f32 %v1510, %v1499
    %v1514 = vmul.f32 %v1512, %v1501
    %v1515 = vpack.c.bf16 %v1510, %v1510
    %v1516 = vpack.c.bf16 %v1512, %v1512
    %v1549 = vunpack.c.l.b16 %v1391
    %v1550 = vunpack.c.l.b16 %v1392
    %v1551 = vunpack.c.l.b16 %v1393
    %v1552 = vunpack.c.l.b16 %v1394
    %v1553 = vunpack.c.l.b16 %v1395
    %v1554 = vunpack.c.l.b16 %v1396
    %v1555 = vunpack.c.l.b16 %v1397
    %v1556 = vunpack.c.l.b16 %v1398
    %v1557 = vunpack.c.l.b16 %v1399
    %v1558 = vunpack.c.l.b16 %v1400
    %v1559 = vunpack.c.l.b16 %v1401
    %v1560 = vunpack.c.l.b16 %v1402
    %v1561 = vunpack.c.l.b16 %v1403
    %v1562 = vunpack.c.l.b16 %v1404
    %v1563 = vunpack.c.l.b16 %v1405
    %v1564 = vunpack.c.l.b16 %v1406
    %v1565 = vunpack.c.l.b16 %v1407
    %v1566 = vunpack.c.l.b16 %v1408
    %v1567 = vunpack.c.l.b16 %v1409
    %v1568 = vunpack.c.l.b16 %v1410
    %v1569 = vunpack.c.l.b16 %v1411
    %v1570 = vunpack.c.l.b16 %v1412
    %v1571 = vunpack.c.l.b16 %v1413
    %v1572 = vunpack.c.l.b16 %v1414
    %v1573 = vunpack.c.l.b16 %v1415
    %v1574 = vunpack.c.l.b16 %v1416
    %v1575 = vunpack.c.l.b16 %v1417
    %v1576 = vunpack.c.l.b16 %v1418
    %v1577 = vunpack.c.l.b16 %v1419
    %v1578 = vunpack.c.l.b16 %v1420
    %v1579 = vunpack.c.l.b16 %v1421
    %v1580 = vunpack.c.l.b16 %v1422
    %v1581 = vpack.c.b16 %v1550, %v1549
    %v1582 = vpack.c.b16 %v1552, %v1551
    %v1583 = vpack.c.b16 %v1554, %v1553
    %v1584 = vpack.c.b16 %v1556, %v1555
    %v1585 = vpack.c.b16 %v1558, %v1557
    %v1586 = vpack.c.b16 %v1560, %v1559
    %v1587 = vpack.c.b16 %v1562, %v1561
    %v1588 = vpack.c.b16 %v1564, %v1563
    %v1589 = vpack.c.b16 %v1566, %v1565
    %v1590 = vpack.c.b16 %v1568, %v1567
    %v1591 = vpack.c.b16 %v1570, %v1569
    %v1592 = vpack.c.b16 %v1572, %v1571
    %v1593 = vpack.c.b16 %v1574, %v1573
    %v1594 = vpack.c.b16 %v1576, %v1575
    %v1595 = vpack.c.b16 %v1578, %v1577
    %v1596 = vpack.c.b16 %v1580, %v1579
    %1613 = vmatprep.subr.bf16.mxu0 0
    %1614 = vmatpush1.bf16.msra.mxu0 %v1588
    %1615 = vmatprep.subr.bf16.mxu0 0
    %1616 = vmatpush1.bf16.msra.mxu0 %v1587
    %1617 = vmatprep.subr.bf16.mxu0 0
    %1618 = vmatpush1.bf16.msra.mxu0 %v1586
    %1619 = vmatprep.subr.bf16.mxu0 0
    %1620 = vmatpush1.bf16.msra.mxu0 %v1585
    %1621 = vmatprep.subr.bf16.mxu0 0
    %1622 = vmatpush1.bf16.msra.mxu0 %v1584
    %1623 = vmatprep.subr.bf16.mxu0 0
    %1624 = vmatpush1.bf16.msra.mxu0 %v1583
    %1625 = vmatprep.subr.bf16.mxu0 0
    %1626 = vmatpush1.bf16.msra.mxu0 %v1582
    %1627 = vmatprep.subr.bf16.mxu0 0
    %1628 = vmatpush1.bf16.msra.mxu0 %v1581
    %1629 = vmatprep.subr.bf16.mxu0 0
    %1630 = vmatpush2.bf16.msra.mxu0 %v1596
    %1631 = vmatprep.subr.bf16.mxu0 0
    %1632 = vmatpush2.bf16.msra.mxu0 %v1595
    %1633 = vmatprep.subr.bf16.mxu0 0
    %1634 = vmatpush2.bf16.msra.mxu0 %v1594
    %1635 = vmatprep.subr.bf16.mxu0 0
    %1636 = vmatpush2.bf16.msra.mxu0 %v1593
    %1637 = vmatprep.subr.bf16.mxu0 0
    %1638 = vmatpush2.bf16.msra.mxu0 %v1592
    %1639 = vmatprep.subr.bf16.mxu0 0
    %1640 = vmatpush2.bf16.msra.mxu0 %v1591
    %1641 = vmatprep.subr.bf16.mxu0 0
    %1642 = vmatpush2.bf16.msra.mxu0 %v1590
    %1643 = vmatprep.subr.bf16.mxu0 0
    %1644 = vmatpush2.bf16.msra.mxu0 %v1589
    %1645 = vmatprep.mubr.bf16.mxu0 %v1516
    %1646 = vmatmul.mubr.bf16.gmra.mxu0 %v1515
    %v1647 = vpop.f32.mrf.mxu0
    %v1648 = vadd.f32 0.0, %v1647
    %v1649 = vpop.f32.mrf.mxu0
    %v1650 = vpop.f32.mrf.mxu0
    %v1651 = vpop.f32.mrf.mxu0
    %1652 = vdwg.mxu0
    %v1653 = vpack.c.bf16 %v1513, %v1513
    %v1654 = vpack.c.bf16 %v1514, %v1514
    %1655 = vmatprep.subr.bf16.mxu0 0
    %1656 = vmatpush1.bf16.msra.mxu0 %v1588
    %1657 = vmatprep.subr.bf16.mxu0 0
    %1658 = vmatpush1.bf16.msra.mxu0 %v1587
    %1659 = vmatprep.subr.bf16.mxu0 0
    %1660 = vmatpush1.bf16.msra.mxu0 %v1586
    %1661 = vmatprep.subr.bf16.mxu0 0
    %1662 = vmatpush1.bf16.msra.mxu0 %v1585
    %1663 = vmatprep.subr.bf16.mxu0 0
    %1664 = vmatpush1.bf16.msra.mxu0 %v1584
    %1665 = vmatprep.subr.bf16.mxu0 0
    %1666 = vmatpush1.bf16.msra.mxu0 %v1583
    %1667 = vmatprep.subr.bf16.mxu0 0
    %1668 = vmatpush1.bf16.msra.mxu0 %v1582
    %1669 = vmatprep.subr.bf16.mxu0 0
    %1670 = vmatpush1.bf16.msra.mxu0 %v1581
    %1671 = vmatprep.subr.bf16.mxu0 0
    %1672 = vmatpush2.bf16.msra.mxu0 %v1596
    %1673 = vmatprep.subr.bf16.mxu0 0
    %1674 = vmatpush2.bf16.msra.mxu0 %v1595
    %1675 = vmatprep.subr.bf16.mxu0 0
    %1676 = vmatpush2.bf16.msra.mxu0 %v1594
    %1677 = vmatprep.subr.bf16.mxu0 0
    %1678 = vmatpush2.bf16.msra.mxu0 %v1593
    %1679 = vmatprep.subr.bf16.mxu0 0
    %1680 = vmatpush2.bf16.msra.mxu0 %v1592
    %1681 = vmatprep.subr.bf16.mxu0 0
    %1682 = vmatpush2.bf16.msra.mxu0 %v1591
    %1683 = vmatprep.subr.bf16.mxu0 0
    %1684 = vmatpush2.bf16.msra.mxu0 %v1590
    %1685 = vmatprep.subr.bf16.mxu0 0
    %1686 = vmatpush2.bf16.msra.mxu0 %v1589
    %1687 = vmatprep.mubr.bf16.mxu0 %v1654
    %1688 = vmatmul.mubr.bf16.gmra.mxu0 %v1653
    %v1689 = vpop.f32.mrf.mxu0
    %v1690 = vadd.f32 0.0, %v1689
    %v1691 = vpop.f32.mrf.mxu0
    %v1692 = vpop.f32.mrf.mxu0
    %v1693 = vpop.f32.mrf.mxu0
    %1694 = vdwg.mxu0
    %vm1695 = vcmp.gt.f32.partialorder %v1648, 0.0
    %v1696 = vsel %vm1695, %v1648, 1.0
    %v1697 = vrcp.pop %v1696
    %v1698 = vmul.f32 %v1696, %v1697
    %v1699 = vsub.f32 2.0, %v1698
    %v1700 = vmul.f32 %v1697, %v1699
    %v1701 = vmul.f32 %v1690, %v1700
    %v1702 = vadd.f32 %v1333, %v1701
    %1703 = vrot.lane.b32.xlu0 %v1336, 64
    %v1704 = vpop.permute.xlu0 %1703
    %v1706 = vsel %vm170, %v1704, 0
    %1708 = vmatprep.subr.bf16.mxu0 0
    %1709 = vmatpush1.bf16.msra.mxu0 0
    %1710 = vmatprep.subr.bf16.mxu0 0
    %1711 = vmatpush1.bf16.msra.mxu0 0
    %1712 = vmatprep.subr.bf16.mxu0 0
    %1713 = vmatpush1.bf16.msra.mxu0 0
    %1714 = vmatprep.subr.bf16.mxu0 0
    %1715 = vmatpush1.bf16.msra.mxu0 0
    %1716 = vmatprep.subr.bf16.mxu0 0
    %1717 = vmatpush1.bf16.msra.mxu0 0
    %1718 = vmatprep.subr.bf16.mxu0 0
    %1719 = vmatpush1.bf16.msra.mxu0 0
    %1720 = vmatprep.subr.bf16.mxu0 %v285
    %1721 = vmatpush1.bf16.msra.mxu0 %v284
    %1722 = vmatprep.subr.bf16.mxu0 %v281
    %1723 = vmatpush1.bf16.msra.mxu0 %v280
    %1724 = vmatprep.subr.bf16.mxu0 0
    %1725 = vmatpush2.bf16.msra.mxu0 0
    %1726 = vmatprep.subr.bf16.mxu0 0
    %1727 = vmatpush2.bf16.msra.mxu0 0
    %1728 = vmatprep.subr.bf16.mxu0 0
    %1729 = vmatpush2.bf16.msra.mxu0 0
    %1730 = vmatprep.subr.bf16.mxu0 0
    %1731 = vmatpush2.bf16.msra.mxu0 0
    %1732 = vmatprep.subr.bf16.mxu0 0
    %1733 = vmatpush2.bf16.msra.mxu0 0
    %1734 = vmatprep.subr.bf16.mxu0 0
    %1735 = vmatpush2.bf16.msra.mxu0 0
    %1736 = vmatprep.subr.bf16.mxu0 0
    %1737 = vmatpush2.bf16.msra.mxu0 0
    %1738 = vmatprep.subr.bf16.mxu0 0
    %1739 = vmatpush2.bf16.msra.mxu0 0
    %1740 = vmatprep.mubr.bf16.mxu0 0
    %1741 = vmatmul.mubr.bf16.gmra.mxu0 %v1706
    %v1742 = vpop.f32.mrf.mxu0
    %v1743 = vadd.f32 0.0, %v1742
    %v1744 = vpop.f32.mrf.mxu0
    %v1745 = vadd.f32 0.0, %v1744
    %v1746 = vpop.f32.mrf.mxu0
    %v1747 = vpop.f32.mrf.mxu0
    %1748 = vdwg.mxu0
    %1749 = vmatprep.subr.bf16.mxu0 0
    %1750 = vmatpush1.bf16.msra.mxu0 0
    %1751 = vmatprep.subr.bf16.mxu0 0
    %1752 = vmatpush1.bf16.msra.mxu0 0
    %1753 = vmatprep.subr.bf16.mxu0 0
    %1754 = vmatpush1.bf16.msra.mxu0 0
    %1755 = vmatprep.subr.bf16.mxu0 0
    %1756 = vmatpush1.bf16.msra.mxu0 0
    %1757 = vmatprep.subr.bf16.mxu0 0
    %1758 = vmatpush1.bf16.msra.mxu0 0
    %1759 = vmatprep.subr.bf16.mxu0 0
    %1760 = vmatpush1.bf16.msra.mxu0 0
    %1761 = vmatprep.subr.bf16.mxu0 %v287
    %1762 = vmatpush1.bf16.msra.mxu0 %v286
    %1763 = vmatprep.subr.bf16.mxu0 %v283
    %1764 = vmatpush1.bf16.msra.mxu0 %v282
    %1765 = vmatprep.subr.bf16.mxu0 0
    %1766 = vmatpush2.bf16.msra.mxu0 0
    %1767 = vmatprep.subr.bf16.mxu0 0
    %1768 = vmatpush2.bf16.msra.mxu0 0
    %1769 = vmatprep.subr.bf16.mxu0 0
    %1770 = vmatpush2.bf16.msra.mxu0 0
    %1771 = vmatprep.subr.bf16.mxu0 0
    %1772 = vmatpush2.bf16.msra.mxu0 0
    %1773 = vmatprep.subr.bf16.mxu0 0
    %1774 = vmatpush2.bf16.msra.mxu0 0
    %1775 = vmatprep.subr.bf16.mxu0 0
    %1776 = vmatpush2.bf16.msra.mxu0 0
    %1777 = vmatprep.subr.bf16.mxu0 0
    %1778 = vmatpush2.bf16.msra.mxu0 0
    %1779 = vmatprep.subr.bf16.mxu0 0
    %1780 = vmatpush2.bf16.msra.mxu0 0
    %1781 = vmatprep.mubr.bf16.mxu0 0
    %1782 = vmatmul.mubr.bf16.gmra.mxu0 %v1706
    %v1783 = vpop.f32.mrf.mxu0
    %v1784 = vadd.f32 0.0, %v1783
    %v1785 = vpop.f32.mrf.mxu0
    %v1786 = vadd.f32 0.0, %v1785
    %v1787 = vpop.f32.mrf.mxu0
    %v1788 = vpop.f32.mrf.mxu0
    %1789 = vdwg.mxu0
    %v1790 = vmul.f32 %v1377, %v1743
    %v1791 = vmul.f32 %v1379, %v1745
    %v1792 = vsub.f32 %v1790, %v1389
    %v1793 = vsub.f32 %v1791, %v1389
    %v1794 = vmul.f32 %v1792, 1.442695
    %v1795 = vpow.pop %v1794
    %v1796 = vmul.f32 %v1793, 1.442695
    %v1797 = vpow.pop %v1796
    %v1798 = vmul.f32 %v1795, %v1784
    %v1799 = vmul.f32 %v1797, %v1786
    %v1800 = vpack.c.bf16 %v1795, %v1795
    %v1801 = vpack.c.bf16 %v1797, %v1797
    %1802 = vmatprep.subr.bf16.mxu0 0
    %1803 = vmatpush1.bf16.msra.mxu0 %v1588
    %1804 = vmatprep.subr.bf16.mxu0 0
    %1805 = vmatpush1.bf16.msra.mxu0 %v1587
    %1806 = vmatprep.subr.bf16.mxu0 0
    %1807 = vmatpush1.bf16.msra.mxu0 %v1586
    %1808 = vmatprep.subr.bf16.mxu0 0
    %1809 = vmatpush1.bf16.msra.mxu0 %v1585
    %1810 = vmatprep.subr.bf16.mxu0 0
    %1811 = vmatpush1.bf16.msra.mxu0 %v1584
    %1812 = vmatprep.subr.bf16.mxu0 0
    %1813 = vmatpush1.bf16.msra.mxu0 %v1583
    %1814 = vmatprep.subr.bf16.mxu0 0
    %1815 = vmatpush1.bf16.msra.mxu0 %v1582
    %1816 = vmatprep.subr.bf16.mxu0 0
    %1817 = vmatpush1.bf16.msra.mxu0 %v1581
    %1818 = vmatprep.subr.bf16.mxu0 0
    %1819 = vmatpush2.bf16.msra.mxu0 %v1596
    %1820 = vmatprep.subr.bf16.mxu0 0
    %1821 = vmatpush2.bf16.msra.mxu0 %v1595
    %1822 = vmatprep.subr.bf16.mxu0 0
    %1823 = vmatpush2.bf16.msra.mxu0 %v1594
    %1824 = vmatprep.subr.bf16.mxu0 0
    %1825 = vmatpush2.bf16.msra.mxu0 %v1593
    %1826 = vmatprep.subr.bf16.mxu0 0
    %1827 = vmatpush2.bf16.msra.mxu0 %v1592
    %1828 = vmatprep.subr.bf16.mxu0 0
    %1829 = vmatpush2.bf16.msra.mxu0 %v1591
    %1830 = vmatprep.subr.bf16.mxu0 0
    %1831 = vmatpush2.bf16.msra.mxu0 %v1590
    %1832 = vmatprep.subr.bf16.mxu0 0
    %1833 = vmatpush2.bf16.msra.mxu0 %v1589
    %1834 = vmatprep.mubr.bf16.mxu0 %v1801
    %1835 = vmatmul.mubr.bf16.gmra.mxu0 %v1800
    %v1836 = vpop.f32.mrf.mxu0
    %v1837 = vadd.f32 0.0, %v1836
    %v1838 = vpop.f32.mrf.mxu0
    %v1839 = vpop.f32.mrf.mxu0
    %v1840 = vpop.f32.mrf.mxu0
    %1841 = vdwg.mxu0
    %v1842 = vpack.c.bf16 %v1798, %v1798
    %v1843 = vpack.c.bf16 %v1799, %v1799
    %1844 = vmatprep.subr.bf16.mxu0 0
    %1845 = vmatpush1.bf16.msra.mxu0 %v1588
    %1846 = vmatprep.subr.bf16.mxu0 0
    %1847 = vmatpush1.bf16.msra.mxu0 %v1587
    %1848 = vmatprep.subr.bf16.mxu0 0
    %1849 = vmatpush1.bf16.msra.mxu0 %v1586
    %1850 = vmatprep.subr.bf16.mxu0 0
    %1851 = vmatpush1.bf16.msra.mxu0 %v1585
    %1852 = vmatprep.subr.bf16.mxu0 0
    %1853 = vmatpush1.bf16.msra.mxu0 %v1584
    %1854 = vmatprep.subr.bf16.mxu0 0
    %1855 = vmatpush1.bf16.msra.mxu0 %v1583
    %1856 = vmatprep.subr.bf16.mxu0 0
    %1857 = vmatpush1.bf16.msra.mxu0 %v1582
    %1858 = vmatprep.subr.bf16.mxu0 0
    %1859 = vmatpush1.bf16.msra.mxu0 %v1581
    %1860 = vmatprep.subr.bf16.mxu0 0
    %1861 = vmatpush2.bf16.msra.mxu0 %v1596
    %1862 = vmatprep.subr.bf16.mxu0 0
    %1863 = vmatpush2.bf16.msra.mxu0 %v1595
    %1864 = vmatprep.subr.bf16.mxu0 0
    %1865 = vmatpush2.bf16.msra.mxu0 %v1594
    %1866 = vmatprep.subr.bf16.mxu0 0
    %1867 = vmatpush2.bf16.msra.mxu0 %v1593
    %1868 = vmatprep.subr.bf16.mxu0 0
    %1869 = vmatpush2.bf16.msra.mxu0 %v1592
    %1870 = vmatprep.subr.bf16.mxu0 0
    %1871 = vmatpush2.bf16.msra.mxu0 %v1591
    %1872 = vmatprep.subr.bf16.mxu0 0
    %1873 = vmatpush2.bf16.msra.mxu0 %v1590
    %1874 = vmatprep.subr.bf16.mxu0 0
    %1875 = vmatpush2.bf16.msra.mxu0 %v1589
    %1876 = vmatprep.mubr.bf16.mxu0 %v1843
    %1877 = vmatmul.mubr.bf16.gmra.mxu0 %v1842
    %v1878 = vpop.f32.mrf.mxu0
    %v1879 = vadd.f32 0.0, %v1878
    %v1880 = vpop.f32.mrf.mxu0
    %v1881 = vpop.f32.mrf.mxu0
    %v1882 = vpop.f32.mrf.mxu0
    %1883 = vdwg.mxu0
    %vm1884 = vcmp.gt.f32.partialorder %v1837, 0.0
    %v1885 = vsel %vm1884, %v1837, 1.0
    %v1886 = vrcp.pop %v1885
    %v1887 = vmul.f32 %v1885, %v1886
    %v1888 = vsub.f32 2.0, %v1887
    %v1889 = vmul.f32 %v1886, %v1888
    %v1890 = vmul.f32 %v1879, %v1889
    %v1891 = vadd.f32 %v1702, %v1890
    %1892 = vrot.lane.b32.xlu0 %v1336, 32
    %v1893 = vpop.permute.xlu0 %1892
    %v1895 = vsel %vm170, %v1893, 0
    %1897 = vmatprep.subr.bf16.mxu0 0
    %1898 = vmatpush1.bf16.msra.mxu0 0
    %1899 = vmatprep.subr.bf16.mxu0 0
    %1900 = vmatpush1.bf16.msra.mxu0 0
    %1901 = vmatprep.subr.bf16.mxu0 0
    %1902 = vmatpush1.bf16.msra.mxu0 0
    %1903 = vmatprep.subr.bf16.mxu0 0
    %1904 = vmatpush1.bf16.msra.mxu0 0
    %1905 = vmatprep.subr.bf16.mxu0 0
    %1906 = vmatpush1.bf16.msra.mxu0 0
    %1907 = vmatprep.subr.bf16.mxu0 0
    %1908 = vmatpush1.bf16.msra.mxu0 0
    %1909 = vmatprep.subr.bf16.mxu0 %v285
    %1910 = vmatpush1.bf16.msra.mxu0 %v284
    %1911 = vmatprep.subr.bf16.mxu0 %v281
    %1912 = vmatpush1.bf16.msra.mxu0 %v280
    %1913 = vmatprep.subr.bf16.mxu0 0
    %1914 = vmatpush2.bf16.msra.mxu0 0
    %1915 = vmatprep.subr.bf16.mxu0 0
    %1916 = vmatpush2.bf16.msra.mxu0 0
    %1917 = vmatprep.subr.bf16.mxu0 0
    %1918 = vmatpush2.bf16.msra.mxu0 0
    %1919 = vmatprep.subr.bf16.mxu0 0
    %1920 = vmatpush2.bf16.msra.mxu0 0
    %1921 = vmatprep.subr.bf16.mxu0 0
    %1922 = vmatpush2.bf16.msra.mxu0 0
    %1923 = vmatprep.subr.bf16.mxu0 0
    %1924 = vmatpush2.bf16.msra.mxu0 0
    %1925 = vmatprep.subr.bf16.mxu0 0
    %1926 = vmatpush2.bf16.msra.mxu0 0
    %1927 = vmatprep.subr.bf16.mxu0 0
    %1928 = vmatpush2.bf16.msra.mxu0 0
    %1929 = vmatprep.mubr.bf16.mxu0 0
    %1930 = vmatmul.mubr.bf16.gmra.mxu0 %v1895
    %v1931 = vpop.f32.mrf.mxu0
    %v1932 = vadd.f32 0.0, %v1931
    %v1933 = vpop.f32.mrf.mxu0
    %v1934 = vadd.f32 0.0, %v1933
    %v1935 = vpop.f32.mrf.mxu0
    %v1936 = vpop.f32.mrf.mxu0
    %1937 = vdwg.mxu0
    %1938 = vmatprep.subr.bf16.mxu0 0
    %1939 = vmatpush1.bf16.msra.mxu0 0
    %1940 = vmatprep.subr.bf16.mxu0 0
    %1941 = vmatpush1.bf16.msra.mxu0 0
    %1942 = vmatprep.subr.bf16.mxu0 0
    %1943 = vmatpush1.bf16.msra.mxu0 0
    %1944 = vmatprep.subr.bf16.mxu0 0
    %1945 = vmatpush1.bf16.msra.mxu0 0
    %1946 = vmatprep.subr.bf16.mxu0 0
    %1947 = vmatpush1.bf16.msra.mxu0 0
    %1948 = vmatprep.subr.bf16.mxu0 0
    %1949 = vmatpush1.bf16.msra.mxu0 0
    %1950 = vmatprep.subr.bf16.mxu0 %v287
    %1951 = vmatpush1.bf16.msra.mxu0 %v286
    %1952 = vmatprep.subr.bf16.mxu0 %v283
    %1953 = vmatpush1.bf16.msra.mxu0 %v282
    %1954 = vmatprep.subr.bf16.mxu0 0
    %1955 = vmatpush2.bf16.msra.mxu0 0
    %1956 = vmatprep.subr.bf16.mxu0 0
    %1957 = vmatpush2.bf16.msra.mxu0 0
    %1958 = vmatprep.subr.bf16.mxu0 0
    %1959 = vmatpush2.bf16.msra.mxu0 0
    %1960 = vmatprep.subr.bf16.mxu0 0
    %1961 = vmatpush2.bf16.msra.mxu0 0
    %1962 = vmatprep.subr.bf16.mxu0 0
    %1963 = vmatpush2.bf16.msra.mxu0 0
    %1964 = vmatprep.subr.bf16.mxu0 0
    %1965 = vmatpush2.bf16.msra.mxu0 0
    %1966 = vmatprep.subr.bf16.mxu0 0
    %1967 = vmatpush2.bf16.msra.mxu0 0
    %1968 = vmatprep.subr.bf16.mxu0 0
    %1969 = vmatpush2.bf16.msra.mxu0 0
    %1970 = vmatprep.mubr.bf16.mxu0 0
    %1971 = vmatmul.mubr.bf16.gmra.mxu0 %v1895
    %v1972 = vpop.f32.mrf.mxu0
    %v1973 = vadd.f32 0.0, %v1972
    %v1974 = vpop.f32.mrf.mxu0
    %v1975 = vadd.f32 0.0, %v1974
    %v1976 = vpop.f32.mrf.mxu0
    %v1977 = vpop.f32.mrf.mxu0
    %1978 = vdwg.mxu0
    %v1979 = vmul.f32 %v1377, %v1932
    %v1980 = vmul.f32 %v1379, %v1934
    %v1981 = vsub.f32 %v1979, %v1389
    %v1982 = vsub.f32 %v1980, %v1389
    %v1983 = vmul.f32 %v1981, 1.442695
    %v1984 = vpow.pop %v1983
    %v1985 = vmul.f32 %v1982, 1.442695
    %v1986 = vpow.pop %v1985
    %v1987 = vmul.f32 %v1984, %v1973
    %v1988 = vmul.f32 %v1986, %v1975
    %v1989 = vpack.c.bf16 %v1984, %v1984
    %v1990 = vpack.c.bf16 %v1986, %v1986
    %1991 = vmatprep.subr.bf16.mxu0 0
    %1992 = vmatpush1.bf16.msra.mxu0 %v1588
    %1993 = vmatprep.subr.bf16.mxu0 0
    %1994 = vmatpush1.bf16.msra.mxu0 %v1587
    %1995 = vmatprep.subr.bf16.mxu0 0
    %1996 = vmatpush1.bf16.msra.mxu0 %v1586
    %1997 = vmatprep.subr.bf16.mxu0 0
    %1998 = vmatpush1.bf16.msra.mxu0 %v1585
    %1999 = vmatprep.subr.bf16.mxu0 0
    %2000 = vmatpush1.bf16.msra.mxu0 %v1584
    %2001 = vmatprep.subr.bf16.mxu0 0
    %2002 = vmatpush1.bf16.msra.mxu0 %v1583
    %2003 = vmatprep.subr.bf16.mxu0 0
    %2004 = vmatpush1.bf16.msra.mxu0 %v1582
    %2005 = vmatprep.subr.bf16.mxu0 0
    %2006 = vmatpush1.bf16.msra.mxu0 %v1581
    %2007 = vmatprep.subr.bf16.mxu0 0
    %2008 = vmatpush2.bf16.msra.mxu0 %v1596
    %2009 = vmatprep.subr.bf16.mxu0 0
    %2010 = vmatpush2.bf16.msra.mxu0 %v1595
    %2011 = vmatprep.subr.bf16.mxu0 0
    %2012 = vmatpush2.bf16.msra.mxu0 %v1594
    %2013 = vmatprep.subr.bf16.mxu0 0
    %2014 = vmatpush2.bf16.msra.mxu0 %v1593
    %2015 = vmatprep.subr.bf16.mxu0 0
    %2016 = vmatpush2.bf16.msra.mxu0 %v1592
    %2017 = vmatprep.subr.bf16.mxu0 0
    %2018 = vmatpush2.bf16.msra.mxu0 %v1591
    %2019 = vmatprep.subr.bf16.mxu0 0
    %2020 = vmatpush2.bf16.msra.mxu0 %v1590
    %2021 = vmatprep.subr.bf16.mxu0 0
    %2022 = vmatpush2.bf16.msra.mxu0 %v1589
    %2023 = vmatprep.mubr.bf16.mxu0 %v1990
    %2024 = vmatmul.mubr.bf16.gmra.mxu0 %v1989
    %v2025 = vpop.f32.mrf.mxu0
    %v2026 = vadd.f32 0.0, %v2025
    %v2027 = vpop.f32.mrf.mxu0
    %v2028 = vpop.f32.mrf.mxu0
    %v2029 = vpop.f32.mrf.mxu0
    %2030 = vdwg.mxu0
    %v2031 = vpack.c.bf16 %v1987, %v1987
    %v2032 = vpack.c.bf16 %v1988, %v1988
    %2033 = vmatprep.subr.bf16.mxu0 0
    %2034 = vmatpush1.bf16.msra.mxu0 %v1588
    %2035 = vmatprep.subr.bf16.mxu0 0
    %2036 = vmatpush1.bf16.msra.mxu0 %v1587
    %2037 = vmatprep.subr.bf16.mxu0 0
    %2038 = vmatpush1.bf16.msra.mxu0 %v1586
    %2039 = vmatprep.subr.bf16.mxu0 0
    %2040 = vmatpush1.bf16.msra.mxu0 %v1585
    %2041 = vmatprep.subr.bf16.mxu0 0
    %2042 = vmatpush1.bf16.msra.mxu0 %v1584
    %2043 = vmatprep.subr.bf16.mxu0 0
    %2044 = vmatpush1.bf16.msra.mxu0 %v1583
    %2045 = vmatprep.subr.bf16.mxu0 0
    %2046 = vmatpush1.bf16.msra.mxu0 %v1582
    %2047 = vmatprep.subr.bf16.mxu0 0
    %2048 = vmatpush1.bf16.msra.mxu0 %v1581
    %2049 = vmatprep.subr.bf16.mxu0 0
    %2050 = vmatpush2.bf16.msra.mxu0 %v1596
    %2051 = vmatprep.subr.bf16.mxu0 0
    %2052 = vmatpush2.bf16.msra.mxu0 %v1595
    %2053 = vmatprep.subr.bf16.mxu0 0
    %2054 = vmatpush2.bf16.msra.mxu0 %v1594
    %2055 = vmatprep.subr.bf16.mxu0 0
    %2056 = vmatpush2.bf16.msra.mxu0 %v1593
    %2057 = vmatprep.subr.bf16.mxu0 0
    %2058 = vmatpush2.bf16.msra.mxu0 %v1592
    %2059 = vmatprep.subr.bf16.mxu0 0
    %2060 = vmatpush2.bf16.msra.mxu0 %v1591
    %2061 = vmatprep.subr.bf16.mxu0 0
    %2062 = vmatpush2.bf16.msra.mxu0 %v1590
    %2063 = vmatprep.subr.bf16.mxu0 0
    %2064 = vmatpush2.bf16.msra.mxu0 %v1589
    %2065 = vmatprep.mubr.bf16.mxu0 %v2032
    %2066 = vmatmul.mubr.bf16.gmra.mxu0 %v2031
    %v2067 = vpop.f32.mrf.mxu0
    %v2068 = vadd.f32 0.0, %v2067
    %v2069 = vpop.f32.mrf.mxu0
    %v2070 = vpop.f32.mrf.mxu0
    %v2071 = vpop.f32.mrf.mxu0
    %2072 = vdwg.mxu0
    %vm2073 = vcmp.gt.f32.partialorder %v2026, 0.0
    %v2074 = vsel %vm2073, %v2026, 1.0
    %v2075 = vrcp.pop %v2074
    %v2076 = vmul.f32 %v2074, %v2075
    %v2077 = vsub.f32 2.0, %v2076
    %v2078 = vmul.f32 %v2075, %v2077
    %v2079 = vmul.f32 %v2068, %v2078
    %v2080 = vadd.f32 %v1891, %v2079
    %v2081 = vld [vmem:[#allocation3 + $0x8] sm:$0xf]
    %v2083 = vsel %vm170, %v2081, 0
    %2085 = vmatprep.subr.bf16.mxu0 0
    %2086 = vmatpush1.bf16.msra.mxu0 0
    %2087 = vmatprep.subr.bf16.mxu0 0
    %2088 = vmatpush1.bf16.msra.mxu0 0
    %2089 = vmatprep.subr.bf16.mxu0 0
    %2090 = vmatpush1.bf16.msra.mxu0 0
    %2091 = vmatprep.subr.bf16.mxu0 0
    %2092 = vmatpush1.bf16.msra.mxu0 0
    %2093 = vmatprep.subr.bf16.mxu0 0
    %2094 = vmatpush1.bf16.msra.mxu0 0
    %2095 = vmatprep.subr.bf16.mxu0 0
    %2096 = vmatpush1.bf16.msra.mxu0 0
    %2097 = vmatprep.subr.bf16.mxu0 %v285
    %2098 = vmatpush1.bf16.msra.mxu0 %v284
    %2099 = vmatprep.subr.bf16.mxu0 %v281
    %2100 = vmatpush1.bf16.msra.mxu0 %v280
    %2101 = vmatprep.subr.bf16.mxu0 0
    %2102 = vmatpush2.bf16.msra.mxu0 0
    %2103 = vmatprep.subr.bf16.mxu0 0
    %2104 = vmatpush2.bf16.msra.mxu0 0
    %2105 = vmatprep.subr.bf16.mxu0 0
    %2106 = vmatpush2.bf16.msra.mxu0 0
    %2107 = vmatprep.subr.bf16.mxu0 0
    %2108 = vmatpush2.bf16.msra.mxu0 0
    %2109 = vmatprep.subr.bf16.mxu0 0
    %2110 = vmatpush2.bf16.msra.mxu0 0
    %2111 = vmatprep.subr.bf16.mxu0 0
    %2112 = vmatpush2.bf16.msra.mxu0 0
    %2113 = vmatprep.subr.bf16.mxu0 0
    %2114 = vmatpush2.bf16.msra.mxu0 0
    %2115 = vmatprep.subr.bf16.mxu0 0
    %2116 = vmatpush2.bf16.msra.mxu0 0
    %2117 = vmatprep.mubr.bf16.mxu0 0
    %2118 = vmatmul.mubr.bf16.gmra.mxu0 %v2083
    %v2119 = vpop.f32.mrf.mxu0
    %v2120 = vadd.f32 0.0, %v2119
    %v2121 = vpop.f32.mrf.mxu0
    %v2122 = vadd.f32 0.0, %v2121
    %v2123 = vpop.f32.mrf.mxu0
    %v2124 = vpop.f32.mrf.mxu0
    %2125 = vdwg.mxu0
    %2126 = vmatprep.subr.bf16.mxu0 0
    %2127 = vmatpush1.bf16.msra.mxu0 0
    %2128 = vmatprep.subr.bf16.mxu0 0
    %2129 = vmatpush1.bf16.msra.mxu0 0
    %2130 = vmatprep.subr.bf16.mxu0 0
    %2131 = vmatpush1.bf16.msra.mxu0 0
    %2132 = vmatprep.subr.bf16.mxu0 0
    %2133 = vmatpush1.bf16.msra.mxu0 0
    %2134 = vmatprep.subr.bf16.mxu0 0
    %2135 = vmatpush1.bf16.msra.mxu0 0
    %2136 = vmatprep.subr.bf16.mxu0 0
    %2137 = vmatpush1.bf16.msra.mxu0 0
    %2138 = vmatprep.subr.bf16.mxu0 %v287
    %2139 = vmatpush1.bf16.msra.mxu0 %v286
    %2140 = vmatprep.subr.bf16.mxu0 %v283
    %2141 = vmatpush1.bf16.msra.mxu0 %v282
    %2142 = vmatprep.subr.bf16.mxu0 0
    %2143 = vmatpush2.bf16.msra.mxu0 0
    %2144 = vmatprep.subr.bf16.mxu0 0
    %2145 = vmatpush2.bf16.msra.mxu0 0
    %2146 = vmatprep.subr.bf16.mxu0 0
    %2147 = vmatpush2.bf16.msra.mxu0 0
    %2148 = vmatprep.subr.bf16.mxu0 0
    %2149 = vmatpush2.bf16.msra.mxu0 0
    %2150 = vmatprep.subr.bf16.mxu0 0
    %2151 = vmatpush2.bf16.msra.mxu0 0
    %2152 = vmatprep.subr.bf16.mxu0 0
    %2153 = vmatpush2.bf16.msra.mxu0 0
    %2154 = vmatprep.subr.bf16.mxu0 0
    %2155 = vmatpush2.bf16.msra.mxu0 0
    %2156 = vmatprep.subr.bf16.mxu0 0
    %2157 = vmatpush2.bf16.msra.mxu0 0
    %2158 = vmatprep.mubr.bf16.mxu0 0
    %2159 = vmatmul.mubr.bf16.gmra.mxu0 %v2083
    %v2160 = vpop.f32.mrf.mxu0
    %v2161 = vadd.f32 0.0, %v2160
    %v2162 = vpop.f32.mrf.mxu0
    %v2163 = vadd.f32 0.0, %v2162
    %v2164 = vpop.f32.mrf.mxu0
    %v2165 = vpop.f32.mrf.mxu0
    %2166 = vdwg.mxu0
    %v2167 = vmul.f32 %v1377, %v2120
    %v2168 = vmul.f32 %v1379, %v2122
    %v2169 = vsub.f32 %v2167, %v1389
    %v2170 = vsub.f32 %v2168, %v1389
    %v2171 = vmul.f32 %v2169, 1.442695
    %v2172 = vpow.pop %v2171
    %v2173 = vmul.f32 %v2170, 1.442695
    %v2174 = vpow.pop %v2173
    %v2175 = vmul.f32 %v2172, %v2161
    %v2176 = vmul.f32 %v2174, %v2163
    %v2177 = vpack.c.bf16 %v2172, %v2172
    %v2178 = vpack.c.bf16 %v2174, %v2174
    %2179 = vmatprep.subr.bf16.mxu0 0
    %2180 = vmatpush1.bf16.msra.mxu0 %v1588
    %2181 = vmatprep.subr.bf16.mxu0 0
    %2182 = vmatpush1.bf16.msra.mxu0 %v1587
    %2183 = vmatprep.subr.bf16.mxu0 0
    %2184 = vmatpush1.bf16.msra.mxu0 %v1586
    %2185 = vmatprep.subr.bf16.mxu0 0
    %2186 = vmatpush1.bf16.msra.mxu0 %v1585
    %2187 = vmatprep.subr.bf16.mxu0 0
    %2188 = vmatpush1.bf16.msra.mxu0 %v1584
    %2189 = vmatprep.subr.bf16.mxu0 0
    %2190 = vmatpush1.bf16.msra.mxu0 %v1583
    %2191 = vmatprep.subr.bf16.mxu0 0
    %2192 = vmatpush1.bf16.msra.mxu0 %v1582
    %2193 = vmatprep.subr.bf16.mxu0 0
    %2194 = vmatpush1.bf16.msra.mxu0 %v1581
    %2195 = vmatprep.subr.bf16.mxu0 0
    %2196 = vmatpush2.bf16.msra.mxu0 %v1596
    %2197 = vmatprep.subr.bf16.mxu0 0
    %2198 = vmatpush2.bf16.msra.mxu0 %v1595
    %2199 = vmatprep.subr.bf16.mxu0 0
    %2200 = vmatpush2.bf16.msra.mxu0 %v1594
    %2201 = vmatprep.subr.bf16.mxu0 0
    %2202 = vmatpush2.bf16.msra.mxu0 %v1593
    %2203 = vmatprep.subr.bf16.mxu0 0
    %2204 = vmatpush2.bf16.msra.mxu0 %v1592
    %2205 = vmatprep.subr.bf16.mxu0 0
    %2206 = vmatpush2.bf16.msra.mxu0 %v1591
    %2207 = vmatprep.subr.bf16.mxu0 0
    %2208 = vmatpush2.bf16.msra.mxu0 %v1590
    %2209 = vmatprep.subr.bf16.mxu0 0
    %2210 = vmatpush2.bf16.msra.mxu0 %v1589
    %2211 = vmatprep.mubr.bf16.mxu0 %v2178
    %2212 = vmatmul.mubr.bf16.gmra.mxu0 %v2177
    %v2213 = vpop.f32.mrf.mxu0
    %v2214 = vadd.f32 0.0, %v2213
    %v2215 = vpop.f32.mrf.mxu0
    %v2216 = vpop.f32.mrf.mxu0
    %v2217 = vpop.f32.mrf.mxu0
    %2218 = vdwg.mxu0
    %v2219 = vpack.c.bf16 %v2175, %v2175
    %v2220 = vpack.c.bf16 %v2176, %v2176
    %2221 = vmatprep.subr.bf16.mxu0 0
    %2222 = vmatpush1.bf16.msra.mxu0 %v1588
    %2223 = vmatprep.subr.bf16.mxu0 0
    %2224 = vmatpush1.bf16.msra.mxu0 %v1587
    %2225 = vmatprep.subr.bf16.mxu0 0
    %2226 = vmatpush1.bf16.msra.mxu0 %v1586
    %2227 = vmatprep.subr.bf16.mxu0 0
    %2228 = vmatpush1.bf16.msra.mxu0 %v1585
    %2229 = vmatprep.subr.bf16.mxu0 0
    %2230 = vmatpush1.bf16.msra.mxu0 %v1584
    %2231 = vmatprep.subr.bf16.mxu0 0
    %2232 = vmatpush1.bf16.msra.mxu0 %v1583
    %2233 = vmatprep.subr.bf16.mxu0 0
    %2234 = vmatpush1.bf16.msra.mxu0 %v1582
    %2235 = vmatprep.subr.bf16.mxu0 0
    %2236 = vmatpush1.bf16.msra.mxu0 %v1581
    %2237 = vmatprep.subr.bf16.mxu0 0
    %2238 = vmatpush2.bf16.msra.mxu0 %v1596
    %2239 = vmatprep.subr.bf16.mxu0 0
    %2240 = vmatpush2.bf16.msra.mxu0 %v1595
    %2241 = vmatprep.subr.bf16.mxu0 0
    %2242 = vmatpush2.bf16.msra.mxu0 %v1594
    %2243 = vmatprep.subr.bf16.mxu0 0
    %2244 = vmatpush2.bf16.msra.mxu0 %v1593
    %2245 = vmatprep.subr.bf16.mxu0 0
    %2246 = vmatpush2.bf16.msra.mxu0 %v1592
    %2247 = vmatprep.subr.bf16.mxu0 0
    %2248 = vmatpush2.bf16.msra.mxu0 %v1591
    %2249 = vmatprep.subr.bf16.mxu0 0
    %2250 = vmatpush2.bf16.msra.mxu0 %v1590
    %2251 = vmatprep.subr.bf16.mxu0 0
    %2252 = vmatpush2.bf16.msra.mxu0 %v1589
    %2253 = vmatprep.mubr.bf16.mxu0 %v2220
    %2254 = vmatmul.mubr.bf16.gmra.mxu0 %v2219
    %v2255 = vpop.f32.mrf.mxu0
    %v2256 = vadd.f32 0.0, %v2255
    %v2257 = vpop.f32.mrf.mxu0
    %v2258 = vpop.f32.mrf.mxu0
    %v2259 = vpop.f32.mrf.mxu0
    %2260 = vdwg.mxu0
    %vm2261 = vcmp.gt.f32.partialorder %v2214, 0.0
    %v2262 = vsel %vm2261, %v2214, 1.0
    %v2263 = vrcp.pop %v2262
    %v2264 = vmul.f32 %v2262, %v2263
    %v2265 = vsub.f32 2.0, %v2264
    %v2266 = vmul.f32 %v2263, %v2265
    %v2267 = vmul.f32 %v2256, %v2266
    %v2268 = vadd.f32 %v2080, %v2267
    %v2270 = vunpack.c.l.b16 %v2081
    %v2271 = vpack.c.b16 %v2270, %v2270
    %2272 = vrot.lane.b32.xlu0 %v2271, 96
    %v2273 = vpop.permute.xlu0 %2272
    %v2275 = vsel %vm170, %v2273, 0
    %2277 = vmatprep.subr.bf16.mxu0 0
    %2278 = vmatpush1.bf16.msra.mxu0 0
    %2279 = vmatprep.subr.bf16.mxu0 0
    %2280 = vmatpush1.bf16.msra.mxu0 0
    %2281 = vmatprep.subr.bf16.mxu0 0
    %2282 = vmatpush1.bf16.msra.mxu0 0
    %2283 = vmatprep.subr.bf16.mxu0 0
    %2284 = vmatpush1.bf16.msra.mxu0 0
    %2285 = vmatprep.subr.bf16.mxu0 0
    %2286 = vmatpush1.bf16.msra.mxu0 0
    %2287 = vmatprep.subr.bf16.mxu0 0
    %2288 = vmatpush1.bf16.msra.mxu0 0
    %2289 = vmatprep.subr.bf16.mxu0 %v285
    %2290 = vmatpush1.bf16.msra.mxu0 %v284
    %2291 = vmatprep.subr.bf16.mxu0 %v281
    %2292 = vmatpush1.bf16.msra.mxu0 %v280
    %2293 = vmatprep.subr.bf16.mxu0 0
    %2294 = vmatpush2.bf16.msra.mxu0 0
    %2295 = vmatprep.subr.bf16.mxu0 0
    %2296 = vmatpush2.bf16.msra.mxu0 0
    %2297 = vmatprep.subr.bf16.mxu0 0
    %2298 = vmatpush2.bf16.msra.mxu0 0
    %2299 = vmatprep.subr.bf16.mxu0 0
    %2300 = vmatpush2.bf16.msra.mxu0 0
    %2301 = vmatprep.subr.bf16.mxu0 0
    %2302 = vmatpush2.bf16.msra.mxu0 0
    %2303 = vmatprep.subr.bf16.mxu0 0
    %2304 = vmatpush2.bf16.msra.mxu0 0
    %2305 = vmatprep.subr.bf16.mxu0 0
    %2306 = vmatpush2.bf16.msra.mxu0 0
    %2307 = vmatprep.subr.bf16.mxu0 0
    %2308 = vmatpush2.bf16.msra.mxu0 0
    %2309 = vmatprep.mubr.bf16.mxu0 0
    %2310 = vmatmul.mubr.bf16.gmra.mxu0 %v2275
    %v2311 = vpop.f32.mrf.mxu0
    %v2312 = vadd.f32 0.0, %v2311
    %v2313 = vpop.f32.mrf.mxu0
    %v2314 = vadd.f32 0.0, %v2313
    %v2315 = vpop.f32.mrf.mxu0
    %v2316 = vpop.f32.mrf.mxu0
    %2317 = vdwg.mxu0
    %2318 = vmatprep.subr.bf16.mxu0 0
    %2319 = vmatpush1.bf16.msra.mxu0 0
    %2320 = vmatprep.subr.bf16.mxu0 0
    %2321 = vmatpush1.bf16.msra.mxu0 0
    %2322 = vmatprep.subr.bf16.mxu0 0
    %2323 = vmatpush1.bf16.msra.mxu0 0
    %2324 = vmatprep.subr.bf16.mxu0 0
    %2325 = vmatpush1.bf16.msra.mxu0 0
    %2326 = vmatprep.subr.bf16.mxu0 0
    %2327 = vmatpush1.bf16.msra.mxu0 0
    %2328 = vmatprep.subr.bf16.mxu0 0
    %2329 = vmatpush1.bf16.msra.mxu0 0
    %2330 = vmatprep.subr.bf16.mxu0 %v287
    %2331 = vmatpush1.bf16.msra.mxu0 %v286
    %2332 = vmatprep.subr.bf16.mxu0 %v283
    %2333 = vmatpush1.bf16.msra.mxu0 %v282
    %2334 = vmatprep.subr.bf16.mxu0 0
    %2335 = vmatpush2.bf16.msra.mxu0 0
    %2336 = vmatprep.subr.bf16.mxu0 0
    %2337 = vmatpush2.bf16.msra.mxu0 0
    %2338 = vmatprep.subr.bf16.mxu0 0
    %2339 = vmatpush2.bf16.msra.mxu0 0
    %2340 = vmatprep.subr.bf16.mxu0 0
    %2341 = vmatpush2.bf16.msra.mxu0 0
    %2342 = vmatprep.subr.bf16.mxu0 0
    %2343 = vmatpush2.bf16.msra.mxu0 0
    %2344 = vmatprep.subr.bf16.mxu0 0
    %2345 = vmatpush2.bf16.msra.mxu0 0
    %2346 = vmatprep.subr.bf16.mxu0 0
    %2347 = vmatpush2.bf16.msra.mxu0 0
    %2348 = vmatprep.subr.bf16.mxu0 0
    %2349 = vmatpush2.bf16.msra.mxu0 0
    %2350 = vmatprep.mubr.bf16.mxu0 0
    %2351 = vmatmul.mubr.bf16.gmra.mxu0 %v2275
    %v2352 = vpop.f32.mrf.mxu0
    %v2353 = vadd.f32 0.0, %v2352
    %v2354 = vpop.f32.mrf.mxu0
    %v2355 = vadd.f32 0.0, %v2354
    %v2356 = vpop.f32.mrf.mxu0
    %v2357 = vpop.f32.mrf.mxu0
    %2358 = vdwg.mxu0
    %v2359 = vmul.f32 %v1377, %v2312
    %v2360 = vmul.f32 %v1379, %v2314
    %v2361 = vsub.f32 %v2359, %v1389
    %v2362 = vsub.f32 %v2360, %v1389
    %v2363 = vmul.f32 %v2361, 1.442695
    %v2364 = vpow.pop %v2363
    %v2365 = vmul.f32 %v2362, 1.442695
    %v2366 = vpow.pop %v2365
    %v2367 = vmul.f32 %v2364, %v2353
    %v2368 = vmul.f32 %v2366, %v2355
    %v2369 = vpack.c.bf16 %v2364, %v2364
    %v2370 = vpack.c.bf16 %v2366, %v2366
    %2371 = vmatprep.subr.bf16.mxu0 0
    %2372 = vmatpush1.bf16.msra.mxu0 %v1588
    %2373 = vmatprep.subr.bf16.mxu0 0
    %2374 = vmatpush1.bf16.msra.mxu0 %v1587
    %2375 = vmatprep.subr.bf16.mxu0 0
    %2376 = vmatpush1.bf16.msra.mxu0 %v1586
    %2377 = vmatprep.subr.bf16.mxu0 0
    %2378 = vmatpush1.bf16.msra.mxu0 %v1585
    %2379 = vmatprep.subr.bf16.mxu0 0
    %2380 = vmatpush1.bf16.msra.mxu0 %v1584
    %2381 = vmatprep.subr.bf16.mxu0 0
    %2382 = vmatpush1.bf16.msra.mxu0 %v1583
    %2383 = vmatprep.subr.bf16.mxu0 0
    %2384 = vmatpush1.bf16.msra.mxu0 %v1582
    %2385 = vmatprep.subr.bf16.mxu0 0
    %2386 = vmatpush1.bf16.msra.mxu0 %v1581
    %2387 = vmatprep.subr.bf16.mxu0 0
    %2388 = vmatpush2.bf16.msra.mxu0 %v1596
    %2389 = vmatprep.subr.bf16.mxu0 0
    %2390 = vmatpush2.bf16.msra.mxu0 %v1595
    %2391 = vmatprep.subr.bf16.mxu0 0
    %2392 = vmatpush2.bf16.msra.mxu0 %v1594
    %2393 = vmatprep.subr.bf16.mxu0 0
    %2394 = vmatpush2.bf16.msra.mxu0 %v1593
    %2395 = vmatprep.subr.bf16.mxu0 0
    %2396 = vmatpush2.bf16.msra.mxu0 %v1592
    %2397 = vmatprep.subr.bf16.mxu0 0
    %2398 = vmatpush2.bf16.msra.mxu0 %v1591
    %2399 = vmatprep.subr.bf16.mxu0 0
    %2400 = vmatpush2.bf16.msra.mxu0 %v1590
    %2401 = vmatprep.subr.bf16.mxu0 0
    %2402 = vmatpush2.bf16.msra.mxu0 %v1589
    %2403 = vmatprep.mubr.bf16.mxu0 %v2370
    %2404 = vmatmul.mubr.bf16.gmra.mxu0 %v2369
    %v2405 = vpop.f32.mrf.mxu0
    %v2406 = vadd.f32 0.0, %v2405
    %v2407 = vpop.f32.mrf.mxu0
    %v2408 = vpop.f32.mrf.mxu0
    %v2409 = vpop.f32.mrf.mxu0
    %2410 = vdwg.mxu0
    %v2411 = vpack.c.bf16 %v2367, %v2367
    %v2412 = vpack.c.bf16 %v2368, %v2368
    %2413 = vmatprep.subr.bf16.mxu0 0
    %2414 = vmatpush1.bf16.msra.mxu0 %v1588
    %2415 = vmatprep.subr.bf16.mxu0 0
    %2416 = vmatpush1.bf16.msra.mxu0 %v1587
    %2417 = vmatprep.subr.bf16.mxu0 0
    %2418 = vmatpush1.bf16.msra.mxu0 %v1586
    %2419 = vmatprep.subr.bf16.mxu0 0
    %2420 = vmatpush1.bf16.msra.mxu0 %v1585
    %2421 = vmatprep.subr.bf16.mxu0 0
    %2422 = vmatpush1.bf16.msra.mxu0 %v1584
    %2423 = vmatprep.subr.bf16.mxu0 0
    %2424 = vmatpush1.bf16.msra.mxu0 %v1583
    %2425 = vmatprep.subr.bf16.mxu0 0
    %2426 = vmatpush1.bf16.msra.mxu0 %v1582
    %2427 = vmatprep.subr.bf16.mxu0 0
    %2428 = vmatpush1.bf16.msra.mxu0 %v1581
    %2429 = vmatprep.subr.bf16.mxu0 0
    %2430 = vmatpush2.bf16.msra.mxu0 %v1596
    %2431 = vmatprep.subr.bf16.mxu0 0
    %2432 = vmatpush2.bf16.msra.mxu0 %v1595
    %2433 = vmatprep.subr.bf16.mxu0 0
    %2434 = vmatpush2.bf16.msra.mxu0 %v1594
    %2435 = vmatprep.subr.bf16.mxu0 0
    %2436 = vmatpush2.bf16.msra.mxu0 %v1593
    %2437 = vmatprep.subr.bf16.mxu0 0
    %2438 = vmatpush2.bf16.msra.mxu0 %v1592
    %2439 = vmatprep.subr.bf16.mxu0 0
    %2440 = vmatpush2.bf16.msra.mxu0 %v1591
    %2441 = vmatprep.subr.bf16.mxu0 0
    %2442 = vmatpush2.bf16.msra.mxu0 %v1590
    %2443 = vmatprep.subr.bf16.mxu0 0
    %2444 = vmatpush2.bf16.msra.mxu0 %v1589
    %2445 = vmatprep.mubr.bf16.mxu0 %v2412
    %2446 = vmatmul.mubr.bf16.gmra.mxu0 %v2411
    %v2447 = vpop.f32.mrf.mxu0
    %v2448 = vadd.f32 0.0, %v2447
    %v2449 = vpop.f32.mrf.mxu0
    %v2450 = vpop.f32.mrf.mxu0
    %v2451 = vpop.f32.mrf.mxu0
    %2452 = vdwg.mxu0
    %vm2453 = vcmp.gt.f32.partialorder %v2406, 0.0
    %v2454 = vsel %vm2453, %v2406, 1.0
    %v2455 = vrcp.pop %v2454
    %v2456 = vmul.f32 %v2454, %v2455
    %v2457 = vsub.f32 2.0, %v2456
    %v2458 = vmul.f32 %v2455, %v2457
    %v2459 = vmul.f32 %v2448, %v2458
    %v2460 = vadd.f32 %v2268, %v2459
    %2461 = vrot.lane.b32.xlu0 %v2271, 64
    %v2462 = vpop.permute.xlu0 %2461
    %v2464 = vsel %vm170, %v2462, 0
    %2466 = vmatprep.subr.bf16.mxu0 0
    %2467 = vmatpush1.bf16.msra.mxu0 0
    %2468 = vmatprep.subr.bf16.mxu0 0
    %2469 = vmatpush1.bf16.msra.mxu0 0
    %2470 = vmatprep.subr.bf16.mxu0 0
    %2471 = vmatpush1.bf16.msra.mxu0 0
    %2472 = vmatprep.subr.bf16.mxu0 0
    %2473 = vmatpush1.bf16.msra.mxu0 0
    %2474 = vmatprep.subr.bf16.mxu0 0
    %2475 = vmatpush1.bf16.msra.mxu0 0
    %2476 = vmatprep.subr.bf16.mxu0 0
    %2477 = vmatpush1.bf16.msra.mxu0 0
    %2478 = vmatprep.subr.bf16.mxu0 %v165
    %2479 = vmatpush1.bf16.msra.mxu0 %v164
    %2480 = vmatprep.subr.bf16.mxu0 %v163
    %2481 = vmatpush1.bf16.msra.mxu0 %v162
    %2482 = vmatprep.subr.bf16.mxu0 0
    %2483 = vmatpush2.bf16.msra.mxu0 0
    %2484 = vmatprep.subr.bf16.mxu0 0
    %2485 = vmatpush2.bf16.msra.mxu0 0
    %2486 = vmatprep.subr.bf16.mxu0 0
    %2487 = vmatpush2.bf16.msra.mxu0 0
    %2488 = vmatprep.subr.bf16.mxu0 0
    %2489 = vmatpush2.bf16.msra.mxu0 0
    %2490 = vmatprep.subr.bf16.mxu0 0
    %2491 = vmatpush2.bf16.msra.mxu0 0
    %2492 = vmatprep.subr.bf16.mxu0 0
    %2493 = vmatpush2.bf16.msra.mxu0 0
    %2494 = vmatprep.subr.bf16.mxu0 0
    %2495 = vmatpush2.bf16.msra.mxu0 0
    %2496 = vmatprep.subr.bf16.mxu0 0
    %2497 = vmatpush2.bf16.msra.mxu0 0
    %2498 = vmatprep.mubr.bf16.mxu0 0
    %2499 = vmatmul.mubr.bf16.gmra.mxu0 %v2464
    %v2500 = vpop.f32.mrf.mxu0
    %v2501 = vadd.f32 0.0, %v2500
    %v2502 = vpop.f32.mrf.mxu0
    %v2503 = vadd.f32 0.0, %v2502
    %v2504 = vpop.f32.mrf.mxu0
    %v2505 = vpop.f32.mrf.mxu0
    %2506 = vdwg.mxu0
    %v2507 = vand.u32 2147483647, %v2501
    %v2508 = vand.u32 2147483647, %v2503
    %v2509 = vmax.f32 %v2507, %v2508
    %2510 = vmax.xlane.f32.xlu0 %v2509
    %v2511 = vpop.xlane.xlu0 %2510
    %v2512 = vmul.f32 %v2511, %v221
    %v2513 = vmin.f32 %v2512, 80.0
    %s2514 = scalar_lea.vmem [#allocation9], 256
    %v2515 = vld [vmem:[%s2514] sm:$0xf]
    %v2516 = vld [vmem:[%s2514 + $0x4] sm:$0xf]
    %v2517 = vld [vmem:[%s2514 + $0x8] sm:$0xf]
    %v2518 = vld [vmem:[%s2514 + $0xc] sm:$0xf]
    %v2519 = vld [vmem:[%s2514 + $0x10] sm:$0xf]
    %v2520 = vld [vmem:[%s2514 + $0x14] sm:$0xf]
    %v2521 = vld [vmem:[%s2514 + $0x18] sm:$0xf]
    %v2522 = vld [vmem:[%s2514 + $0x1c] sm:$0xf]
    %v2523 = vld [vmem:[%s2514 + $0x20] sm:$0xf]
    %v2524 = vld [vmem:[%s2514 + $0x24] sm:$0xf]
    %v2525 = vld [vmem:[%s2514 + $0x28] sm:$0xf]
    %v2526 = vld [vmem:[%s2514 + $0x2c] sm:$0xf]
    %v2527 = vld [vmem:[%s2514 + $0x30] sm:$0xf]
    %v2528 = vld [vmem:[%s2514 + $0x34] sm:$0xf]
    %v2529 = vld [vmem:[%s2514 + $0x38] sm:$0xf]
    %v2530 = vld [vmem:[%s2514 + $0x3c] sm:$0xf]
    %v2531 = vld [vmem:[%s2514 + $0x40] sm:$0xf]
    %v2532 = vld [vmem:[%s2514 + $0x44] sm:$0xf]
    %v2533 = vld [vmem:[%s2514 + $0x48] sm:$0xf]
    %v2534 = vld [vmem:[%s2514 + $0x4c] sm:$0xf]
    %v2535 = vld [vmem:[%s2514 + $0x50] sm:$0xf]
    %v2536 = vld [vmem:[%s2514 + $0x54] sm:$0xf]
    %v2537 = vld [vmem:[%s2514 + $0x58] sm:$0xf]
    %v2538 = vld [vmem:[%s2514 + $0x5c] sm:$0xf]
    %v2539 = vld [vmem:[%s2514 + $0x60] sm:$0xf]
    %v2540 = vld [vmem:[%s2514 + $0x64] sm:$0xf]
    %v2541 = vld [vmem:[%s2514 + $0x68] sm:$0xf]
    %v2542 = vld [vmem:[%s2514 + $0x6c] sm:$0xf]
    %v2543 = vld [vmem:[%s2514 + $0x70] sm:$0xf]
    %v2544 = vld [vmem:[%s2514 + $0x74] sm:$0xf]
    %v2545 = vld [vmem:[%s2514 + $0x78] sm:$0xf]
    %v2546 = vld [vmem:[%s2514 + $0x7c] sm:$0xf]
    %2547 = vmatprep.subr.bf16.mxu0 0
    %2548 = vmatpush1.bf16.msra.mxu0 0
    %2549 = vmatprep.subr.bf16.mxu0 0
    %2550 = vmatpush1.bf16.msra.mxu0 0
    %2551 = vmatprep.subr.bf16.mxu0 0
    %2552 = vmatpush1.bf16.msra.mxu0 0
    %2553 = vmatprep.subr.bf16.mxu0 0
    %2554 = vmatpush1.bf16.msra.mxu0 0
    %2555 = vmatprep.subr.bf16.mxu0 0
    %2556 = vmatpush1.bf16.msra.mxu0 0
    %2557 = vmatprep.subr.bf16.mxu0 0
    %2558 = vmatpush1.bf16.msra.mxu0 0
    %2559 = vmatprep.subr.bf16.mxu0 %v285
    %2560 = vmatpush1.bf16.msra.mxu0 %v284
    %2561 = vmatprep.subr.bf16.mxu0 %v281
    %2562 = vmatpush1.bf16.msra.mxu0 %v280
    %2563 = vmatprep.subr.bf16.mxu0 0
    %2564 = vmatpush2.bf16.msra.mxu0 0
    %2565 = vmatprep.subr.bf16.mxu0 0
    %2566 = vmatpush2.bf16.msra.mxu0 0
    %2567 = vmatprep.subr.bf16.mxu0 0
    %2568 = vmatpush2.bf16.msra.mxu0 0
    %2569 = vmatprep.subr.bf16.mxu0 0
    %2570 = vmatpush2.bf16.msra.mxu0 0
    %2571 = vmatprep.subr.bf16.mxu0 0
    %2572 = vmatpush2.bf16.msra.mxu0 0
    %2573 = vmatprep.subr.bf16.mxu0 0
    %2574 = vmatpush2.bf16.msra.mxu0 0
    %2575 = vmatprep.subr.bf16.mxu0 0
    %2576 = vmatpush2.bf16.msra.mxu0 0
    %2577 = vmatprep.subr.bf16.mxu0 0
    %2578 = vmatpush2.bf16.msra.mxu0 0
    %2579 = vmatprep.mubr.bf16.mxu0 0
    %2580 = vmatmul.mubr.bf16.gmra.mxu0 %v2464
    %v2581 = vpop.f32.mrf.mxu0
    %v2582 = vadd.f32 0.0, %v2581
    %v2583 = vpop.f32.mrf.mxu0
    %v2584 = vadd.f32 0.0, %v2583
    %v2585 = vpop.f32.mrf.mxu0
    %v2586 = vpop.f32.mrf.mxu0
    %2587 = vdwg.mxu0
    %2588 = vmatprep.subr.bf16.mxu0 0
    %2589 = vmatpush1.bf16.msra.mxu0 0
    %2590 = vmatprep.subr.bf16.mxu0 0
    %2591 = vmatpush1.bf16.msra.mxu0 0
    %2592 = vmatprep.subr.bf16.mxu0 0
    %2593 = vmatpush1.bf16.msra.mxu0 0
    %2594 = vmatprep.subr.bf16.mxu0 0
    %2595 = vmatpush1.bf16.msra.mxu0 0
    %2596 = vmatprep.subr.bf16.mxu0 0
    %2597 = vmatpush1.bf16.msra.mxu0 0
    %2598 = vmatprep.subr.bf16.mxu0 0
    %2599 = vmatpush1.bf16.msra.mxu0 0
    %2600 = vmatprep.subr.bf16.mxu0 %v287
    %2601 = vmatpush1.bf16.msra.mxu0 %v286
    %2602 = vmatprep.subr.bf16.mxu0 %v283
    %2603 = vmatpush1.bf16.msra.mxu0 %v282
    %2604 = vmatprep.subr.bf16.mxu0 0
    %2605 = vmatpush2.bf16.msra.mxu0 0
    %2606 = vmatprep.subr.bf16.mxu0 0
    %2607 = vmatpush2.bf16.msra.mxu0 0
    %2608 = vmatprep.subr.bf16.mxu0 0
    %2609 = vmatpush2.bf16.msra.mxu0 0
    %2610 = vmatprep.subr.bf16.mxu0 0
    %2611 = vmatpush2.bf16.msra.mxu0 0
    %2612 = vmatprep.subr.bf16.mxu0 0
    %2613 = vmatpush2.bf16.msra.mxu0 0
    %2614 = vmatprep.subr.bf16.mxu0 0
    %2615 = vmatpush2.bf16.msra.mxu0 0
    %2616 = vmatprep.subr.bf16.mxu0 0
    %2617 = vmatpush2.bf16.msra.mxu0 0
    %2618 = vmatprep.subr.bf16.mxu0 0
    %2619 = vmatpush2.bf16.msra.mxu0 0
    %2620 = vmatprep.mubr.bf16.mxu0 0
    %2621 = vmatmul.mubr.bf16.gmra.mxu0 %v2464
    %v2622 = vpop.f32.mrf.mxu0
    %v2623 = vadd.f32 0.0, %v2622
    %v2624 = vpop.f32.mrf.mxu0
    %v2625 = vadd.f32 0.0, %v2624
    %v2626 = vpop.f32.mrf.mxu0
    %v2627 = vpop.f32.mrf.mxu0
    %2628 = vdwg.mxu0
    %v2629 = vmul.f32 %v2501, %v2582
    %v2630 = vmul.f32 %v2503, %v2584
    %v2631 = vsub.f32 %v2629, %v2513
    %v2632 = vsub.f32 %v2630, %v2513
    %v2633 = vmul.f32 %v2631, 1.442695
    %v2634 = vpow.pop %v2633
    %v2635 = vmul.f32 %v2632, 1.442695
    %v2636 = vpow.pop %v2635
    %v2637 = vmul.f32 %v2634, %v2623
    %v2638 = vmul.f32 %v2636, %v2625
    %v2639 = vpack.c.bf16 %v2634, %v2634
    %v2640 = vpack.c.bf16 %v2636, %v2636
    %v2673 = vunpack.c.l.b16 %v2515
    %v2674 = vunpack.c.l.b16 %v2516
    %v2675 = vunpack.c.l.b16 %v2517
    %v2676 = vunpack.c.l.b16 %v2518
    %v2677 = vunpack.c.l.b16 %v2519
    %v2678 = vunpack.c.l.b16 %v2520
    %v2679 = vunpack.c.l.b16 %v2521
    %v2680 = vunpack.c.l.b16 %v2522
    %v2681 = vunpack.c.l.b16 %v2523
    %v2682 = vunpack.c.l.b16 %v2524
    %v2683 = vunpack.c.l.b16 %v2525
    %v2684 = vunpack.c.l.b16 %v2526
    %v2685 = vunpack.c.l.b16 %v2527
    %v2686 = vunpack.c.l.b16 %v2528
    %v2687 = vunpack.c.l.b16 %v2529
    %v2688 = vunpack.c.l.b16 %v2530
    %v2689 = vunpack.c.l.b16 %v2531
    %v2690 = vunpack.c.l.b16 %v2532
    %v2691 = vunpack.c.l.b16 %v2533
    %v2692 = vunpack.c.l.b16 %v2534
    %v2693 = vunpack.c.l.b16 %v2535
    %v2694 = vunpack.c.l.b16 %v2536
    %v2695 = vunpack.c.l.b16 %v2537
    %v2696 = vunpack.c.l.b16 %v2538
    %v2697 = vunpack.c.l.b16 %v2539
    %v2698 = vunpack.c.l.b16 %v2540
    %v2699 = vunpack.c.l.b16 %v2541
    %v2700 = vunpack.c.l.b16 %v2542
    %v2701 = vunpack.c.l.b16 %v2543
    %v2702 = vunpack.c.l.b16 %v2544
    %v2703 = vunpack.c.l.b16 %v2545
    %v2704 = vunpack.c.l.b16 %v2546
    %v2705 = vpack.c.b16 %v2674, %v2673
    %v2706 = vpack.c.b16 %v2676, %v2675
    %v2707 = vpack.c.b16 %v2678, %v2677
    %v2708 = vpack.c.b16 %v2680, %v2679
    %v2709 = vpack.c.b16 %v2682, %v2681
    %v2710 = vpack.c.b16 %v2684, %v2683
    %v2711 = vpack.c.b16 %v2686, %v2685
    %v2712 = vpack.c.b16 %v2688, %v2687
    %v2713 = vpack.c.b16 %v2690, %v2689
    %v2714 = vpack.c.b16 %v2692, %v2691
    %v2715 = vpack.c.b16 %v2694, %v2693
    %v2716 = vpack.c.b16 %v2696, %v2695
    %v2717 = vpack.c.b16 %v2698, %v2697
    %v2718 = vpack.c.b16 %v2700, %v2699
    %v2719 = vpack.c.b16 %v2702, %v2701
    %v2720 = vpack.c.b16 %v2704, %v2703
    %2737 = vmatprep.subr.bf16.mxu0 0
    %2738 = vmatpush1.bf16.msra.mxu0 %v2712
    %2739 = vmatprep.subr.bf16.mxu0 0
    %2740 = vmatpush1.bf16.msra.mxu0 %v2711
    %2741 = vmatprep.subr.bf16.mxu0 0
    %2742 = vmatpush1.bf16.msra.mxu0 %v2710
    %2743 = vmatprep.subr.bf16.mxu0 0
    %2744 = vmatpush1.bf16.msra.mxu0 %v2709
    %2745 = vmatprep.subr.bf16.mxu0 0
    %2746 = vmatpush1.bf16.msra.mxu0 %v2708
    %2747 = vmatprep.subr.bf16.mxu0 0
    %2748 = vmatpush1.bf16.msra.mxu0 %v2707
    %2749 = vmatprep.subr.bf16.mxu0 0
    %2750 = vmatpush1.bf16.msra.mxu0 %v2706
    %2751 = vmatprep.subr.bf16.mxu0 0
    %2752 = vmatpush1.bf16.msra.mxu0 %v2705
    %2753 = vmatprep.subr.bf16.mxu0 0
    %2754 = vmatpush2.bf16.msra.mxu0 %v2720
    %2755 = vmatprep.subr.bf16.mxu0 0
    %2756 = vmatpush2.bf16.msra.mxu0 %v2719
    %2757 = vmatprep.subr.bf16.mxu0 0
    %2758 = vmatpush2.bf16.msra.mxu0 %v2718
    %2759 = vmatprep.subr.bf16.mxu0 0
    %2760 = vmatpush2.bf16.msra.mxu0 %v2717
    %2761 = vmatprep.subr.bf16.mxu0 0
    %2762 = vmatpush2.bf16.msra.mxu0 %v2716
    %2763 = vmatprep.subr.bf16.mxu0 0
    %2764 = vmatpush2.bf16.msra.mxu0 %v2715
    %2765 = vmatprep.subr.bf16.mxu0 0
    %2766 = vmatpush2.bf16.msra.mxu0 %v2714
    %2767 = vmatprep.subr.bf16.mxu0 0
    %2768 = vmatpush2.bf16.msra.mxu0 %v2713
    %2769 = vmatprep.mubr.bf16.mxu0 %v2640
    %2770 = vmatmul.mubr.bf16.gmra.mxu0 %v2639
    %v2771 = vpop.f32.mrf.mxu0
    %v2772 = vadd.f32 0.0, %v2771
    %v2773 = vpop.f32.mrf.mxu0
    %v2774 = vpop.f32.mrf.mxu0
    %v2775 = vpop.f32.mrf.mxu0
    %2776 = vdwg.mxu0
    %v2777 = vpack.c.bf16 %v2637, %v2637
    %v2778 = vpack.c.bf16 %v2638, %v2638
    %2779 = vmatprep.subr.bf16.mxu0 0
    %2780 = vmatpush1.bf16.msra.mxu0 %v2712
    %2781 = vmatprep.subr.bf16.mxu0 0
    %2782 = vmatpush1.bf16.msra.mxu0 %v2711
    %2783 = vmatprep.subr.bf16.mxu0 0
    %2784 = vmatpush1.bf16.msra.mxu0 %v2710
    %2785 = vmatprep.subr.bf16.mxu0 0
    %2786 = vmatpush1.bf16.msra.mxu0 %v2709
    %2787 = vmatprep.subr.bf16.mxu0 0
    %2788 = vmatpush1.bf16.msra.mxu0 %v2708
    %2789 = vmatprep.subr.bf16.mxu0 0
    %2790 = vmatpush1.bf16.msra.mxu0 %v2707
    %2791 = vmatprep.subr.bf16.mxu0 0
    %2792 = vmatpush1.bf16.msra.mxu0 %v2706
    %2793 = vmatprep.subr.bf16.mxu0 0
    %2794 = vmatpush1.bf16.msra.mxu0 %v2705
    %2795 = vmatprep.subr.bf16.mxu0 0
    %2796 = vmatpush2.bf16.msra.mxu0 %v2720
    %2797 = vmatprep.subr.bf16.mxu0 0
    %2798 = vmatpush2.bf16.msra.mxu0 %v2719
    %2799 = vmatprep.subr.bf16.mxu0 0
    %2800 = vmatpush2.bf16.msra.mxu0 %v2718
    %2801 = vmatprep.subr.bf16.mxu0 0
    %2802 = vmatpush2.bf16.msra.mxu0 %v2717
    %2803 = vmatprep.subr.bf16.mxu0 0
    %2804 = vmatpush2.bf16.msra.mxu0 %v2716
    %2805 = vmatprep.subr.bf16.mxu0 0
    %2806 = vmatpush2.bf16.msra.mxu0 %v2715
    %2807 = vmatprep.subr.bf16.mxu0 0
    %2808 = vmatpush2.bf16.msra.mxu0 %v2714
    %2809 = vmatprep.subr.bf16.mxu0 0
    %2810 = vmatpush2.bf16.msra.mxu0 %v2713
    %2811 = vmatprep.mubr.bf16.mxu0 %v2778
    %2812 = vmatmul.mubr.bf16.gmra.mxu0 %v2777
    %v2813 = vpop.f32.mrf.mxu0
    %v2814 = vadd.f32 0.0, %v2813
    %v2815 = vpop.f32.mrf.mxu0
    %v2816 = vpop.f32.mrf.mxu0
    %v2817 = vpop.f32.mrf.mxu0
    %2818 = vdwg.mxu0
    %vm2819 = vcmp.gt.f32.partialorder %v2772, 0.0
    %v2820 = vsel %vm2819, %v2772, 1.0
    %v2821 = vrcp.pop %v2820
    %v2822 = vmul.f32 %v2820, %v2821
    %v2823 = vsub.f32 2.0, %v2822
    %v2824 = vmul.f32 %v2821, %v2823
    %v2825 = vmul.f32 %v2814, %v2824
    %v2826 = vadd.f32 %v2460, %v2825
    %2827 = vrot.lane.b32.xlu0 %v2271, 32
    %v2828 = vpop.permute.xlu0 %2827
    %v2830 = vsel %vm170, %v2828, 0
    %2832 = vmatprep.subr.bf16.mxu0 0
    %2833 = vmatpush1.bf16.msra.mxu0 0
    %2834 = vmatprep.subr.bf16.mxu0 0
    %2835 = vmatpush1.bf16.msra.mxu0 0
    %2836 = vmatprep.subr.bf16.mxu0 0
    %2837 = vmatpush1.bf16.msra.mxu0 0
    %2838 = vmatprep.subr.bf16.mxu0 0
    %2839 = vmatpush1.bf16.msra.mxu0 0
    %2840 = vmatprep.subr.bf16.mxu0 0
    %2841 = vmatpush1.bf16.msra.mxu0 0
    %2842 = vmatprep.subr.bf16.mxu0 0
    %2843 = vmatpush1.bf16.msra.mxu0 0
    %2844 = vmatprep.subr.bf16.mxu0 %v285
    %2845 = vmatpush1.bf16.msra.mxu0 %v284
    %2846 = vmatprep.subr.bf16.mxu0 %v281
    %2847 = vmatpush1.bf16.msra.mxu0 %v280
    %2848 = vmatprep.subr.bf16.mxu0 0
    %2849 = vmatpush2.bf16.msra.mxu0 0
    %2850 = vmatprep.subr.bf16.mxu0 0
    %2851 = vmatpush2.bf16.msra.mxu0 0
    %2852 = vmatprep.subr.bf16.mxu0 0
    %2853 = vmatpush2.bf16.msra.mxu0 0
    %2854 = vmatprep.subr.bf16.mxu0 0
    %2855 = vmatpush2.bf16.msra.mxu0 0
    %2856 = vmatprep.subr.bf16.mxu0 0
    %2857 = vmatpush2.bf16.msra.mxu0 0
    %2858 = vmatprep.subr.bf16.mxu0 0
    %2859 = vmatpush2.bf16.msra.mxu0 0
    %2860 = vmatprep.subr.bf16.mxu0 0
    %2861 = vmatpush2.bf16.msra.mxu0 0
    %2862 = vmatprep.subr.bf16.mxu0 0
    %2863 = vmatpush2.bf16.msra.mxu0 0
    %2864 = vmatprep.mubr.bf16.mxu0 0
    %2865 = vmatmul.mubr.bf16.gmra.mxu0 %v2830
    %v2866 = vpop.f32.mrf.mxu0
    %v2867 = vadd.f32 0.0, %v2866
    %v2868 = vpop.f32.mrf.mxu0
    %v2869 = vadd.f32 0.0, %v2868
    %v2870 = vpop.f32.mrf.mxu0
    %v2871 = vpop.f32.mrf.mxu0
    %2872 = vdwg.mxu0
    %2873 = vmatprep.subr.bf16.mxu0 0
    %2874 = vmatpush1.bf16.msra.mxu0 0
    %2875 = vmatprep.subr.bf16.mxu0 0
    %2876 = vmatpush1.bf16.msra.mxu0 0
    %2877 = vmatprep.subr.bf16.mxu0 0
    %2878 = vmatpush1.bf16.msra.mxu0 0
    %2879 = vmatprep.subr.bf16.mxu0 0
    %2880 = vmatpush1.bf16.msra.mxu0 0
    %2881 = vmatprep.subr.bf16.mxu0 0
    %2882 = vmatpush1.bf16.msra.mxu0 0
    %2883 = vmatprep.subr.bf16.mxu0 0
    %2884 = vmatpush1.bf16.msra.mxu0 0
    %2885 = vmatprep.subr.bf16.mxu0 %v287
    %2886 = vmatpush1.bf16.msra.mxu0 %v286
    %2887 = vmatprep.subr.bf16.mxu0 %v283
    %2888 = vmatpush1.bf16.msra.mxu0 %v282
    %2889 = vmatprep.subr.bf16.mxu0 0
    %2890 = vmatpush2.bf16.msra.mxu0 0
    %2891 = vmatprep.subr.bf16.mxu0 0
    %2892 = vmatpush2.bf16.msra.mxu0 0
    %2893 = vmatprep.subr.bf16.mxu0 0
    %2894 = vmatpush2.bf16.msra.mxu0 0
    %2895 = vmatprep.subr.bf16.mxu0 0
    %2896 = vmatpush2.bf16.msra.mxu0 0
    %2897 = vmatprep.subr.bf16.mxu0 0
    %2898 = vmatpush2.bf16.msra.mxu0 0
    %2899 = vmatprep.subr.bf16.mxu0 0
    %2900 = vmatpush2.bf16.msra.mxu0 0
    %2901 = vmatprep.subr.bf16.mxu0 0
    %2902 = vmatpush2.bf16.msra.mxu0 0
    %2903 = vmatprep.subr.bf16.mxu0 0
    %2904 = vmatpush2.bf16.msra.mxu0 0
    %2905 = vmatprep.mubr.bf16.mxu0 0
    %2906 = vmatmul.mubr.bf16.gmra.mxu0 %v2830
    %v2907 = vpop.f32.mrf.mxu0
    %v2908 = vadd.f32 0.0, %v2907
    %v2909 = vpop.f32.mrf.mxu0
    %v2910 = vadd.f32 0.0, %v2909
    %v2911 = vpop.f32.mrf.mxu0
    %v2912 = vpop.f32.mrf.mxu0
    %2913 = vdwg.mxu0
    %v2914 = vmul.f32 %v2501, %v2867
    %v2915 = vmul.f32 %v2503, %v2869
    %v2916 = vsub.f32 %v2914, %v2513
    %v2917 = vsub.f32 %v2915, %v2513
    %v2918 = vmul.f32 %v2916, 1.442695
    %v2919 = vpow.pop %v2918
    %v2920 = vmul.f32 %v2917, 1.442695
    %v2921 = vpow.pop %v2920
    %v2922 = vmul.f32 %v2919, %v2908
    %v2923 = vmul.f32 %v2921, %v2910
    %v2924 = vpack.c.bf16 %v2919, %v2919
    %v2925 = vpack.c.bf16 %v2921, %v2921
    %2926 = vmatprep.subr.bf16.mxu0 0
    %2927 = vmatpush1.bf16.msra.mxu0 %v2712
    %2928 = vmatprep.subr.bf16.mxu0 0
    %2929 = vmatpush1.bf16.msra.mxu0 %v2711
    %2930 = vmatprep.subr.bf16.mxu0 0
    %2931 = vmatpush1.bf16.msra.mxu0 %v2710
    %2932 = vmatprep.subr.bf16.mxu0 0
    %2933 = vmatpush1.bf16.msra.mxu0 %v2709
    %2934 = vmatprep.subr.bf16.mxu0 0
    %2935 = vmatpush1.bf16.msra.mxu0 %v2708
    %2936 = vmatprep.subr.bf16.mxu0 0
    %2937 = vmatpush1.bf16.msra.mxu0 %v2707
    %2938 = vmatprep.subr.bf16.mxu0 0
    %2939 = vmatpush1.bf16.msra.mxu0 %v2706
    %2940 = vmatprep.subr.bf16.mxu0 0
    %2941 = vmatpush1.bf16.msra.mxu0 %v2705
    %2942 = vmatprep.subr.bf16.mxu0 0
    %2943 = vmatpush2.bf16.msra.mxu0 %v2720
    %2944 = vmatprep.subr.bf16.mxu0 0
    %2945 = vmatpush2.bf16.msra.mxu0 %v2719
    %2946 = vmatprep.subr.bf16.mxu0 0
    %2947 = vmatpush2.bf16.msra.mxu0 %v2718
    %2948 = vmatprep.subr.bf16.mxu0 0
    %2949 = vmatpush2.bf16.msra.mxu0 %v2717
    %2950 = vmatprep.subr.bf16.mxu0 0
    %2951 = vmatpush2.bf16.msra.mxu0 %v2716
    %2952 = vmatprep.subr.bf16.mxu0 0
    %2953 = vmatpush2.bf16.msra.mxu0 %v2715
    %2954 = vmatprep.subr.bf16.mxu0 0
    %2955 = vmatpush2.bf16.msra.mxu0 %v2714
    %2956 = vmatprep.subr.bf16.mxu0 0
    %2957 = vmatpush2.bf16.msra.mxu0 %v2713
    %2958 = vmatprep.mubr.bf16.mxu0 %v2925
    %2959 = vmatmul.mubr.bf16.gmra.mxu0 %v2924
    %v2960 = vpop.f32.mrf.mxu0
    %v2961 = vadd.f32 0.0, %v2960
    %v2962 = vpop.f32.mrf.mxu0
    %v2963 = vpop.f32.mrf.mxu0
    %v2964 = vpop.f32.mrf.mxu0
    %2965 = vdwg.mxu0
    %v2966 = vpack.c.bf16 %v2922, %v2922
    %v2967 = vpack.c.bf16 %v2923, %v2923
    %2968 = vmatprep.subr.bf16.mxu0 0
    %2969 = vmatpush1.bf16.msra.mxu0 %v2712
    %2970 = vmatprep.subr.bf16.mxu0 0
    %2971 = vmatpush1.bf16.msra.mxu0 %v2711
    %2972 = vmatprep.subr.bf16.mxu0 0
    %2973 = vmatpush1.bf16.msra.mxu0 %v2710
    %2974 = vmatprep.subr.bf16.mxu0 0
    %2975 = vmatpush1.bf16.msra.mxu0 %v2709
    %2976 = vmatprep.subr.bf16.mxu0 0
    %2977 = vmatpush1.bf16.msra.mxu0 %v2708
    %2978 = vmatprep.subr.bf16.mxu0 0
    %2979 = vmatpush1.bf16.msra.mxu0 %v2707
    %2980 = vmatprep.subr.bf16.mxu0 0
    %2981 = vmatpush1.bf16.msra.mxu0 %v2706
    %2982 = vmatprep.subr.bf16.mxu0 0
    %2983 = vmatpush1.bf16.msra.mxu0 %v2705
    %2984 = vmatprep.subr.bf16.mxu0 0
    %2985 = vmatpush2.bf16.msra.mxu0 %v2720
    %2986 = vmatprep.subr.bf16.mxu0 0
    %2987 = vmatpush2.bf16.msra.mxu0 %v2719
    %2988 = vmatprep.subr.bf16.mxu0 0
    %2989 = vmatpush2.bf16.msra.mxu0 %v2718
    %2990 = vmatprep.subr.bf16.mxu0 0
    %2991 = vmatpush2.bf16.msra.mxu0 %v2717
    %2992 = vmatprep.subr.bf16.mxu0 0
    %2993 = vmatpush2.bf16.msra.mxu0 %v2716
    %2994 = vmatprep.subr.bf16.mxu0 0
    %2995 = vmatpush2.bf16.msra.mxu0 %v2715
    %2996 = vmatprep.subr.bf16.mxu0 0
    %2997 = vmatpush2.bf16.msra.mxu0 %v2714
    %2998 = vmatprep.subr.bf16.mxu0 0
    %2999 = vmatpush2.bf16.msra.mxu0 %v2713
    %3000 = vmatprep.mubr.bf16.mxu0 %v2967
    %3001 = vmatmul.mubr.bf16.gmra.mxu0 %v2966
    %v3002 = vpop.f32.mrf.mxu0
    %v3003 = vadd.f32 0.0, %v3002
    %v3004 = vpop.f32.mrf.mxu0
    %v3005 = vpop.f32.mrf.mxu0
    %v3006 = vpop.f32.mrf.mxu0
    %3007 = vdwg.mxu0
    %vm3008 = vcmp.gt.f32.partialorder %v2961, 0.0
    %v3009 = vsel %vm3008, %v2961, 1.0
    %v3010 = vrcp.pop %v3009
    %v3011 = vmul.f32 %v3009, %v3010
    %v3012 = vsub.f32 2.0, %v3011
    %v3013 = vmul.f32 %v3010, %v3012
    %v3014 = vmul.f32 %v3003, %v3013
    %v3015 = vadd.f32 %v2826, %v3014
    %v3016 = vld [vmem:[#allocation3 + $0xc] sm:$0xf]
    %v3018 = vsel %vm170, %v3016, 0
    %3020 = vmatprep.subr.bf16.mxu0 0
    %3021 = vmatpush1.bf16.msra.mxu0 0
    %3022 = vmatprep.subr.bf16.mxu0 0
    %3023 = vmatpush1.bf16.msra.mxu0 0
    %3024 = vmatprep.subr.bf16.mxu0 0
    %3025 = vmatpush1.bf16.msra.mxu0 0
    %3026 = vmatprep.subr.bf16.mxu0 0
    %3027 = vmatpush1.bf16.msra.mxu0 0
    %3028 = vmatprep.subr.bf16.mxu0 0
    %3029 = vmatpush1.bf16.msra.mxu0 0
    %3030 = vmatprep.subr.bf16.mxu0 0
    %3031 = vmatpush1.bf16.msra.mxu0 0
    %3032 = vmatprep.subr.bf16.mxu0 %v285
    %3033 = vmatpush1.bf16.msra.mxu0 %v284
    %3034 = vmatprep.subr.bf16.mxu0 %v281
    %3035 = vmatpush1.bf16.msra.mxu0 %v280
    %3036 = vmatprep.subr.bf16.mxu0 0
    %3037 = vmatpush2.bf16.msra.mxu0 0
    %3038 = vmatprep.subr.bf16.mxu0 0
    %3039 = vmatpush2.bf16.msra.mxu0 0
    %3040 = vmatprep.subr.bf16.mxu0 0
    %3041 = vmatpush2.bf16.msra.mxu0 0
    %3042 = vmatprep.subr.bf16.mxu0 0
    %3043 = vmatpush2.bf16.msra.mxu0 0
    %3044 = vmatprep.subr.bf16.mxu0 0
    %3045 = vmatpush2.bf16.msra.mxu0 0
    %3046 = vmatprep.subr.bf16.mxu0 0
    %3047 = vmatpush2.bf16.msra.mxu0 0
    %3048 = vmatprep.subr.bf16.mxu0 0
    %3049 = vmatpush2.bf16.msra.mxu0 0
    %3050 = vmatprep.subr.bf16.mxu0 0
    %3051 = vmatpush2.bf16.msra.mxu0 0
    %3052 = vmatprep.mubr.bf16.mxu0 0
    %3053 = vmatmul.mubr.bf16.gmra.mxu0 %v3018
    %v3054 = vpop.f32.mrf.mxu0
    %v3055 = vadd.f32 0.0, %v3054
    %v3056 = vpop.f32.mrf.mxu0
    %v3057 = vadd.f32 0.0, %v3056
    %v3058 = vpop.f32.mrf.mxu0
    %v3059 = vpop.f32.mrf.mxu0
    %3060 = vdwg.mxu0
    %3061 = vmatprep.subr.bf16.mxu0 0
    %3062 = vmatpush1.bf16.msra.mxu0 0
    %3063 = vmatprep.subr.bf16.mxu0 0
    %3064 = vmatpush1.bf16.msra.mxu0 0
    %3065 = vmatprep.subr.bf16.mxu0 0
    %3066 = vmatpush1.bf16.msra.mxu0 0
    %3067 = vmatprep.subr.bf16.mxu0 0
    %3068 = vmatpush1.bf16.msra.mxu0 0
    %3069 = vmatprep.subr.bf16.mxu0 0
    %3070 = vmatpush1.bf16.msra.mxu0 0
    %3071 = vmatprep.subr.bf16.mxu0 0
    %3072 = vmatpush1.bf16.msra.mxu0 0
    %3073 = vmatprep.subr.bf16.mxu0 %v287
    %3074 = vmatpush1.bf16.msra.mxu0 %v286
    %3075 = vmatprep.subr.bf16.mxu0 %v283
    %3076 = vmatpush1.bf16.msra.mxu0 %v282
    %3077 = vmatprep.subr.bf16.mxu0 0
    %3078 = vmatpush2.bf16.msra.mxu0 0
    %3079 = vmatprep.subr.bf16.mxu0 0
    %3080 = vmatpush2.bf16.msra.mxu0 0
    %3081 = vmatprep.subr.bf16.mxu0 0
    %3082 = vmatpush2.bf16.msra.mxu0 0
    %3083 = vmatprep.subr.bf16.mxu0 0
    %3084 = vmatpush2.bf16.msra.mxu0 0
    %3085 = vmatprep.subr.bf16.mxu0 0
    %3086 = vmatpush2.bf16.msra.mxu0 0
    %3087 = vmatprep.subr.bf16.mxu0 0
    %3088 = vmatpush2.bf16.msra.mxu0 0
    %3089 = vmatprep.subr.bf16.mxu0 0
    %3090 = vmatpush2.bf16.msra.mxu0 0
    %3091 = vmatprep.subr.bf16.mxu0 0
    %3092 = vmatpush2.bf16.msra.mxu0 0
    %3093 = vmatprep.mubr.bf16.mxu0 0
    %3094 = vmatmul.mubr.bf16.gmra.mxu0 %v3018
    %v3095 = vpop.f32.mrf.mxu0
    %v3096 = vadd.f32 0.0, %v3095
    %v3097 = vpop.f32.mrf.mxu0
    %v3098 = vadd.f32 0.0, %v3097
    %v3099 = vpop.f32.mrf.mxu0
    %v3100 = vpop.f32.mrf.mxu0
    %3101 = vdwg.mxu0
    %v3102 = vmul.f32 %v2501, %v3055
    %v3103 = vmul.f32 %v2503, %v3057
    %v3104 = vsub.f32 %v3102, %v2513
    %v3105 = vsub.f32 %v3103, %v2513
    %v3106 = vmul.f32 %v3104, 1.442695
    %v3107 = vpow.pop %v3106
    %v3108 = vmul.f32 %v3105, 1.442695
    %v3109 = vpow.pop %v3108
    %v3110 = vmul.f32 %v3107, %v3096
    %v3111 = vmul.f32 %v3109, %v3098
    %v3112 = vpack.c.bf16 %v3107, %v3107
    %v3113 = vpack.c.bf16 %v3109, %v3109
    %3114 = vmatprep.subr.bf16.mxu0 0
    %3115 = vmatpush1.bf16.msra.mxu0 %v2712
    %3116 = vmatprep.subr.bf16.mxu0 0
    %3117 = vmatpush1.bf16.msra.mxu0 %v2711
    %3118 = vmatprep.subr.bf16.mxu0 0
    %3119 = vmatpush1.bf16.msra.mxu0 %v2710
    %3120 = vmatprep.subr.bf16.mxu0 0
    %3121 = vmatpush1.bf16.msra.mxu0 %v2709
    %3122 = vmatprep.subr.bf16.mxu0 0
    %3123 = vmatpush1.bf16.msra.mxu0 %v2708
    %3124 = vmatprep.subr.bf16.mxu0 0
    %3125 = vmatpush1.bf16.msra.mxu0 %v2707
    %3126 = vmatprep.subr.bf16.mxu0 0
    %3127 = vmatpush1.bf16.msra.mxu0 %v2706
    %3128 = vmatprep.subr.bf16.mxu0 0
    %3129 = vmatpush1.bf16.msra.mxu0 %v2705
    %3130 = vmatprep.subr.bf16.mxu0 0
    %3131 = vmatpush2.bf16.msra.mxu0 %v2720
    %3132 = vmatprep.subr.bf16.mxu0 0
    %3133 = vmatpush2.bf16.msra.mxu0 %v2719
    %3134 = vmatprep.subr.bf16.mxu0 0
    %3135 = vmatpush2.bf16.msra.mxu0 %v2718
    %3136 = vmatprep.subr.bf16.mxu0 0
    %3137 = vmatpush2.bf16.msra.mxu0 %v2717
    %3138 = vmatprep.subr.bf16.mxu0 0
    %3139 = vmatpush2.bf16.msra.mxu0 %v2716
    %3140 = vmatprep.subr.bf16.mxu0 0
    %3141 = vmatpush2.bf16.msra.mxu0 %v2715
    %3142 = vmatprep.subr.bf16.mxu0 0
    %3143 = vmatpush2.bf16.msra.mxu0 %v2714
    %3144 = vmatprep.subr.bf16.mxu0 0
    %3145 = vmatpush2.bf16.msra.mxu0 %v2713
    %3146 = vmatprep.mubr.bf16.mxu0 %v3113
    %3147 = vmatmul.mubr.bf16.gmra.mxu0 %v3112
    %v3148 = vpop.f32.mrf.mxu0
    %v3149 = vadd.f32 0.0, %v3148
    %v3150 = vpop.f32.mrf.mxu0
    %v3151 = vpop.f32.mrf.mxu0
    %v3152 = vpop.f32.mrf.mxu0
    %3153 = vdwg.mxu0
    %v3154 = vpack.c.bf16 %v3110, %v3110
    %v3155 = vpack.c.bf16 %v3111, %v3111
    %3156 = vmatprep.subr.bf16.mxu0 0
    %3157 = vmatpush1.bf16.msra.mxu0 %v2712
    %3158 = vmatprep.subr.bf16.mxu0 0
    %3159 = vmatpush1.bf16.msra.mxu0 %v2711
    %3160 = vmatprep.subr.bf16.mxu0 0
    %3161 = vmatpush1.bf16.msra.mxu0 %v2710
    %3162 = vmatprep.subr.bf16.mxu0 0
    %3163 = vmatpush1.bf16.msra.mxu0 %v2709
    %3164 = vmatprep.subr.bf16.mxu0 0
    %3165 = vmatpush1.bf16.msra.mxu0 %v2708
    %3166 = vmatprep.subr.bf16.mxu0 0
    %3167 = vmatpush1.bf16.msra.mxu0 %v2707
    %3168 = vmatprep.subr.bf16.mxu0 0
    %3169 = vmatpush1.bf16.msra.mxu0 %v2706
    %3170 = vmatprep.subr.bf16.mxu0 0
    %3171 = vmatpush1.bf16.msra.mxu0 %v2705
    %3172 = vmatprep.subr.bf16.mxu0 0
    %3173 = vmatpush2.bf16.msra.mxu0 %v2720
    %3174 = vmatprep.subr.bf16.mxu0 0
    %3175 = vmatpush2.bf16.msra.mxu0 %v2719
    %3176 = vmatprep.subr.bf16.mxu0 0
    %3177 = vmatpush2.bf16.msra.mxu0 %v2718
    %3178 = vmatprep.subr.bf16.mxu0 0
    %3179 = vmatpush2.bf16.msra.mxu0 %v2717
    %3180 = vmatprep.subr.bf16.mxu0 0
    %3181 = vmatpush2.bf16.msra.mxu0 %v2716
    %3182 = vmatprep.subr.bf16.mxu0 0
    %3183 = vmatpush2.bf16.msra.mxu0 %v2715
    %3184 = vmatprep.subr.bf16.mxu0 0
    %3185 = vmatpush2.bf16.msra.mxu0 %v2714
    %3186 = vmatprep.subr.bf16.mxu0 0
    %3187 = vmatpush2.bf16.msra.mxu0 %v2713
    %3188 = vmatprep.mubr.bf16.mxu0 %v3155
    %3189 = vmatmul.mubr.bf16.gmra.mxu0 %v3154
    %v3190 = vpop.f32.mrf.mxu0
    %v3191 = vadd.f32 0.0, %v3190
    %v3192 = vpop.f32.mrf.mxu0
    %v3193 = vpop.f32.mrf.mxu0
    %v3194 = vpop.f32.mrf.mxu0
    %3195 = vdwg.mxu0
    %vm3196 = vcmp.gt.f32.partialorder %v3149, 0.0
    %v3197 = vsel %vm3196, %v3149, 1.0
    %v3198 = vrcp.pop %v3197
    %v3199 = vmul.f32 %v3197, %v3198
    %v3200 = vsub.f32 2.0, %v3199
    %v3201 = vmul.f32 %v3198, %v3200
    %v3202 = vmul.f32 %v3191, %v3201
    %v3203 = vadd.f32 %v3015, %v3202
    %v3205 = vunpack.c.l.b16 %v3016
    %v3206 = vpack.c.b16 %v3205, %v3205
    %3207 = vrot.lane.b32.xlu0 %v3206, 96
    %v3208 = vpop.permute.xlu0 %3207
    %v3210 = vsel %vm170, %v3208, 0
    %3212 = vmatprep.subr.bf16.mxu0 0
    %3213 = vmatpush1.bf16.msra.mxu0 0
    %3214 = vmatprep.subr.bf16.mxu0 0
    %3215 = vmatpush1.bf16.msra.mxu0 0
    %3216 = vmatprep.subr.bf16.mxu0 0
    %3217 = vmatpush1.bf16.msra.mxu0 0
    %3218 = vmatprep.subr.bf16.mxu0 0
    %3219 = vmatpush1.bf16.msra.mxu0 0
    %3220 = vmatprep.subr.bf16.mxu0 0
    %3221 = vmatpush1.bf16.msra.mxu0 0
    %3222 = vmatprep.subr.bf16.mxu0 0
    %3223 = vmatpush1.bf16.msra.mxu0 0
    %3224 = vmatprep.subr.bf16.mxu0 %v285
    %3225 = vmatpush1.bf16.msra.mxu0 %v284
    %3226 = vmatprep.subr.bf16.mxu0 %v281
    %3227 = vmatpush1.bf16.msra.mxu0 %v280
    %3228 = vmatprep.subr.bf16.mxu0 0
    %3229 = vmatpush2.bf16.msra.mxu0 0
    %3230 = vmatprep.subr.bf16.mxu0 0
    %3231 = vmatpush2.bf16.msra.mxu0 0
    %3232 = vmatprep.subr.bf16.mxu0 0
    %3233 = vmatpush2.bf16.msra.mxu0 0
    %3234 = vmatprep.subr.bf16.mxu0 0
    %3235 = vmatpush2.bf16.msra.mxu0 0
    %3236 = vmatprep.subr.bf16.mxu0 0
    %3237 = vmatpush2.bf16.msra.mxu0 0
    %3238 = vmatprep.subr.bf16.mxu0 0
    %3239 = vmatpush2.bf16.msra.mxu0 0
    %3240 = vmatprep.subr.bf16.mxu0 0
    %3241 = vmatpush2.bf16.msra.mxu0 0
    %3242 = vmatprep.subr.bf16.mxu0 0
    %3243 = vmatpush2.bf16.msra.mxu0 0
    %3244 = vmatprep.mubr.bf16.mxu0 0
    %3245 = vmatmul.mubr.bf16.gmra.mxu0 %v3210
    %v3246 = vpop.f32.mrf.mxu0
    %v3247 = vadd.f32 0.0, %v3246
    %v3248 = vpop.f32.mrf.mxu0
    %v3249 = vadd.f32 0.0, %v3248
    %v3250 = vpop.f32.mrf.mxu0
    %v3251 = vpop.f32.mrf.mxu0
    %3252 = vdwg.mxu0
    %3253 = vmatprep.subr.bf16.mxu0 0
    %3254 = vmatpush1.bf16.msra.mxu0 0
    %3255 = vmatprep.subr.bf16.mxu0 0
    %3256 = vmatpush1.bf16.msra.mxu0 0
    %3257 = vmatprep.subr.bf16.mxu0 0
    %3258 = vmatpush1.bf16.msra.mxu0 0
    %3259 = vmatprep.subr.bf16.mxu0 0
    %3260 = vmatpush1.bf16.msra.mxu0 0
    %3261 = vmatprep.subr.bf16.mxu0 0
    %3262 = vmatpush1.bf16.msra.mxu0 0
    %3263 = vmatprep.subr.bf16.mxu0 0
    %3264 = vmatpush1.bf16.msra.mxu0 0
    %3265 = vmatprep.subr.bf16.mxu0 %v287
    %3266 = vmatpush1.bf16.msra.mxu0 %v286
    %3267 = vmatprep.subr.bf16.mxu0 %v283
    %3268 = vmatpush1.bf16.msra.mxu0 %v282
    %3269 = vmatprep.subr.bf16.mxu0 0
    %3270 = vmatpush2.bf16.msra.mxu0 0
    %3271 = vmatprep.subr.bf16.mxu0 0
    %3272 = vmatpush2.bf16.msra.mxu0 0
    %3273 = vmatprep.subr.bf16.mxu0 0
    %3274 = vmatpush2.bf16.msra.mxu0 0
    %3275 = vmatprep.subr.bf16.mxu0 0
    %3276 = vmatpush2.bf16.msra.mxu0 0
    %3277 = vmatprep.subr.bf16.mxu0 0
    %3278 = vmatpush2.bf16.msra.mxu0 0
    %3279 = vmatprep.subr.bf16.mxu0 0
    %3280 = vmatpush2.bf16.msra.mxu0 0
    %3281 = vmatprep.subr.bf16.mxu0 0
    %3282 = vmatpush2.bf16.msra.mxu0 0
    %3283 = vmatprep.subr.bf16.mxu0 0
    %3284 = vmatpush2.bf16.msra.mxu0 0
    %3285 = vmatprep.mubr.bf16.mxu0 0
    %3286 = vmatmul.mubr.bf16.gmra.mxu0 %v3210
    %v3287 = vpop.f32.mrf.mxu0
    %v3288 = vadd.f32 0.0, %v3287
    %v3289 = vpop.f32.mrf.mxu0
    %v3290 = vadd.f32 0.0, %v3289
    %v3291 = vpop.f32.mrf.mxu0
    %v3292 = vpop.f32.mrf.mxu0
    %3293 = vdwg.mxu0
    %v3294 = vmul.f32 %v2501, %v3247
    %v3295 = vmul.f32 %v2503, %v3249
    %v3296 = vsub.f32 %v3294, %v2513
    %v3297 = vsub.f32 %v3295, %v2513
    %v3298 = vmul.f32 %v3296, 1.442695
    %v3299 = vpow.pop %v3298
    %v3300 = vmul.f32 %v3297, 1.442695
    %v3301 = vpow.pop %v3300
    %v3302 = vmul.f32 %v3299, %v3288
    %v3303 = vmul.f32 %v3301, %v3290
    %v3304 = vpack.c.bf16 %v3299, %v3299
    %v3305 = vpack.c.bf16 %v3301, %v3301
    %3306 = vmatprep.subr.bf16.mxu0 0
    %3307 = vmatpush1.bf16.msra.mxu0 %v2712
    %3308 = vmatprep.subr.bf16.mxu0 0
    %3309 = vmatpush1.bf16.msra.mxu0 %v2711
    %3310 = vmatprep.subr.bf16.mxu0 0
    %3311 = vmatpush1.bf16.msra.mxu0 %v2710
    %3312 = vmatprep.subr.bf16.mxu0 0
    %3313 = vmatpush1.bf16.msra.mxu0 %v2709
    %3314 = vmatprep.subr.bf16.mxu0 0
    %3315 = vmatpush1.bf16.msra.mxu0 %v2708
    %3316 = vmatprep.subr.bf16.mxu0 0
    %3317 = vmatpush1.bf16.msra.mxu0 %v2707
    %3318 = vmatprep.subr.bf16.mxu0 0
    %3319 = vmatpush1.bf16.msra.mxu0 %v2706
    %3320 = vmatprep.subr.bf16.mxu0 0
    %3321 = vmatpush1.bf16.msra.mxu0 %v2705
    %3322 = vmatprep.subr.bf16.mxu0 0
    %3323 = vmatpush2.bf16.msra.mxu0 %v2720
    %3324 = vmatprep.subr.bf16.mxu0 0
    %3325 = vmatpush2.bf16.msra.mxu0 %v2719
    %3326 = vmatprep.subr.bf16.mxu0 0
    %3327 = vmatpush2.bf16.msra.mxu0 %v2718
    %3328 = vmatprep.subr.bf16.mxu0 0
    %3329 = vmatpush2.bf16.msra.mxu0 %v2717
    %3330 = vmatprep.subr.bf16.mxu0 0
    %3331 = vmatpush2.bf16.msra.mxu0 %v2716
    %3332 = vmatprep.subr.bf16.mxu0 0
    %3333 = vmatpush2.bf16.msra.mxu0 %v2715
    %3334 = vmatprep.subr.bf16.mxu0 0
    %3335 = vmatpush2.bf16.msra.mxu0 %v2714
    %3336 = vmatprep.subr.bf16.mxu0 0
    %3337 = vmatpush2.bf16.msra.mxu0 %v2713
    %3338 = vmatprep.mubr.bf16.mxu0 %v3305
    %3339 = vmatmul.mubr.bf16.gmra.mxu0 %v3304
    %v3340 = vpop.f32.mrf.mxu0
    %v3341 = vadd.f32 0.0, %v3340
    %v3342 = vpop.f32.mrf.mxu0
    %v3343 = vpop.f32.mrf.mxu0
    %v3344 = vpop.f32.mrf.mxu0
    %3345 = vdwg.mxu0
    %v3346 = vpack.c.bf16 %v3302, %v3302
    %v3347 = vpack.c.bf16 %v3303, %v3303
    %3348 = vmatprep.subr.bf16.mxu0 0
    %3349 = vmatpush1.bf16.msra.mxu0 %v2712
    %3350 = vmatprep.subr.bf16.mxu0 0
    %3351 = vmatpush1.bf16.msra.mxu0 %v2711
    %3352 = vmatprep.subr.bf16.mxu0 0
    %3353 = vmatpush1.bf16.msra.mxu0 %v2710
    %3354 = vmatprep.subr.bf16.mxu0 0
    %3355 = vmatpush1.bf16.msra.mxu0 %v2709
    %3356 = vmatprep.subr.bf16.mxu0 0
    %3357 = vmatpush1.bf16.msra.mxu0 %v2708
    %3358 = vmatprep.subr.bf16.mxu0 0
    %3359 = vmatpush1.bf16.msra.mxu0 %v2707
    %3360 = vmatprep.subr.bf16.mxu0 0
    %3361 = vmatpush1.bf16.msra.mxu0 %v2706
    %3362 = vmatprep.subr.bf16.mxu0 0
    %3363 = vmatpush1.bf16.msra.mxu0 %v2705
    %3364 = vmatprep.subr.bf16.mxu0 0
    %3365 = vmatpush2.bf16.msra.mxu0 %v2720
    %3366 = vmatprep.subr.bf16.mxu0 0
    %3367 = vmatpush2.bf16.msra.mxu0 %v2719
    %3368 = vmatprep.subr.bf16.mxu0 0
    %3369 = vmatpush2.bf16.msra.mxu0 %v2718
    %3370 = vmatprep.subr.bf16.mxu0 0
    %3371 = vmatpush2.bf16.msra.mxu0 %v2717
    %3372 = vmatprep.subr.bf16.mxu0 0
    %3373 = vmatpush2.bf16.msra.mxu0 %v2716
    %3374 = vmatprep.subr.bf16.mxu0 0
    %3375 = vmatpush2.bf16.msra.mxu0 %v2715
    %3376 = vmatprep.subr.bf16.mxu0 0
    %3377 = vmatpush2.bf16.msra.mxu0 %v2714
    %3378 = vmatprep.subr.bf16.mxu0 0
    %3379 = vmatpush2.bf16.msra.mxu0 %v2713
    %3380 = vmatprep.mubr.bf16.mxu0 %v3347
    %3381 = vmatmul.mubr.bf16.gmra.mxu0 %v3346
    %v3382 = vpop.f32.mrf.mxu0
    %v3383 = vadd.f32 0.0, %v3382
    %v3384 = vpop.f32.mrf.mxu0
    %v3385 = vpop.f32.mrf.mxu0
    %v3386 = vpop.f32.mrf.mxu0
    %3387 = vdwg.mxu0
    %vm3388 = vcmp.gt.f32.partialorder %v3341, 0.0
    %v3389 = vsel %vm3388, %v3341, 1.0
    %v3390 = vrcp.pop %v3389
    %v3391 = vmul.f32 %v3389, %v3390
    %v3392 = vsub.f32 2.0, %v3391
    %v3393 = vmul.f32 %v3390, %v3392
    %v3394 = vmul.f32 %v3383, %v3393
    %v3395 = vadd.f32 %v3203, %v3394
    %3396 = vrot.lane.b32.xlu0 %v3206, 64
    %v3397 = vpop.permute.xlu0 %3396
    %v3399 = vsel %vm170, %v3397, 0
    %3401 = vmatprep.subr.bf16.mxu0 0
    %3402 = vmatpush1.bf16.msra.mxu0 0
    %3403 = vmatprep.subr.bf16.mxu0 0
    %3404 = vmatpush1.bf16.msra.mxu0 0
    %3405 = vmatprep.subr.bf16.mxu0 0
    %3406 = vmatpush1.bf16.msra.mxu0 0
    %3407 = vmatprep.subr.bf16.mxu0 0
    %3408 = vmatpush1.bf16.msra.mxu0 0
    %3409 = vmatprep.subr.bf16.mxu0 0
    %3410 = vmatpush1.bf16.msra.mxu0 0
    %3411 = vmatprep.subr.bf16.mxu0 0
    %3412 = vmatpush1.bf16.msra.mxu0 0
    %3413 = vmatprep.subr.bf16.mxu0 %v285
    %3414 = vmatpush1.bf16.msra.mxu0 %v284
    %3415 = vmatprep.subr.bf16.mxu0 %v281
    %3416 = vmatpush1.bf16.msra.mxu0 %v280
    %3417 = vmatprep.subr.bf16.mxu0 0
    %3418 = vmatpush2.bf16.msra.mxu0 0
    %3419 = vmatprep.subr.bf16.mxu0 0
    %3420 = vmatpush2.bf16.msra.mxu0 0
    %3421 = vmatprep.subr.bf16.mxu0 0
    %3422 = vmatpush2.bf16.msra.mxu0 0
    %3423 = vmatprep.subr.bf16.mxu0 0
    %3424 = vmatpush2.bf16.msra.mxu0 0
    %3425 = vmatprep.subr.bf16.mxu0 0
    %3426 = vmatpush2.bf16.msra.mxu0 0
    %3427 = vmatprep.subr.bf16.mxu0 0
    %3428 = vmatpush2.bf16.msra.mxu0 0
    %3429 = vmatprep.subr.bf16.mxu0 0
    %3430 = vmatpush2.bf16.msra.mxu0 0
    %3431 = vmatprep.subr.bf16.mxu0 0
    %3432 = vmatpush2.bf16.msra.mxu0 0
    %3433 = vmatprep.mubr.bf16.mxu0 0
    %3434 = vmatmul.mubr.bf16.gmra.mxu0 %v3399
    %v3435 = vpop.f32.mrf.mxu0
    %v3436 = vadd.f32 0.0, %v3435
    %v3437 = vpop.f32.mrf.mxu0
    %v3438 = vadd.f32 0.0, %v3437
    %v3439 = vpop.f32.mrf.mxu0
    %v3440 = vpop.f32.mrf.mxu0
    %3441 = vdwg.mxu0
    %3442 = vmatprep.subr.bf16.mxu0 0
    %3443 = vmatpush1.bf16.msra.mxu0 0
    %3444 = vmatprep.subr.bf16.mxu0 0
    %3445 = vmatpush1.bf16.msra.mxu0 0
    %3446 = vmatprep.subr.bf16.mxu0 0
    %3447 = vmatpush1.bf16.msra.mxu0 0
    %3448 = vmatprep.subr.bf16.mxu0 0
    %3449 = vmatpush1.bf16.msra.mxu0 0
    %3450 = vmatprep.subr.bf16.mxu0 0
    %3451 = vmatpush1.bf16.msra.mxu0 0
    %3452 = vmatprep.subr.bf16.mxu0 0
    %3453 = vmatpush1.bf16.msra.mxu0 0
    %3454 = vmatprep.subr.bf16.mxu0 %v287
    %3455 = vmatpush1.bf16.msra.mxu0 %v286
    %3456 = vmatprep.subr.bf16.mxu0 %v283
    %3457 = vmatpush1.bf16.msra.mxu0 %v282
    %3458 = vmatprep.subr.bf16.mxu0 0
    %3459 = vmatpush2.bf16.msra.mxu0 0
    %3460 = vmatprep.subr.bf16.mxu0 0
    %3461 = vmatpush2.bf16.msra.mxu0 0
    %3462 = vmatprep.subr.bf16.mxu0 0
    %3463 = vmatpush2.bf16.msra.mxu0 0
    %3464 = vmatprep.subr.bf16.mxu0 0
    %3465 = vmatpush2.bf16.msra.mxu0 0
    %3466 = vmatprep.subr.bf16.mxu0 0
    %3467 = vmatpush2.bf16.msra.mxu0 0
    %3468 = vmatprep.subr.bf16.mxu0 0
    %3469 = vmatpush2.bf16.msra.mxu0 0
    %3470 = vmatprep.subr.bf16.mxu0 0
    %3471 = vmatpush2.bf16.msra.mxu0 0
    %3472 = vmatprep.subr.bf16.mxu0 0
    %3473 = vmatpush2.bf16.msra.mxu0 0
    %3474 = vmatprep.mubr.bf16.mxu0 0
    %3475 = vmatmul.mubr.bf16.gmra.mxu0 %v3399
    %v3476 = vpop.f32.mrf.mxu0
    %v3477 = vadd.f32 0.0, %v3476
    %v3478 = vpop.f32.mrf.mxu0
    %v3479 = vadd.f32 0.0, %v3478
    %v3480 = vpop.f32.mrf.mxu0
    %v3481 = vpop.f32.mrf.mxu0
    %3482 = vdwg.mxu0
    %v3483 = vmul.f32 %v2501, %v3436
    %v3484 = vmul.f32 %v2503, %v3438
    %v3485 = vsub.f32 %v3483, %v2513
    %v3486 = vsub.f32 %v3484, %v2513
    %v3487 = vmul.f32 %v3485, 1.442695
    %v3488 = vpow.pop %v3487
    %v3489 = vmul.f32 %v3486, 1.442695
    %v3490 = vpow.pop %v3489
    %v3491 = vmul.f32 %v3488, %v3477
    %v3492 = vmul.f32 %v3490, %v3479
    %v3493 = vpack.c.bf16 %v3488, %v3488
    %v3494 = vpack.c.bf16 %v3490, %v3490
    %3495 = vmatprep.subr.bf16.mxu0 0
    %3496 = vmatpush1.bf16.msra.mxu0 %v2712
    %3497 = vmatprep.subr.bf16.mxu0 0
    %3498 = vmatpush1.bf16.msra.mxu0 %v2711
    %3499 = vmatprep.subr.bf16.mxu0 0
    %3500 = vmatpush1.bf16.msra.mxu0 %v2710
    %3501 = vmatprep.subr.bf16.mxu0 0
    %3502 = vmatpush1.bf16.msra.mxu0 %v2709
    %3503 = vmatprep.subr.bf16.mxu0 0
    %3504 = vmatpush1.bf16.msra.mxu0 %v2708
    %3505 = vmatprep.subr.bf16.mxu0 0
    %3506 = vmatpush1.bf16.msra.mxu0 %v2707
    %3507 = vmatprep.subr.bf16.mxu0 0
    %3508 = vmatpush1.bf16.msra.mxu0 %v2706
    %3509 = vmatprep.subr.bf16.mxu0 0
    %3510 = vmatpush1.bf16.msra.mxu0 %v2705
    %3511 = vmatprep.subr.bf16.mxu0 0
    %3512 = vmatpush2.bf16.msra.mxu0 %v2720
    %3513 = vmatprep.subr.bf16.mxu0 0
    %3514 = vmatpush2.bf16.msra.mxu0 %v2719
    %3515 = vmatprep.subr.bf16.mxu0 0
    %3516 = vmatpush2.bf16.msra.mxu0 %v2718
    %3517 = vmatprep.subr.bf16.mxu0 0
    %3518 = vmatpush2.bf16.msra.mxu0 %v2717
    %3519 = vmatprep.subr.bf16.mxu0 0
    %3520 = vmatpush2.bf16.msra.mxu0 %v2716
    %3521 = vmatprep.subr.bf16.mxu0 0
    %3522 = vmatpush2.bf16.msra.mxu0 %v2715
    %3523 = vmatprep.subr.bf16.mxu0 0
    %3524 = vmatpush2.bf16.msra.mxu0 %v2714
    %3525 = vmatprep.subr.bf16.mxu0 0
    %3526 = vmatpush2.bf16.msra.mxu0 %v2713
    %3527 = vmatprep.mubr.bf16.mxu0 %v3494
    %3528 = vmatmul.mubr.bf16.gmra.mxu0 %v3493
    %v3529 = vpop.f32.mrf.mxu0
    %v3530 = vadd.f32 0.0, %v3529
    %v3531 = vpop.f32.mrf.mxu0
    %v3532 = vpop.f32.mrf.mxu0
    %v3533 = vpop.f32.mrf.mxu0
    %3534 = vdwg.mxu0
    %v3535 = vpack.c.bf16 %v3491, %v3491
    %v3536 = vpack.c.bf16 %v3492, %v3492
    %3537 = vmatprep.subr.bf16.mxu0 0
    %3538 = vmatpush1.bf16.msra.mxu0 %v2712
    %3539 = vmatprep.subr.bf16.mxu0 0
    %3540 = vmatpush1.bf16.msra.mxu0 %v2711
    %3541 = vmatprep.subr.bf16.mxu0 0
    %3542 = vmatpush1.bf16.msra.mxu0 %v2710
    %3543 = vmatprep.subr.bf16.mxu0 0
    %3544 = vmatpush1.bf16.msra.mxu0 %v2709
    %3545 = vmatprep.subr.bf16.mxu0 0
    %3546 = vmatpush1.bf16.msra.mxu0 %v2708
    %3547 = vmatprep.subr.bf16.mxu0 0
    %3548 = vmatpush1.bf16.msra.mxu0 %v2707
    %3549 = vmatprep.subr.bf16.mxu0 0
    %3550 = vmatpush1.bf16.msra.mxu0 %v2706
    %3551 = vmatprep.subr.bf16.mxu0 0
    %3552 = vmatpush1.bf16.msra.mxu0 %v2705
    %3553 = vmatprep.subr.bf16.mxu0 0
    %3554 = vmatpush2.bf16.msra.mxu0 %v2720
    %3555 = vmatprep.subr.bf16.mxu0 0
    %3556 = vmatpush2.bf16.msra.mxu0 %v2719
    %3557 = vmatprep.subr.bf16.mxu0 0
    %3558 = vmatpush2.bf16.msra.mxu0 %v2718
    %3559 = vmatprep.subr.bf16.mxu0 0
    %3560 = vmatpush2.bf16.msra.mxu0 %v2717
    %3561 = vmatprep.subr.bf16.mxu0 0
    %3562 = vmatpush2.bf16.msra.mxu0 %v2716
    %3563 = vmatprep.subr.bf16.mxu0 0
    %3564 = vmatpush2.bf16.msra.mxu0 %v2715
    %3565 = vmatprep.subr.bf16.mxu0 0
    %3566 = vmatpush2.bf16.msra.mxu0 %v2714
    %3567 = vmatprep.subr.bf16.mxu0 0
    %3568 = vmatpush2.bf16.msra.mxu0 %v2713
    %3569 = vmatprep.mubr.bf16.mxu0 %v3536
    %3570 = vmatmul.mubr.bf16.gmra.mxu0 %v3535
    %v3571 = vpop.f32.mrf.mxu0
    %v3572 = vadd.f32 0.0, %v3571
    %v3573 = vpop.f32.mrf.mxu0
    %v3574 = vpop.f32.mrf.mxu0
    %v3575 = vpop.f32.mrf.mxu0
    %3576 = vdwg.mxu0
    %vm3577 = vcmp.gt.f32.partialorder %v3530, 0.0
    %v3578 = vsel %vm3577, %v3530, 1.0
    %v3579 = vrcp.pop %v3578
    %v3580 = vmul.f32 %v3578, %v3579
    %v3581 = vsub.f32 2.0, %v3580
    %v3582 = vmul.f32 %v3579, %v3581
    %v3583 = vmul.f32 %v3572, %v3582
    %v3584 = vadd.f32 %v3395, %v3583
    %3585 = vrot.lane.b32.xlu0 %v3206, 32
    %v3586 = vpop.permute.xlu0 %3585
    %v3588 = vsel %vm170, %v3586, 0
    %3590 = vmatprep.subr.bf16.mxu0 0
    %3591 = vmatpush1.bf16.msra.mxu0 0
    %3592 = vmatprep.subr.bf16.mxu0 0
    %3593 = vmatpush1.bf16.msra.mxu0 0
    %3594 = vmatprep.subr.bf16.mxu0 0
    %3595 = vmatpush1.bf16.msra.mxu0 0
    %3596 = vmatprep.subr.bf16.mxu0 0
    %3597 = vmatpush1.bf16.msra.mxu0 0
    %3598 = vmatprep.subr.bf16.mxu0 0
    %3599 = vmatpush1.bf16.msra.mxu0 0
    %3600 = vmatprep.subr.bf16.mxu0 0
    %3601 = vmatpush1.bf16.msra.mxu0 0
    %3602 = vmatprep.subr.bf16.mxu0 %v165
    %3603 = vmatpush1.bf16.msra.mxu0 %v164
    %3604 = vmatprep.subr.bf16.mxu0 %v163
    %3605 = vmatpush1.bf16.msra.mxu0 %v162
    %3606 = vmatprep.subr.bf16.mxu0 0
    %3607 = vmatpush2.bf16.msra.mxu0 0
    %3608 = vmatprep.subr.bf16.mxu0 0
    %3609 = vmatpush2.bf16.msra.mxu0 0
    %3610 = vmatprep.subr.bf16.mxu0 0
    %3611 = vmatpush2.bf16.msra.mxu0 0
    %3612 = vmatprep.subr.bf16.mxu0 0
    %3613 = vmatpush2.bf16.msra.mxu0 0
    %3614 = vmatprep.subr.bf16.mxu0 0
    %3615 = vmatpush2.bf16.msra.mxu0 0
    %3616 = vmatprep.subr.bf16.mxu0 0
    %3617 = vmatpush2.bf16.msra.mxu0 0
    %3618 = vmatprep.subr.bf16.mxu0 0
    %3619 = vmatpush2.bf16.msra.mxu0 0
    %3620 = vmatprep.subr.bf16.mxu0 0
    %3621 = vmatpush2.bf16.msra.mxu0 0
    %3622 = vmatprep.mubr.bf16.mxu0 0
    %3623 = vmatmul.mubr.bf16.gmra.mxu0 %v3588
    %v3624 = vpop.f32.mrf.mxu0
    %v3625 = vadd.f32 0.0, %v3624
    %v3626 = vpop.f32.mrf.mxu0
    %v3627 = vadd.f32 0.0, %v3626
    %v3628 = vpop.f32.mrf.mxu0
    %v3629 = vpop.f32.mrf.mxu0
    %3630 = vdwg.mxu0
    %v3631 = vand.u32 2147483647, %v3625
    %v3632 = vand.u32 2147483647, %v3627
    %v3633 = vmax.f32 %v3631, %v3632
    %3634 = vmax.xlane.f32.xlu0 %v3633
    %v3635 = vpop.xlane.xlu0 %3634
    %v3636 = vmul.f32 %v3635, %v221
    %v3637 = vmin.f32 %v3636, 80.0
    %s3638 = scalar_lea.vmem [#allocation9], 384
    %v3639 = vld [vmem:[%s3638] sm:$0xf]
    %v3640 = vld [vmem:[%s3638 + $0x4] sm:$0xf]
    %v3641 = vld [vmem:[%s3638 + $0x8] sm:$0xf]
    %v3642 = vld [vmem:[%s3638 + $0xc] sm:$0xf]
    %v3643 = vld [vmem:[%s3638 + $0x10] sm:$0xf]
    %v3644 = vld [vmem:[%s3638 + $0x14] sm:$0xf]
    %v3645 = vld [vmem:[%s3638 + $0x18] sm:$0xf]
    %v3646 = vld [vmem:[%s3638 + $0x1c] sm:$0xf]
    %v3647 = vld [vmem:[%s3638 + $0x20] sm:$0xf]
    %v3648 = vld [vmem:[%s3638 + $0x24] sm:$0xf]
    %v3649 = vld [vmem:[%s3638 + $0x28] sm:$0xf]
    %v3650 = vld [vmem:[%s3638 + $0x2c] sm:$0xf]
    %v3651 = vld [vmem:[%s3638 + $0x30] sm:$0xf]
    %v3652 = vld [vmem:[%s3638 + $0x34] sm:$0xf]
    %v3653 = vld [vmem:[%s3638 + $0x38] sm:$0xf]
    %v3654 = vld [vmem:[%s3638 + $0x3c] sm:$0xf]
    %v3655 = vld [vmem:[%s3638 + $0x40] sm:$0xf]
    %v3656 = vld [vmem:[%s3638 + $0x44] sm:$0xf]
    %v3657 = vld [vmem:[%s3638 + $0x48] sm:$0xf]
    %v3658 = vld [vmem:[%s3638 + $0x4c] sm:$0xf]
    %v3659 = vld [vmem:[%s3638 + $0x50] sm:$0xf]
    %v3660 = vld [vmem:[%s3638 + $0x54] sm:$0xf]
    %v3661 = vld [vmem:[%s3638 + $0x58] sm:$0xf]
    %v3662 = vld [vmem:[%s3638 + $0x5c] sm:$0xf]
    %v3663 = vld [vmem:[%s3638 + $0x60] sm:$0xf]
    %v3664 = vld [vmem:[%s3638 + $0x64] sm:$0xf]
    %v3665 = vld [vmem:[%s3638 + $0x68] sm:$0xf]
    %v3666 = vld [vmem:[%s3638 + $0x6c] sm:$0xf]
    %v3667 = vld [vmem:[%s3638 + $0x70] sm:$0xf]
    %v3668 = vld [vmem:[%s3638 + $0x74] sm:$0xf]
    %v3669 = vld [vmem:[%s3638 + $0x78] sm:$0xf]
    %v3670 = vld [vmem:[%s3638 + $0x7c] sm:$0xf]
    %3671 = vmatprep.subr.bf16.mxu0 0
    %3672 = vmatpush1.bf16.msra.mxu0 0
    %3673 = vmatprep.subr.bf16.mxu0 0
    %3674 = vmatpush1.bf16.msra.mxu0 0
    %3675 = vmatprep.subr.bf16.mxu0 0
    %3676 = vmatpush1.bf16.msra.mxu0 0
    %3677 = vmatprep.subr.bf16.mxu0 0
    %3678 = vmatpush1.bf16.msra.mxu0 0
    %3679 = vmatprep.subr.bf16.mxu0 0
    %3680 = vmatpush1.bf16.msra.mxu0 0
    %3681 = vmatprep.subr.bf16.mxu0 0
    %3682 = vmatpush1.bf16.msra.mxu0 0
    %3683 = vmatprep.subr.bf16.mxu0 %v285
    %3684 = vmatpush1.bf16.msra.mxu0 %v284
    %3685 = vmatprep.subr.bf16.mxu0 %v281
    %3686 = vmatpush1.bf16.msra.mxu0 %v280
    %3687 = vmatprep.subr.bf16.mxu0 0
    %3688 = vmatpush2.bf16.msra.mxu0 0
    %3689 = vmatprep.subr.bf16.mxu0 0
    %3690 = vmatpush2.bf16.msra.mxu0 0
    %3691 = vmatprep.subr.bf16.mxu0 0
    %3692 = vmatpush2.bf16.msra.mxu0 0
    %3693 = vmatprep.subr.bf16.mxu0 0
    %3694 = vmatpush2.bf16.msra.mxu0 0
    %3695 = vmatprep.subr.bf16.mxu0 0
    %3696 = vmatpush2.bf16.msra.mxu0 0
    %3697 = vmatprep.subr.bf16.mxu0 0
    %3698 = vmatpush2.bf16.msra.mxu0 0
    %3699 = vmatprep.subr.bf16.mxu0 0
    %3700 = vmatpush2.bf16.msra.mxu0 0
    %3701 = vmatprep.subr.bf16.mxu0 0
    %3702 = vmatpush2.bf16.msra.mxu0 0
    %3703 = vmatprep.mubr.bf16.mxu0 0
    %3704 = vmatmul.mubr.bf16.gmra.mxu0 %v3588
    %v3705 = vpop.f32.mrf.mxu0
    %v3706 = vadd.f32 0.0, %v3705
    %v3707 = vpop.f32.mrf.mxu0
    %v3708 = vadd.f32 0.0, %v3707
    %v3709 = vpop.f32.mrf.mxu0
    %v3710 = vpop.f32.mrf.mxu0
    %3711 = vdwg.mxu0
    %3712 = vmatprep.subr.bf16.mxu0 0
    %3713 = vmatpush1.bf16.msra.mxu0 0
    %3714 = vmatprep.subr.bf16.mxu0 0
    %3715 = vmatpush1.bf16.msra.mxu0 0
    %3716 = vmatprep.subr.bf16.mxu0 0
    %3717 = vmatpush1.bf16.msra.mxu0 0
    %3718 = vmatprep.subr.bf16.mxu0 0
    %3719 = vmatpush1.bf16.msra.mxu0 0
    %3720 = vmatprep.subr.bf16.mxu0 0
    %3721 = vmatpush1.bf16.msra.mxu0 0
    %3722 = vmatprep.subr.bf16.mxu0 0
    %3723 = vmatpush1.bf16.msra.mxu0 0
    %3724 = vmatprep.subr.bf16.mxu0 %v287
    %3725 = vmatpush1.bf16.msra.mxu0 %v286
    %3726 = vmatprep.subr.bf16.mxu0 %v283
    %3727 = vmatpush1.bf16.msra.mxu0 %v282
    %3728 = vmatprep.subr.bf16.mxu0 0
    %3729 = vmatpush2.bf16.msra.mxu0 0
    %3730 = vmatprep.subr.bf16.mxu0 0
    %3731 = vmatpush2.bf16.msra.mxu0 0
    %3732 = vmatprep.subr.bf16.mxu0 0
    %3733 = vmatpush2.bf16.msra.mxu0 0
    %3734 = vmatprep.subr.bf16.mxu0 0
    %3735 = vmatpush2.bf16.msra.mxu0 0
    %3736 = vmatprep.subr.bf16.mxu0 0
    %3737 = vmatpush2.bf16.msra.mxu0 0
    %3738 = vmatprep.subr.bf16.mxu0 0
    %3739 = vmatpush2.bf16.msra.mxu0 0
    %3740 = vmatprep.subr.bf16.mxu0 0
    %3741 = vmatpush2.bf16.msra.mxu0 0
    %3742 = vmatprep.subr.bf16.mxu0 0
    %3743 = vmatpush2.bf16.msra.mxu0 0
    %3744 = vmatprep.mubr.bf16.mxu0 0
    %3745 = vmatmul.mubr.bf16.gmra.mxu0 %v3588
    %v3746 = vpop.f32.mrf.mxu0
    %v3747 = vadd.f32 0.0, %v3746
    %v3748 = vpop.f32.mrf.mxu0
    %v3749 = vadd.f32 0.0, %v3748
    %v3750 = vpop.f32.mrf.mxu0
    %v3751 = vpop.f32.mrf.mxu0
    %3752 = vdwg.mxu0
    %v3753 = vmul.f32 %v3625, %v3706
    %v3754 = vmul.f32 %v3627, %v3708
    %v3755 = vsub.f32 %v3753, %v3637
    %v3756 = vsub.f32 %v3754, %v3637
    %v3757 = vmul.f32 %v3755, 1.442695
    %v3758 = vpow.pop %v3757
    %v3759 = vmul.f32 %v3756, 1.442695
    %v3760 = vpow.pop %v3759
    %v3761 = vmul.f32 %v3758, %v3747
    %v3762 = vmul.f32 %v3760, %v3749
    %v3763 = vpack.c.bf16 %v3758, %v3758
    %v3764 = vpack.c.bf16 %v3760, %v3760
    %v3797 = vunpack.c.l.b16 %v3639
    %v3798 = vunpack.c.l.b16 %v3640
    %v3799 = vunpack.c.l.b16 %v3641
    %v3800 = vunpack.c.l.b16 %v3642
    %v3801 = vunpack.c.l.b16 %v3643
    %v3802 = vunpack.c.l.b16 %v3644
    %v3803 = vunpack.c.l.b16 %v3645
    %v3804 = vunpack.c.l.b16 %v3646
    %v3805 = vunpack.c.l.b16 %v3647
    %v3806 = vunpack.c.l.b16 %v3648
    %v3807 = vunpack.c.l.b16 %v3649
    %v3808 = vunpack.c.l.b16 %v3650
    %v3809 = vunpack.c.l.b16 %v3651
    %v3810 = vunpack.c.l.b16 %v3652
    %v3811 = vunpack.c.l.b16 %v3653
    %v3812 = vunpack.c.l.b16 %v3654
    %v3813 = vunpack.c.l.b16 %v3655
    %v3814 = vunpack.c.l.b16 %v3656
    %v3815 = vunpack.c.l.b16 %v3657
    %v3816 = vunpack.c.l.b16 %v3658
    %v3817 = vunpack.c.l.b16 %v3659
    %v3818 = vunpack.c.l.b16 %v3660
    %v3819 = vunpack.c.l.b16 %v3661
    %v3820 = vunpack.c.l.b16 %v3662
    %v3821 = vunpack.c.l.b16 %v3663
    %v3822 = vunpack.c.l.b16 %v3664
    %v3823 = vunpack.c.l.b16 %v3665
    %v3824 = vunpack.c.l.b16 %v3666
    %v3825 = vunpack.c.l.b16 %v3667
    %v3826 = vunpack.c.l.b16 %v3668
    %v3827 = vunpack.c.l.b16 %v3669
    %v3828 = vunpack.c.l.b16 %v3670
    %v3829 = vpack.c.b16 %v3798, %v3797
    %v3830 = vpack.c.b16 %v3800, %v3799
    %v3831 = vpack.c.b16 %v3802, %v3801
    %v3832 = vpack.c.b16 %v3804, %v3803
    %v3833 = vpack.c.b16 %v3806, %v3805
    %v3834 = vpack.c.b16 %v3808, %v3807
    %v3835 = vpack.c.b16 %v3810, %v3809
    %v3836 = vpack.c.b16 %v3812, %v3811
    %v3837 = vpack.c.b16 %v3814, %v3813
    %v3838 = vpack.c.b16 %v3816, %v3815
    %v3839 = vpack.c.b16 %v3818, %v3817
    %v3840 = vpack.c.b16 %v3820, %v3819
    %v3841 = vpack.c.b16 %v3822, %v3821
    %v3842 = vpack.c.b16 %v3824, %v3823
    %v3843 = vpack.c.b16 %v3826, %v3825
    %v3844 = vpack.c.b16 %v3828, %v3827
    %3861 = vmatprep.subr.bf16.mxu0 0
    %3862 = vmatpush1.bf16.msra.mxu0 %v3836
    %3863 = vmatprep.subr.bf16.mxu0 0
    %3864 = vmatpush1.bf16.msra.mxu0 %v3835
    %3865 = vmatprep.subr.bf16.mxu0 0
    %3866 = vmatpush1.bf16.msra.mxu0 %v3834
    %3867 = vmatprep.subr.bf16.mxu0 0
    %3868 = vmatpush1.bf16.msra.mxu0 %v3833
    %3869 = vmatprep.subr.bf16.mxu0 0
    %3870 = vmatpush1.bf16.msra.mxu0 %v3832
    %3871 = vmatprep.subr.bf16.mxu0 0
    %3872 = vmatpush1.bf16.msra.mxu0 %v3831
    %3873 = vmatprep.subr.bf16.mxu0 0
    %3874 = vmatpush1.bf16.msra.mxu0 %v3830
    %3875 = vmatprep.subr.bf16.mxu0 0
    %3876 = vmatpush1.bf16.msra.mxu0 %v3829
    %3877 = vmatprep.subr.bf16.mxu0 0
    %3878 = vmatpush2.bf16.msra.mxu0 %v3844
    %3879 = vmatprep.subr.bf16.mxu0 0
    %3880 = vmatpush2.bf16.msra.mxu0 %v3843
    %3881 = vmatprep.subr.bf16.mxu0 0
    %3882 = vmatpush2.bf16.msra.mxu0 %v3842
    %3883 = vmatprep.subr.bf16.mxu0 0
    %3884 = vmatpush2.bf16.msra.mxu0 %v3841
    %3885 = vmatprep.subr.bf16.mxu0 0
    %3886 = vmatpush2.bf16.msra.mxu0 %v3840
    %3887 = vmatprep.subr.bf16.mxu0 0
    %3888 = vmatpush2.bf16.msra.mxu0 %v3839
    %3889 = vmatprep.subr.bf16.mxu0 0
    %3890 = vmatpush2.bf16.msra.mxu0 %v3838
    %3891 = vmatprep.subr.bf16.mxu0 0
    %3892 = vmatpush2.bf16.msra.mxu0 %v3837
    %3893 = vmatprep.mubr.bf16.mxu0 %v3764
    %3894 = vmatmul.mubr.bf16.gmra.mxu0 %v3763
    %v3895 = vpop.f32.mrf.mxu0
    %v3896 = vadd.f32 0.0, %v3895
    %v3897 = vpop.f32.mrf.mxu0
    %v3898 = vpop.f32.mrf.mxu0
    %v3899 = vpop.f32.mrf.mxu0
    %3900 = vdwg.mxu0
    %v3901 = vpack.c.bf16 %v3761, %v3761
    %v3902 = vpack.c.bf16 %v3762, %v3762
    %3903 = vmatprep.subr.bf16.mxu0 0
    %3904 = vmatpush1.bf16.msra.mxu0 %v3836
    %3905 = vmatprep.subr.bf16.mxu0 0
    %3906 = vmatpush1.bf16.msra.mxu0 %v3835
    %3907 = vmatprep.subr.bf16.mxu0 0
    %3908 = vmatpush1.bf16.msra.mxu0 %v3834
    %3909 = vmatprep.subr.bf16.mxu0 0
    %3910 = vmatpush1.bf16.msra.mxu0 %v3833
    %3911 = vmatprep.subr.bf16.mxu0 0
    %3912 = vmatpush1.bf16.msra.mxu0 %v3832
    %3913 = vmatprep.subr.bf16.mxu0 0
    %3914 = vmatpush1.bf16.msra.mxu0 %v3831
    %3915 = vmatprep.subr.bf16.mxu0 0
    %3916 = vmatpush1.bf16.msra.mxu0 %v3830
    %3917 = vmatprep.subr.bf16.mxu0 0
    %3918 = vmatpush1.bf16.msra.mxu0 %v3829
    %3919 = vmatprep.subr.bf16.mxu0 0
    %3920 = vmatpush2.bf16.msra.mxu0 %v3844
    %3921 = vmatprep.subr.bf16.mxu0 0
    %3922 = vmatpush2.bf16.msra.mxu0 %v3843
    %3923 = vmatprep.subr.bf16.mxu0 0
    %3924 = vmatpush2.bf16.msra.mxu0 %v3842
    %3925 = vmatprep.subr.bf16.mxu0 0
    %3926 = vmatpush2.bf16.msra.mxu0 %v3841
    %3927 = vmatprep.subr.bf16.mxu0 0
    %3928 = vmatpush2.bf16.msra.mxu0 %v3840
    %3929 = vmatprep.subr.bf16.mxu0 0
    %3930 = vmatpush2.bf16.msra.mxu0 %v3839
    %3931 = vmatprep.subr.bf16.mxu0 0
    %3932 = vmatpush2.bf16.msra.mxu0 %v3838
    %3933 = vmatprep.subr.bf16.mxu0 0
    %3934 = vmatpush2.bf16.msra.mxu0 %v3837
    %3935 = vmatprep.mubr.bf16.mxu0 %v3902
    %3936 = vmatmul.mubr.bf16.gmra.mxu0 %v3901
    %v3937 = vpop.f32.mrf.mxu0
    %v3938 = vadd.f32 0.0, %v3937
    %v3939 = vpop.f32.mrf.mxu0
    %v3940 = vpop.f32.mrf.mxu0
    %v3941 = vpop.f32.mrf.mxu0
    %3942 = vdwg.mxu0
    %vm3943 = vcmp.gt.f32.partialorder %v3896, 0.0
    %v3944 = vsel %vm3943, %v3896, 1.0
    %v3945 = vrcp.pop %v3944
    %v3946 = vmul.f32 %v3944, %v3945
    %v3947 = vsub.f32 2.0, %v3946
    %v3948 = vmul.f32 %v3945, %v3947
    %v3949 = vmul.f32 %v3938, %v3948
    %v3950 = vadd.f32 %v3584, %v3949
    %v3952 = vsel %vm170, %v108, 0
    %3954 = vmatprep.subr.bf16.mxu0 0
    %3955 = vmatpush1.bf16.msra.mxu0 0
    %3956 = vmatprep.subr.bf16.mxu0 0
    %3957 = vmatpush1.bf16.msra.mxu0 0
    %3958 = vmatprep.subr.bf16.mxu0 0
    %3959 = vmatpush1.bf16.msra.mxu0 0
    %3960 = vmatprep.subr.bf16.mxu0 0
    %3961 = vmatpush1.bf16.msra.mxu0 0
    %3962 = vmatprep.subr.bf16.mxu0 0
    %3963 = vmatpush1.bf16.msra.mxu0 0
    %3964 = vmatprep.subr.bf16.mxu0 0
    %3965 = vmatpush1.bf16.msra.mxu0 0
    %3966 = vmatprep.subr.bf16.mxu0 %v285
    %3967 = vmatpush1.bf16.msra.mxu0 %v284
    %3968 = vmatprep.subr.bf16.mxu0 %v281
    %3969 = vmatpush1.bf16.msra.mxu0 %v280
    %3970 = vmatprep.subr.bf16.mxu0 0
    %3971 = vmatpush2.bf16.msra.mxu0 0
    %3972 = vmatprep.subr.bf16.mxu0 0
    %3973 = vmatpush2.bf16.msra.mxu0 0
    %3974 = vmatprep.subr.bf16.mxu0 0
    %3975 = vmatpush2.bf16.msra.mxu0 0
    %3976 = vmatprep.subr.bf16.mxu0 0
    %3977 = vmatpush2.bf16.msra.mxu0 0
    %3978 = vmatprep.subr.bf16.mxu0 0
    %3979 = vmatpush2.bf16.msra.mxu0 0
    %3980 = vmatprep.subr.bf16.mxu0 0
    %3981 = vmatpush2.bf16.msra.mxu0 0
    %3982 = vmatprep.subr.bf16.mxu0 0
    %3983 = vmatpush2.bf16.msra.mxu0 0
    %3984 = vmatprep.subr.bf16.mxu0 0
    %3985 = vmatpush2.bf16.msra.mxu0 0
    %3986 = vmatprep.mubr.bf16.mxu0 0
    %3987 = vmatmul.mubr.bf16.gmra.mxu0 %v3952
    %v3988 = vpop.f32.mrf.mxu0
    %v3989 = vadd.f32 0.0, %v3988
    %v3990 = vpop.f32.mrf.mxu0
    %v3991 = vadd.f32 0.0, %v3990
    %v3992 = vpop.f32.mrf.mxu0
    %v3993 = vpop.f32.mrf.mxu0
    %3994 = vdwg.mxu0
    %3995 = vmatprep.subr.bf16.mxu0 0
    %3996 = vmatpush1.bf16.msra.mxu0 0
    %3997 = vmatprep.subr.bf16.mxu0 0
    %3998 = vmatpush1.bf16.msra.mxu0 0
    %3999 = vmatprep.subr.bf16.mxu0 0
    %4000 = vmatpush1.bf16.msra.mxu0 0
    %4001 = vmatprep.subr.bf16.mxu0 0
    %4002 = vmatpush1.bf16.msra.mxu0 0
    %4003 = vmatprep.subr.bf16.mxu0 0
    %4004 = vmatpush1.bf16.msra.mxu0 0
    %4005 = vmatprep.subr.bf16.mxu0 0
    %4006 = vmatpush1.bf16.msra.mxu0 0
    %4007 = vmatprep.subr.bf16.mxu0 %v287
    %4008 = vmatpush1.bf16.msra.mxu0 %v286
    %4009 = vmatprep.subr.bf16.mxu0 %v283
    %4010 = vmatpush1.bf16.msra.mxu0 %v282
    %4011 = vmatprep.subr.bf16.mxu0 0
    %4012 = vmatpush2.bf16.msra.mxu0 0
    %4013 = vmatprep.subr.bf16.mxu0 0
    %4014 = vmatpush2.bf16.msra.mxu0 0
    %4015 = vmatprep.subr.bf16.mxu0 0
    %4016 = vmatpush2.bf16.msra.mxu0 0
    %4017 = vmatprep.subr.bf16.mxu0 0
    %4018 = vmatpush2.bf16.msra.mxu0 0
    %4019 = vmatprep.subr.bf16.mxu0 0
    %4020 = vmatpush2.bf16.msra.mxu0 0
    %4021 = vmatprep.subr.bf16.mxu0 0
    %4022 = vmatpush2.bf16.msra.mxu0 0
    %4023 = vmatprep.subr.bf16.mxu0 0
    %4024 = vmatpush2.bf16.msra.mxu0 0
    %4025 = vmatprep.subr.bf16.mxu0 0
    %4026 = vmatpush2.bf16.msra.mxu0 0
    %4027 = vmatprep.mubr.bf16.mxu0 0
    %4028 = vmatmul.mubr.bf16.gmra.mxu0 %v3952
    %v4029 = vpop.f32.mrf.mxu0
    %v4030 = vadd.f32 0.0, %v4029
    %v4031 = vpop.f32.mrf.mxu0
    %v4032 = vadd.f32 0.0, %v4031
    %v4033 = vpop.f32.mrf.mxu0
    %v4034 = vpop.f32.mrf.mxu0
    %4035 = vdwg.mxu0
    %v4036 = vmul.f32 %v3625, %v3989
    %v4037 = vmul.f32 %v3627, %v3991
    %v4038 = vsub.f32 %v4036, %v3637
    %v4039 = vsub.f32 %v4037, %v3637
    %v4040 = vmul.f32 %v4038, 1.442695
    %v4041 = vpow.pop %v4040
    %v4042 = vmul.f32 %v4039, 1.442695
    %v4043 = vpow.pop %v4042
    %v4044 = vmul.f32 %v4041, %v4030
    %v4045 = vmul.f32 %v4043, %v4032
    %v4046 = vpack.c.bf16 %v4041, %v4041
    %v4047 = vpack.c.bf16 %v4043, %v4043
    %4048 = vmatprep.subr.bf16.mxu0 0
    %4049 = vmatpush1.bf16.msra.mxu0 %v3836
    %4050 = vmatprep.subr.bf16.mxu0 0
    %4051 = vmatpush1.bf16.msra.mxu0 %v3835
    %4052 = vmatprep.subr.bf16.mxu0 0
    %4053 = vmatpush1.bf16.msra.mxu0 %v3834
    %4054 = vmatprep.subr.bf16.mxu0 0
    %4055 = vmatpush1.bf16.msra.mxu0 %v3833
    %4056 = vmatprep.subr.bf16.mxu0 0
    %4057 = vmatpush1.bf16.msra.mxu0 %v3832
    %4058 = vmatprep.subr.bf16.mxu0 0
    %4059 = vmatpush1.bf16.msra.mxu0 %v3831
    %4060 = vmatprep.subr.bf16.mxu0 0
    %4061 = vmatpush1.bf16.msra.mxu0 %v3830
    %4062 = vmatprep.subr.bf16.mxu0 0
    %4063 = vmatpush1.bf16.msra.mxu0 %v3829
    %4064 = vmatprep.subr.bf16.mxu0 0
    %4065 = vmatpush2.bf16.msra.mxu0 %v3844
    %4066 = vmatprep.subr.bf16.mxu0 0
    %4067 = vmatpush2.bf16.msra.mxu0 %v3843
    %4068 = vmatprep.subr.bf16.mxu0 0
    %4069 = vmatpush2.bf16.msra.mxu0 %v3842
    %4070 = vmatprep.subr.bf16.mxu0 0
    %4071 = vmatpush2.bf16.msra.mxu0 %v3841
    %4072 = vmatprep.subr.bf16.mxu0 0
    %4073 = vmatpush2.bf16.msra.mxu0 %v3840
    %4074 = vmatprep.subr.bf16.mxu0 0
    %4075 = vmatpush2.bf16.msra.mxu0 %v3839
    %4076 = vmatprep.subr.bf16.mxu0 0
    %4077 = vmatpush2.bf16.msra.mxu0 %v3838
    %4078 = vmatprep.subr.bf16.mxu0 0
    %4079 = vmatpush2.bf16.msra.mxu0 %v3837
    %4080 = vmatprep.mubr.bf16.mxu0 %v4047
    %4081 = vmatmul.mubr.bf16.gmra.mxu0 %v4046
    %v4082 = vpop.f32.mrf.mxu0
    %v4083 = vadd.f32 0.0, %v4082
    %v4084 = vpop.f32.mrf.mxu0
    %v4085 = vpop.f32.mrf.mxu0
    %v4086 = vpop.f32.mrf.mxu0
    %4087 = vdwg.mxu0
    %v4088 = vpack.c.bf16 %v4044, %v4044
    %v4089 = vpack.c.bf16 %v4045, %v4045
    %4090 = vmatprep.subr.bf16.mxu0 0
    %4091 = vmatpush1.bf16.msra.mxu0 %v3836
    %4092 = vmatprep.subr.bf16.mxu0 0
    %4093 = vmatpush1.bf16.msra.mxu0 %v3835
    %4094 = vmatprep.subr.bf16.mxu0 0
    %4095 = vmatpush1.bf16.msra.mxu0 %v3834
    %4096 = vmatprep.subr.bf16.mxu0 0
    %4097 = vmatpush1.bf16.msra.mxu0 %v3833
    %4098 = vmatprep.subr.bf16.mxu0 0
    %4099 = vmatpush1.bf16.msra.mxu0 %v3832
    %4100 = vmatprep.subr.bf16.mxu0 0
    %4101 = vmatpush1.bf16.msra.mxu0 %v3831
    %4102 = vmatprep.subr.bf16.mxu0 0
    %4103 = vmatpush1.bf16.msra.mxu0 %v3830
    %4104 = vmatprep.subr.bf16.mxu0 0
    %4105 = vmatpush1.bf16.msra.mxu0 %v3829
    %4106 = vmatprep.subr.bf16.mxu0 0
    %4107 = vmatpush2.bf16.msra.mxu0 %v3844
    %4108 = vmatprep.subr.bf16.mxu0 0
    %4109 = vmatpush2.bf16.msra.mxu0 %v3843
    %4110 = vmatprep.subr.bf16.mxu0 0
    %4111 = vmatpush2.bf16.msra.mxu0 %v3842
    %4112 = vmatprep.subr.bf16.mxu0 0
    %4113 = vmatpush2.bf16.msra.mxu0 %v3841
    %4114 = vmatprep.subr.bf16.mxu0 0
    %4115 = vmatpush2.bf16.msra.mxu0 %v3840
    %4116 = vmatprep.subr.bf16.mxu0 0
    %4117 = vmatpush2.bf16.msra.mxu0 %v3839
    %4118 = vmatprep.subr.bf16.mxu0 0
    %4119 = vmatpush2.bf16.msra.mxu0 %v3838
    %4120 = vmatprep.subr.bf16.mxu0 0
    %4121 = vmatpush2.bf16.msra.mxu0 %v3837
    %4122 = vmatprep.mubr.bf16.mxu0 %v4089
    %4123 = vmatmul.mubr.bf16.gmra.mxu0 %v4088
    %v4124 = vpop.f32.mrf.mxu0
    %v4125 = vadd.f32 0.0, %v4124
    %v4126 = vpop.f32.mrf.mxu0
    %v4127 = vpop.f32.mrf.mxu0
    %v4128 = vpop.f32.mrf.mxu0
    %4129 = vdwg.mxu0
    %vm4130 = vcmp.gt.f32.partialorder %v4083, 0.0
    %v4131 = vsel %vm4130, %v4083, 1.0
    %v4132 = vrcp.pop %v4131
    %v4133 = vmul.f32 %v4131, %v4132
    %v4134 = vsub.f32 2.0, %v4133
    %v4135 = vmul.f32 %v4132, %v4134
    %v4136 = vmul.f32 %v4125, %v4135
    %v4137 = vadd.f32 %v3950, %v4136
    %v4139 = vunpack.c.l.b16 %v108
    %v4140 = vpack.c.b16 %v4139, %v4139
    %4141 = vrot.lane.b32.xlu0 %v4140, 96
    %v4142 = vpop.permute.xlu0 %4141
    %v4144 = vsel %vm170, %v4142, 0
    %4146 = vmatprep.subr.bf16.mxu0 0
    %4147 = vmatpush1.bf16.msra.mxu0 0
    %4148 = vmatprep.subr.bf16.mxu0 0
    %4149 = vmatpush1.bf16.msra.mxu0 0
    %4150 = vmatprep.subr.bf16.mxu0 0
    %4151 = vmatpush1.bf16.msra.mxu0 0
    %4152 = vmatprep.subr.bf16.mxu0 0
    %4153 = vmatpush1.bf16.msra.mxu0 0
    %4154 = vmatprep.subr.bf16.mxu0 0
    %4155 = vmatpush1.bf16.msra.mxu0 0
    %4156 = vmatprep.subr.bf16.mxu0 0
    %4157 = vmatpush1.bf16.msra.mxu0 0
    %4158 = vmatprep.subr.bf16.mxu0 %v285
    %4159 = vmatpush1.bf16.msra.mxu0 %v284
    %4160 = vmatprep.subr.bf16.mxu0 %v281
    %4161 = vmatpush1.bf16.msra.mxu0 %v280
    %4162 = vmatprep.subr.bf16.mxu0 0
    %4163 = vmatpush2.bf16.msra.mxu0 0
    %4164 = vmatprep.subr.bf16.mxu0 0
    %4165 = vmatpush2.bf16.msra.mxu0 0
    %4166 = vmatprep.subr.bf16.mxu0 0
    %4167 = vmatpush2.bf16.msra.mxu0 0
    %4168 = vmatprep.subr.bf16.mxu0 0
    %4169 = vmatpush2.bf16.msra.mxu0 0
    %4170 = vmatprep.subr.bf16.mxu0 0
    %4171 = vmatpush2.bf16.msra.mxu0 0
    %4172 = vmatprep.subr.bf16.mxu0 0
    %4173 = vmatpush2.bf16.msra.mxu0 0
    %4174 = vmatprep.subr.bf16.mxu0 0
    %4175 = vmatpush2.bf16.msra.mxu0 0
    %4176 = vmatprep.subr.bf16.mxu0 0
    %4177 = vmatpush2.bf16.msra.mxu0 0
    %4178 = vmatprep.mubr.bf16.mxu0 0
    %4179 = vmatmul.mubr.bf16.gmra.mxu0 %v4144
    %v4180 = vpop.f32.mrf.mxu0
    %v4181 = vadd.f32 0.0, %v4180
    %v4182 = vpop.f32.mrf.mxu0
    %v4183 = vadd.f32 0.0, %v4182
    %v4184 = vpop.f32.mrf.mxu0
    %v4185 = vpop.f32.mrf.mxu0
    %4186 = vdwg.mxu0
    %4187 = vmatprep.subr.bf16.mxu0 0
    %4188 = vmatpush1.bf16.msra.mxu0 0
    %4189 = vmatprep.subr.bf16.mxu0 0
    %4190 = vmatpush1.bf16.msra.mxu0 0
    %4191 = vmatprep.subr.bf16.mxu0 0
    %4192 = vmatpush1.bf16.msra.mxu0 0
    %4193 = vmatprep.subr.bf16.mxu0 0
    %4194 = vmatpush1.bf16.msra.mxu0 0
    %4195 = vmatprep.subr.bf16.mxu0 0
    %4196 = vmatpush1.bf16.msra.mxu0 0
    %4197 = vmatprep.subr.bf16.mxu0 0
    %4198 = vmatpush1.bf16.msra.mxu0 0
    %4199 = vmatprep.subr.bf16.mxu0 %v287
    %4200 = vmatpush1.bf16.msra.mxu0 %v286
    %4201 = vmatprep.subr.bf16.mxu0 %v283
    %4202 = vmatpush1.bf16.msra.mxu0 %v282
    %4203 = vmatprep.subr.bf16.mxu0 0
    %4204 = vmatpush2.bf16.msra.mxu0 0
    %4205 = vmatprep.subr.bf16.mxu0 0
    %4206 = vmatpush2.bf16.msra.mxu0 0
    %4207 = vmatprep.subr.bf16.mxu0 0
    %4208 = vmatpush2.bf16.msra.mxu0 0
    %4209 = vmatprep.subr.bf16.mxu0 0
    %4210 = vmatpush2.bf16.msra.mxu0 0
    %4211 = vmatprep.subr.bf16.mxu0 0
    %4212 = vmatpush2.bf16.msra.mxu0 0
    %4213 = vmatprep.subr.bf16.mxu0 0
    %4214 = vmatpush2.bf16.msra.mxu0 0
    %4215 = vmatprep.subr.bf16.mxu0 0
    %4216 = vmatpush2.bf16.msra.mxu0 0
    %4217 = vmatprep.subr.bf16.mxu0 0
    %4218 = vmatpush2.bf16.msra.mxu0 0
    %4219 = vmatprep.mubr.bf16.mxu0 0
    %4220 = vmatmul.mubr.bf16.gmra.mxu0 %v4144
    %v4221 = vpop.f32.mrf.mxu0
    %v4222 = vadd.f32 0.0, %v4221
    %v4223 = vpop.f32.mrf.mxu0
    %v4224 = vadd.f32 0.0, %v4223
    %v4225 = vpop.f32.mrf.mxu0
    %v4226 = vpop.f32.mrf.mxu0
    %4227 = vdwg.mxu0
    %v4228 = vmul.f32 %v3625, %v4181
    %v4229 = vmul.f32 %v3627, %v4183
    %v4230 = vsub.f32 %v4228, %v3637
    %v4231 = vsub.f32 %v4229, %v3637
    %v4232 = vmul.f32 %v4230, 1.442695
    %v4233 = vpow.pop %v4232
    %v4234 = vmul.f32 %v4231, 1.442695
    %v4235 = vpow.pop %v4234
    %v4236 = vmul.f32 %v4233, %v4222
    %v4237 = vmul.f32 %v4235, %v4224
    %v4238 = vpack.c.bf16 %v4233, %v4233
    %v4239 = vpack.c.bf16 %v4235, %v4235
    %4240 = vmatprep.subr.bf16.mxu0 0
    %4241 = vmatpush1.bf16.msra.mxu0 %v3836
    %4242 = vmatprep.subr.bf16.mxu0 0
    %4243 = vmatpush1.bf16.msra.mxu0 %v3835
    %4244 = vmatprep.subr.bf16.mxu0 0
    %4245 = vmatpush1.bf16.msra.mxu0 %v3834
    %4246 = vmatprep.subr.bf16.mxu0 0
    %4247 = vmatpush1.bf16.msra.mxu0 %v3833
    %4248 = vmatprep.subr.bf16.mxu0 0
    %4249 = vmatpush1.bf16.msra.mxu0 %v3832
    %4250 = vmatprep.subr.bf16.mxu0 0
    %4251 = vmatpush1.bf16.msra.mxu0 %v3831
    %4252 = vmatprep.subr.bf16.mxu0 0
    %4253 = vmatpush1.bf16.msra.mxu0 %v3830
    %4254 = vmatprep.subr.bf16.mxu0 0
    %4255 = vmatpush1.bf16.msra.mxu0 %v3829
    %4256 = vmatprep.subr.bf16.mxu0 0
    %4257 = vmatpush2.bf16.msra.mxu0 %v3844
    %4258 = vmatprep.subr.bf16.mxu0 0
    %4259 = vmatpush2.bf16.msra.mxu0 %v3843
    %4260 = vmatprep.subr.bf16.mxu0 0
    %4261 = vmatpush2.bf16.msra.mxu0 %v3842
    %4262 = vmatprep.subr.bf16.mxu0 0
    %4263 = vmatpush2.bf16.msra.mxu0 %v3841
    %4264 = vmatprep.subr.bf16.mxu0 0
    %4265 = vmatpush2.bf16.msra.mxu0 %v3840
    %4266 = vmatprep.subr.bf16.mxu0 0
    %4267 = vmatpush2.bf16.msra.mxu0 %v3839
    %4268 = vmatprep.subr.bf16.mxu0 0
    %4269 = vmatpush2.bf16.msra.mxu0 %v3838
    %4270 = vmatprep.subr.bf16.mxu0 0
    %4271 = vmatpush2.bf16.msra.mxu0 %v3837
    %4272 = vmatprep.mubr.bf16.mxu0 %v4239
    %4273 = vmatmul.mubr.bf16.gmra.mxu0 %v4238
    %v4274 = vpop.f32.mrf.mxu0
    %v4275 = vadd.f32 0.0, %v4274
    %v4276 = vpop.f32.mrf.mxu0
    %v4277 = vpop.f32.mrf.mxu0
    %v4278 = vpop.f32.mrf.mxu0
    %4279 = vdwg.mxu0
    %v4280 = vpack.c.bf16 %v4236, %v4236
    %v4281 = vpack.c.bf16 %v4237, %v4237
    %4282 = vmatprep.subr.bf16.mxu0 0
    %4283 = vmatpush1.bf16.msra.mxu0 %v3836
    %4284 = vmatprep.subr.bf16.mxu0 0
    %4285 = vmatpush1.bf16.msra.mxu0 %v3835
    %4286 = vmatprep.subr.bf16.mxu0 0
    %4287 = vmatpush1.bf16.msra.mxu0 %v3834
    %4288 = vmatprep.subr.bf16.mxu0 0
    %4289 = vmatpush1.bf16.msra.mxu0 %v3833
    %4290 = vmatprep.subr.bf16.mxu0 0
    %4291 = vmatpush1.bf16.msra.mxu0 %v3832
    %4292 = vmatprep.subr.bf16.mxu0 0
    %4293 = vmatpush1.bf16.msra.mxu0 %v3831
    %4294 = vmatprep.subr.bf16.mxu0 0
    %4295 = vmatpush1.bf16.msra.mxu0 %v3830
    %4296 = vmatprep.subr.bf16.mxu0 0
    %4297 = vmatpush1.bf16.msra.mxu0 %v3829
    %4298 = vmatprep.subr.bf16.mxu0 0
    %4299 = vmatpush2.bf16.msra.mxu0 %v3844
    %4300 = vmatprep.subr.bf16.mxu0 0
    %4301 = vmatpush2.bf16.msra.mxu0 %v3843
    %4302 = vmatprep.subr.bf16.mxu0 0
    %4303 = vmatpush2.bf16.msra.mxu0 %v3842
    %4304 = vmatprep.subr.bf16.mxu0 0
    %4305 = vmatpush2.bf16.msra.mxu0 %v3841
    %4306 = vmatprep.subr.bf16.mxu0 0
    %4307 = vmatpush2.bf16.msra.mxu0 %v3840
    %4308 = vmatprep.subr.bf16.mxu0 0
    %4309 = vmatpush2.bf16.msra.mxu0 %v3839
    %4310 = vmatprep.subr.bf16.mxu0 0
    %4311 = vmatpush2.bf16.msra.mxu0 %v3838
    %4312 = vmatprep.subr.bf16.mxu0 0
    %4313 = vmatpush2.bf16.msra.mxu0 %v3837
    %4314 = vmatprep.mubr.bf16.mxu0 %v4281
    %4315 = vmatmul.mubr.bf16.gmra.mxu0 %v4280
    %v4316 = vpop.f32.mrf.mxu0
    %v4317 = vadd.f32 0.0, %v4316
    %v4318 = vpop.f32.mrf.mxu0
    %v4319 = vpop.f32.mrf.mxu0
    %v4320 = vpop.f32.mrf.mxu0
    %4321 = vdwg.mxu0
    %vm4322 = vcmp.gt.f32.partialorder %v4275, 0.0
    %v4323 = vsel %vm4322, %v4275, 1.0
    %v4324 = vrcp.pop %v4323
    %v4325 = vmul.f32 %v4323, %v4324
    %v4326 = vsub.f32 2.0, %v4325
    %v4327 = vmul.f32 %v4324, %v4326
    %v4328 = vmul.f32 %v4317, %v4327
    %v4329 = vadd.f32 %v4137, %v4328
    %4330 = vrot.lane.b32.xlu0 %v4140, 64
    %v4331 = vpop.permute.xlu0 %4330
    %v4333 = vsel %vm170, %v4331, 0
    %4335 = vmatprep.subr.bf16.mxu0 0
    %4336 = vmatpush1.bf16.msra.mxu0 0
    %4337 = vmatprep.subr.bf16.mxu0 0
    %4338 = vmatpush1.bf16.msra.mxu0 0
    %4339 = vmatprep.subr.bf16.mxu0 0
    %4340 = vmatpush1.bf16.msra.mxu0 0
    %4341 = vmatprep.subr.bf16.mxu0 0
    %4342 = vmatpush1.bf16.msra.mxu0 0
    %4343 = vmatprep.subr.bf16.mxu0 0
    %4344 = vmatpush1.bf16.msra.mxu0 0
    %4345 = vmatprep.subr.bf16.mxu0 0
    %4346 = vmatpush1.bf16.msra.mxu0 0
    %4347 = vmatprep.subr.bf16.mxu0 %v285
    %4348 = vmatpush1.bf16.msra.mxu0 %v284
    %4349 = vmatprep.subr.bf16.mxu0 %v281
    %4350 = vmatpush1.bf16.msra.mxu0 %v280
    %4351 = vmatprep.subr.bf16.mxu0 0
    %4352 = vmatpush2.bf16.msra.mxu0 0
    %4353 = vmatprep.subr.bf16.mxu0 0
    %4354 = vmatpush2.bf16.msra.mxu0 0
    %4355 = vmatprep.subr.bf16.mxu0 0
    %4356 = vmatpush2.bf16.msra.mxu0 0
    %4357 = vmatprep.subr.bf16.mxu0 0
    %4358 = vmatpush2.bf16.msra.mxu0 0
    %4359 = vmatprep.subr.bf16.mxu0 0
    %4360 = vmatpush2.bf16.msra.mxu0 0
    %4361 = vmatprep.subr.bf16.mxu0 0
    %4362 = vmatpush2.bf16.msra.mxu0 0
    %4363 = vmatprep.subr.bf16.mxu0 0
    %4364 = vmatpush2.bf16.msra.mxu0 0
    %4365 = vmatprep.subr.bf16.mxu0 0
    %4366 = vmatpush2.bf16.msra.mxu0 0
    %4367 = vmatprep.mubr.bf16.mxu0 0
    %4368 = vmatmul.mubr.bf16.gmra.mxu0 %v4333
    %v4369 = vpop.f32.mrf.mxu0
    %v4370 = vadd.f32 0.0, %v4369
    %v4371 = vpop.f32.mrf.mxu0
    %v4372 = vadd.f32 0.0, %v4371
    %v4373 = vpop.f32.mrf.mxu0
    %v4374 = vpop.f32.mrf.mxu0
    %4375 = vdwg.mxu0
    %4376 = vmatprep.subr.bf16.mxu0 0
    %4377 = vmatpush1.bf16.msra.mxu0 0
    %4378 = vmatprep.subr.bf16.mxu0 0
    %4379 = vmatpush1.bf16.msra.mxu0 0
    %4380 = vmatprep.subr.bf16.mxu0 0
    %4381 = vmatpush1.bf16.msra.mxu0 0
    %4382 = vmatprep.subr.bf16.mxu0 0
    %4383 = vmatpush1.bf16.msra.mxu0 0
    %4384 = vmatprep.subr.bf16.mxu0 0
    %4385 = vmatpush1.bf16.msra.mxu0 0
    %4386 = vmatprep.subr.bf16.mxu0 0
    %4387 = vmatpush1.bf16.msra.mxu0 0
    %4388 = vmatprep.subr.bf16.mxu0 %v287
    %4389 = vmatpush1.bf16.msra.mxu0 %v286
    %4390 = vmatprep.subr.bf16.mxu0 %v283
    %4391 = vmatpush1.bf16.msra.mxu0 %v282
    %4392 = vmatprep.subr.bf16.mxu0 0
    %4393 = vmatpush2.bf16.msra.mxu0 0
    %4394 = vmatprep.subr.bf16.mxu0 0
    %4395 = vmatpush2.bf16.msra.mxu0 0
    %4396 = vmatprep.subr.bf16.mxu0 0
    %4397 = vmatpush2.bf16.msra.mxu0 0
    %4398 = vmatprep.subr.bf16.mxu0 0
    %4399 = vmatpush2.bf16.msra.mxu0 0
    %4400 = vmatprep.subr.bf16.mxu0 0
    %4401 = vmatpush2.bf16.msra.mxu0 0
    %4402 = vmatprep.subr.bf16.mxu0 0
    %4403 = vmatpush2.bf16.msra.mxu0 0
    %4404 = vmatprep.subr.bf16.mxu0 0
    %4405 = vmatpush2.bf16.msra.mxu0 0
    %4406 = vmatprep.subr.bf16.mxu0 0
    %4407 = vmatpush2.bf16.msra.mxu0 0
    %4408 = vmatprep.mubr.bf16.mxu0 0
    %4409 = vmatmul.mubr.bf16.gmra.mxu0 %v4333
    %v4410 = vpop.f32.mrf.mxu0
    %v4411 = vadd.f32 0.0, %v4410
    %v4412 = vpop.f32.mrf.mxu0
    %v4413 = vadd.f32 0.0, %v4412
    %v4414 = vpop.f32.mrf.mxu0
    %v4415 = vpop.f32.mrf.mxu0
    %4416 = vdwg.mxu0
    %v4417 = vmul.f32 %v3625, %v4370
    %v4418 = vmul.f32 %v3627, %v4372
    %v4419 = vsub.f32 %v4417, %v3637
    %v4420 = vsub.f32 %v4418, %v3637
    %v4421 = vmul.f32 %v4419, 1.442695
    %v4422 = vpow.pop %v4421
    %v4423 = vmul.f32 %v4420, 1.442695
    %v4424 = vpow.pop %v4423
    %v4425 = vmul.f32 %v4422, %v4411
    %v4426 = vmul.f32 %v4424, %v4413
    %v4427 = vpack.c.bf16 %v4422, %v4422
    %v4428 = vpack.c.bf16 %v4424, %v4424
    %4429 = vmatprep.subr.bf16.mxu0 0
    %4430 = vmatpush1.bf16.msra.mxu0 %v3836
    %4431 = vmatprep.subr.bf16.mxu0 0
    %4432 = vmatpush1.bf16.msra.mxu0 %v3835
    %4433 = vmatprep.subr.bf16.mxu0 0
    %4434 = vmatpush1.bf16.msra.mxu0 %v3834
    %4435 = vmatprep.subr.bf16.mxu0 0
    %4436 = vmatpush1.bf16.msra.mxu0 %v3833
    %4437 = vmatprep.subr.bf16.mxu0 0
    %4438 = vmatpush1.bf16.msra.mxu0 %v3832
    %4439 = vmatprep.subr.bf16.mxu0 0
    %4440 = vmatpush1.bf16.msra.mxu0 %v3831
    %4441 = vmatprep.subr.bf16.mxu0 0
    %4442 = vmatpush1.bf16.msra.mxu0 %v3830
    %4443 = vmatprep.subr.bf16.mxu0 0
    %4444 = vmatpush1.bf16.msra.mxu0 %v3829
    %4445 = vmatprep.subr.bf16.mxu0 0
    %4446 = vmatpush2.bf16.msra.mxu0 %v3844
    %4447 = vmatprep.subr.bf16.mxu0 0
    %4448 = vmatpush2.bf16.msra.mxu0 %v3843
    %4449 = vmatprep.subr.bf16.mxu0 0
    %4450 = vmatpush2.bf16.msra.mxu0 %v3842
    %4451 = vmatprep.subr.bf16.mxu0 0
    %4452 = vmatpush2.bf16.msra.mxu0 %v3841
    %4453 = vmatprep.subr.bf16.mxu0 0
    %4454 = vmatpush2.bf16.msra.mxu0 %v3840
    %4455 = vmatprep.subr.bf16.mxu0 0
    %4456 = vmatpush2.bf16.msra.mxu0 %v3839
    %4457 = vmatprep.subr.bf16.mxu0 0
    %4458 = vmatpush2.bf16.msra.mxu0 %v3838
    %4459 = vmatprep.subr.bf16.mxu0 0
    %4460 = vmatpush2.bf16.msra.mxu0 %v3837
    %4461 = vmatprep.mubr.bf16.mxu0 %v4428
    %4462 = vmatmul.mubr.bf16.gmra.mxu0 %v4427
    %v4463 = vpop.f32.mrf.mxu0
    %v4464 = vadd.f32 0.0, %v4463
    %v4465 = vpop.f32.mrf.mxu0
    %v4466 = vpop.f32.mrf.mxu0
    %v4467 = vpop.f32.mrf.mxu0
    %4468 = vdwg.mxu0
    %v4469 = vpack.c.bf16 %v4425, %v4425
    %v4470 = vpack.c.bf16 %v4426, %v4426
    %4471 = vmatprep.subr.bf16.mxu0 0
    %4472 = vmatpush1.bf16.msra.mxu0 %v3836
    %4473 = vmatprep.subr.bf16.mxu0 0
    %4474 = vmatpush1.bf16.msra.mxu0 %v3835
    %4475 = vmatprep.subr.bf16.mxu0 0
    %4476 = vmatpush1.bf16.msra.mxu0 %v3834
    %4477 = vmatprep.subr.bf16.mxu0 0
    %4478 = vmatpush1.bf16.msra.mxu0 %v3833
    %4479 = vmatprep.subr.bf16.mxu0 0
    %4480 = vmatpush1.bf16.msra.mxu0 %v3832
    %4481 = vmatprep.subr.bf16.mxu0 0
    %4482 = vmatpush1.bf16.msra.mxu0 %v3831
    %4483 = vmatprep.subr.bf16.mxu0 0
    %4484 = vmatpush1.bf16.msra.mxu0 %v3830
    %4485 = vmatprep.subr.bf16.mxu0 0
    %4486 = vmatpush1.bf16.msra.mxu0 %v3829
    %4487 = vmatprep.subr.bf16.mxu0 0
    %4488 = vmatpush2.bf16.msra.mxu0 %v3844
    %4489 = vmatprep.subr.bf16.mxu0 0
    %4490 = vmatpush2.bf16.msra.mxu0 %v3843
    %4491 = vmatprep.subr.bf16.mxu0 0
    %4492 = vmatpush2.bf16.msra.mxu0 %v3842
    %4493 = vmatprep.subr.bf16.mxu0 0
    %4494 = vmatpush2.bf16.msra.mxu0 %v3841
    %4495 = vmatprep.subr.bf16.mxu0 0
    %4496 = vmatpush2.bf16.msra.mxu0 %v3840
    %4497 = vmatprep.subr.bf16.mxu0 0
    %4498 = vmatpush2.bf16.msra.mxu0 %v3839
    %4499 = vmatprep.subr.bf16.mxu0 0
    %4500 = vmatpush2.bf16.msra.mxu0 %v3838
    %4501 = vmatprep.subr.bf16.mxu0 0
    %4502 = vmatpush2.bf16.msra.mxu0 %v3837
    %4503 = vmatprep.mubr.bf16.mxu0 %v4470
    %4504 = vmatmul.mubr.bf16.gmra.mxu0 %v4469
    %v4505 = vpop.f32.mrf.mxu0
    %v4506 = vadd.f32 0.0, %v4505
    %v4507 = vpop.f32.mrf.mxu0
    %v4508 = vpop.f32.mrf.mxu0
    %v4509 = vpop.f32.mrf.mxu0
    %4510 = vdwg.mxu0
    %vm4511 = vcmp.gt.f32.partialorder %v4464, 0.0
    %v4512 = vsel %vm4511, %v4464, 1.0
    %v4513 = vrcp.pop %v4512
    %v4514 = vmul.f32 %v4512, %v4513
    %v4515 = vsub.f32 2.0, %v4514
    %v4516 = vmul.f32 %v4513, %v4515
    %v4517 = vmul.f32 %v4506, %v4516
    %v4518 = vadd.f32 %v4329, %v4517
    %4519 = vrot.lane.b32.xlu0 %v4140, 32
    %v4520 = vpop.permute.xlu0 %4519
    %v4522 = vsel %vm170, %v4520, 0
    %4524 = vmatprep.subr.bf16.mxu0 0
    %4525 = vmatpush1.bf16.msra.mxu0 0
    %4526 = vmatprep.subr.bf16.mxu0 0
    %4527 = vmatpush1.bf16.msra.mxu0 0
    %4528 = vmatprep.subr.bf16.mxu0 0
    %4529 = vmatpush1.bf16.msra.mxu0 0
    %4530 = vmatprep.subr.bf16.mxu0 0
    %4531 = vmatpush1.bf16.msra.mxu0 0
    %4532 = vmatprep.subr.bf16.mxu0 0
    %4533 = vmatpush1.bf16.msra.mxu0 0
    %4534 = vmatprep.subr.bf16.mxu0 0
    %4535 = vmatpush1.bf16.msra.mxu0 0
    %4536 = vmatprep.subr.bf16.mxu0 %v285
    %4537 = vmatpush1.bf16.msra.mxu0 %v284
    %4538 = vmatprep.subr.bf16.mxu0 %v281
    %4539 = vmatpush1.bf16.msra.mxu0 %v280
    %4540 = vmatprep.subr.bf16.mxu0 0
    %4541 = vmatpush2.bf16.msra.mxu0 0
    %4542 = vmatprep.subr.bf16.mxu0 0
    %4543 = vmatpush2.bf16.msra.mxu0 0
    %4544 = vmatprep.subr.bf16.mxu0 0
    %4545 = vmatpush2.bf16.msra.mxu0 0
    %4546 = vmatprep.subr.bf16.mxu0 0
    %4547 = vmatpush2.bf16.msra.mxu0 0
    %4548 = vmatprep.subr.bf16.mxu0 0
    %4549 = vmatpush2.bf16.msra.mxu0 0
    %4550 = vmatprep.subr.bf16.mxu0 0
    %4551 = vmatpush2.bf16.msra.mxu0 0
    %4552 = vmatprep.subr.bf16.mxu0 0
    %4553 = vmatpush2.bf16.msra.mxu0 0
    %4554 = vmatprep.subr.bf16.mxu0 0
    %4555 = vmatpush2.bf16.msra.mxu0 0
    %4556 = vmatprep.mubr.bf16.mxu0 0
    %4557 = vmatmul.mubr.bf16.gmra.mxu0 %v4522
    %v4558 = vpop.f32.mrf.mxu0
    %v4559 = vadd.f32 0.0, %v4558
    %v4560 = vpop.f32.mrf.mxu0
    %v4561 = vadd.f32 0.0, %v4560
    %v4562 = vpop.f32.mrf.mxu0
    %v4563 = vpop.f32.mrf.mxu0
    %4564 = vdwg.mxu0
    %4565 = vmatprep.subr.bf16.mxu0 0
    %4566 = vmatpush1.bf16.msra.mxu0 0
    %4567 = vmatprep.subr.bf16.mxu0 0
    %4568 = vmatpush1.bf16.msra.mxu0 0
    %4569 = vmatprep.subr.bf16.mxu0 0
    %4570 = vmatpush1.bf16.msra.mxu0 0
    %4571 = vmatprep.subr.bf16.mxu0 0
    %4572 = vmatpush1.bf16.msra.mxu0 0
    %4573 = vmatprep.subr.bf16.mxu0 0
    %4574 = vmatpush1.bf16.msra.mxu0 0
    %4575 = vmatprep.subr.bf16.mxu0 0
    %4576 = vmatpush1.bf16.msra.mxu0 0
    %4577 = vmatprep.subr.bf16.mxu0 %v287
    %4578 = vmatpush1.bf16.msra.mxu0 %v286
    %4579 = vmatprep.subr.bf16.mxu0 %v283
    %4580 = vmatpush1.bf16.msra.mxu0 %v282
    %4581 = vmatprep.subr.bf16.mxu0 0
    %4582 = vmatpush2.bf16.msra.mxu0 0
    %4583 = vmatprep.subr.bf16.mxu0 0
    %4584 = vmatpush2.bf16.msra.mxu0 0
    %4585 = vmatprep.subr.bf16.mxu0 0
    %4586 = vmatpush2.bf16.msra.mxu0 0
    %4587 = vmatprep.subr.bf16.mxu0 0
    %4588 = vmatpush2.bf16.msra.mxu0 0
    %4589 = vmatprep.subr.bf16.mxu0 0
    %4590 = vmatpush2.bf16.msra.mxu0 0
    %4591 = vmatprep.subr.bf16.mxu0 0
    %4592 = vmatpush2.bf16.msra.mxu0 0
    %4593 = vmatprep.subr.bf16.mxu0 0
    %4594 = vmatpush2.bf16.msra.mxu0 0
    %4595 = vmatprep.subr.bf16.mxu0 0
    %4596 = vmatpush2.bf16.msra.mxu0 0
    %4597 = vmatprep.mubr.bf16.mxu0 0
    %4598 = vmatmul.mubr.bf16.gmra.mxu0 %v4522
    %v4599 = vpop.f32.mrf.mxu0
    %v4600 = vadd.f32 0.0, %v4599
    %v4601 = vpop.f32.mrf.mxu0
    %v4602 = vadd.f32 0.0, %v4601
    %v4603 = vpop.f32.mrf.mxu0
    %v4604 = vpop.f32.mrf.mxu0
    %4605 = vdwg.mxu0
    %v4606 = vmul.f32 %v3625, %v4559
    %v4607 = vmul.f32 %v3627, %v4561
    %v4608 = vsub.f32 %v4606, %v3637
    %v4609 = vsub.f32 %v4607, %v3637
    %v4610 = vmul.f32 %v4608, 1.442695
    %v4611 = vpow.pop %v4610
    %v4612 = vmul.f32 %v4609, 1.442695
    %v4613 = vpow.pop %v4612
    %v4614 = vmul.f32 %v4611, %v4600
    %v4615 = vmul.f32 %v4613, %v4602
    %v4616 = vpack.c.bf16 %v4611, %v4611
    %v4617 = vpack.c.bf16 %v4613, %v4613
    %4618 = vmatprep.subr.bf16.mxu0 0
    %4619 = vmatpush1.bf16.msra.mxu0 %v3836
    %4620 = vmatprep.subr.bf16.mxu0 0
    %4621 = vmatpush1.bf16.msra.mxu0 %v3835
    %4622 = vmatprep.subr.bf16.mxu0 0
    %4623 = vmatpush1.bf16.msra.mxu0 %v3834
    %4624 = vmatprep.subr.bf16.mxu0 0
    %4625 = vmatpush1.bf16.msra.mxu0 %v3833
    %4626 = vmatprep.subr.bf16.mxu0 0
    %4627 = vmatpush1.bf16.msra.mxu0 %v3832
    %4628 = vmatprep.subr.bf16.mxu0 0
    %4629 = vmatpush1.bf16.msra.mxu0 %v3831
    %4630 = vmatprep.subr.bf16.mxu0 0
    %4631 = vmatpush1.bf16.msra.mxu0 %v3830
    %4632 = vmatprep.subr.bf16.mxu0 0
    %4633 = vmatpush1.bf16.msra.mxu0 %v3829
    %4634 = vmatprep.subr.bf16.mxu0 0
    %4635 = vmatpush2.bf16.msra.mxu0 %v3844
    %4636 = vmatprep.subr.bf16.mxu0 0
    %4637 = vmatpush2.bf16.msra.mxu0 %v3843
    %4638 = vmatprep.subr.bf16.mxu0 0
    %4639 = vmatpush2.bf16.msra.mxu0 %v3842
    %4640 = vmatprep.subr.bf16.mxu0 0
    %4641 = vmatpush2.bf16.msra.mxu0 %v3841
    %4642 = vmatprep.subr.bf16.mxu0 0
    %4643 = vmatpush2.bf16.msra.mxu0 %v3840
    %4644 = vmatprep.subr.bf16.mxu0 0
    %4645 = vmatpush2.bf16.msra.mxu0 %v3839
    %4646 = vmatprep.subr.bf16.mxu0 0
    %4647 = vmatpush2.bf16.msra.mxu0 %v3838
    %4648 = vmatprep.subr.bf16.mxu0 0
    %4649 = vmatpush2.bf16.msra.mxu0 %v3837
    %4650 = vmatprep.mubr.bf16.mxu0 %v4617
    %4651 = vmatmul.mubr.bf16.gmra.mxu0 %v4616
    %v4652 = vpop.f32.mrf.mxu0
    %v4653 = vadd.f32 0.0, %v4652
    %v4654 = vpop.f32.mrf.mxu0
    %v4655 = vpop.f32.mrf.mxu0
    %v4656 = vpop.f32.mrf.mxu0
    %4657 = vdwg.mxu0
    %v4658 = vpack.c.bf16 %v4614, %v4614
    %v4659 = vpack.c.bf16 %v4615, %v4615
    %4660 = vmatprep.subr.bf16.mxu0 0
    %4661 = vmatpush1.bf16.msra.mxu0 %v3836
    %4662 = vmatprep.subr.bf16.mxu0 0
    %4663 = vmatpush1.bf16.msra.mxu0 %v3835
    %4664 = vmatprep.subr.bf16.mxu0 0
    %4665 = vmatpush1.bf16.msra.mxu0 %v3834
    %4666 = vmatprep.subr.bf16.mxu0 0
    %4667 = vmatpush1.bf16.msra.mxu0 %v3833
    %4668 = vmatprep.subr.bf16.mxu0 0
    %4669 = vmatpush1.bf16.msra.mxu0 %v3832
    %4670 = vmatprep.subr.bf16.mxu0 0
    %4671 = vmatpush1.bf16.msra.mxu0 %v3831
    %4672 = vmatprep.subr.bf16.mxu0 0
    %4673 = vmatpush1.bf16.msra.mxu0 %v3830
    %4674 = vmatprep.subr.bf16.mxu0 0
    %4675 = vmatpush1.bf16.msra.mxu0 %v3829
    %4676 = vmatprep.subr.bf16.mxu0 0
    %4677 = vmatpush2.bf16.msra.mxu0 %v3844
    %4678 = vmatprep.subr.bf16.mxu0 0
    %4679 = vmatpush2.bf16.msra.mxu0 %v3843
    %4680 = vmatprep.subr.bf16.mxu0 0
    %4681 = vmatpush2.bf16.msra.mxu0 %v3842
    %4682 = vmatprep.subr.bf16.mxu0 0
    %4683 = vmatpush2.bf16.msra.mxu0 %v3841
    %4684 = vmatprep.subr.bf16.mxu0 0
    %4685 = vmatpush2.bf16.msra.mxu0 %v3840
    %4686 = vmatprep.subr.bf16.mxu0 0
    %4687 = vmatpush2.bf16.msra.mxu0 %v3839
    %4688 = vmatprep.subr.bf16.mxu0 0
    %4689 = vmatpush2.bf16.msra.mxu0 %v3838
    %4690 = vmatprep.subr.bf16.mxu0 0
    %4691 = vmatpush2.bf16.msra.mxu0 %v3837
    %4692 = vmatprep.mubr.bf16.mxu0 %v4659
    %4693 = vmatmul.mubr.bf16.gmra.mxu0 %v4658
    %v4694 = vpop.f32.mrf.mxu0
    %v4695 = vadd.f32 0.0, %v4694
    %v4696 = vpop.f32.mrf.mxu0
    %v4697 = vpop.f32.mrf.mxu0
    %v4698 = vpop.f32.mrf.mxu0
    %4699 = vdwg.mxu0
    %vm4700 = vcmp.gt.f32.partialorder %v4653, 0.0
    %v4701 = vsel %vm4700, %v4653, 1.0
    %v4702 = vrcp.pop %v4701
    %v4703 = vmul.f32 %v4701, %v4702
    %v4704 = vsub.f32 2.0, %v4703
    %v4705 = vmul.f32 %v4702, %v4704
    %v4706 = vmul.f32 %v4695, %v4705
    %v4707 = vadd.f32 %v4518, %v4706
    %v4708 = vpack.c.bf16 %v4707, %v4707
    %v4709 = vld [vmem:[#allocation11] sm:$0xf]
    %v4710 = vld [vmem:[#allocation11 + $0x4] sm:$0xf]
    %v4711 = vld [vmem:[#allocation11 + $0x8] sm:$0xf]
    %v4712 = vld [vmem:[#allocation11 + $0xc] sm:$0xf]
    %v4713 = vld [vmem:[#allocation11 + $0x10] sm:$0xf]
    %v4714 = vld [vmem:[#allocation11 + $0x14] sm:$0xf]
    %v4715 = vld [vmem:[#allocation11 + $0x18] sm:$0xf]
    %v4716 = vld [vmem:[#allocation11 + $0x1c] sm:$0xf]
    %v4717 = vld [vmem:[#allocation11 + $0x20] sm:$0xf]
    %v4718 = vld [vmem:[#allocation11 + $0x24] sm:$0xf]
    %v4719 = vld [vmem:[#allocation11 + $0x28] sm:$0xf]
    %v4720 = vld [vmem:[#allocation11 + $0x2c] sm:$0xf]
    %v4721 = vld [vmem:[#allocation11 + $0x30] sm:$0xf]
    %v4722 = vld [vmem:[#allocation11 + $0x34] sm:$0xf]
    %v4723 = vld [vmem:[#allocation11 + $0x38] sm:$0xf]
    %v4724 = vld [vmem:[#allocation11 + $0x3c] sm:$0xf]
    %v4741 = vunpack.c.l.b16 %v4709
    %v4742 = vunpack.c.l.b16 %v4710
    %v4743 = vunpack.c.l.b16 %v4711
    %v4744 = vunpack.c.l.b16 %v4712
    %v4745 = vunpack.c.l.b16 %v4713
    %v4746 = vunpack.c.l.b16 %v4714
    %v4747 = vunpack.c.l.b16 %v4715
    %v4748 = vunpack.c.l.b16 %v4716
    %v4749 = vunpack.c.l.b16 %v4717
    %v4750 = vunpack.c.l.b16 %v4718
    %v4751 = vunpack.c.l.b16 %v4719
    %v4752 = vunpack.c.l.b16 %v4720
    %v4753 = vunpack.c.l.b16 %v4721
    %v4754 = vunpack.c.l.b16 %v4722
    %v4755 = vunpack.c.l.b16 %v4723
    %v4756 = vunpack.c.l.b16 %v4724
    %v4757 = vpack.c.b16 %v4742, %v4741
    %v4758 = vpack.c.b16 %v4744, %v4743
    %v4759 = vpack.c.b16 %v4746, %v4745
    %v4760 = vpack.c.b16 %v4748, %v4747
    %v4761 = vpack.c.b16 %v4750, %v4749
    %v4762 = vpack.c.b16 %v4752, %v4751
    %v4763 = vpack.c.b16 %v4754, %v4753
    %v4764 = vpack.c.b16 %v4756, %v4755
    %4773 = vmatprep.subr.bf16.mxu0 0
    %4774 = vmatpush1.bf16.msra.mxu0 %v4764
    %4775 = vmatprep.subr.bf16.mxu0 0
    %4776 = vmatpush1.bf16.msra.mxu0 %v4763
    %4777 = vmatprep.subr.bf16.mxu0 0
    %4778 = vmatpush1.bf16.msra.mxu0 %v4762
    %4779 = vmatprep.subr.bf16.mxu0 0
    %4780 = vmatpush1.bf16.msra.mxu0 %v4761
    %4781 = vmatprep.subr.bf16.mxu0 0
    %4782 = vmatpush1.bf16.msra.mxu0 %v4760
    %4783 = vmatprep.subr.bf16.mxu0 0
    %4784 = vmatpush1.bf16.msra.mxu0 %v4759
    %4785 = vmatprep.subr.bf16.mxu0 0
    %4786 = vmatpush1.bf16.msra.mxu0 %v4758
    %4787 = vmatprep.subr.bf16.mxu0 0
    %4788 = vmatpush1.bf16.msra.mxu0 %v4757
    %4789 = vmatprep.subr.bf16.mxu0 0
    %4790 = vmatpush2.bf16.msra.mxu0 0
    %4791 = vmatprep.subr.bf16.mxu0 0
    %4792 = vmatpush2.bf16.msra.mxu0 0
    %4793 = vmatprep.subr.bf16.mxu0 0
    %4794 = vmatpush2.bf16.msra.mxu0 0
    %4795 = vmatprep.subr.bf16.mxu0 0
    %4796 = vmatpush2.bf16.msra.mxu0 0
    %4797 = vmatprep.subr.bf16.mxu0 0
    %4798 = vmatpush2.bf16.msra.mxu0 0
    %4799 = vmatprep.subr.bf16.mxu0 0
    %4800 = vmatpush2.bf16.msra.mxu0 0
    %4801 = vmatprep.subr.bf16.mxu0 0
    %4802 = vmatpush2.bf16.msra.mxu0 0
    %4803 = vmatprep.subr.bf16.mxu0 0
    %4804 = vmatpush2.bf16.msra.mxu0 0
    %4805 = vmatprep.mubr.bf16.mxu0 0
    %4806 = vmatmul.mubr.bf16.gmra.mxu0 %v4708
    %v4807 = vpop.f32.mrf.mxu0
    %v4808 = vadd.f32 0.0, %v4807
    %v4809 = vpop.f32.mrf.mxu0
    %v4810 = vpop.f32.mrf.mxu0
    %v4811 = vpop.f32.mrf.mxu0
    %4812 = vdwg.mxu0
    %4813 = vst [vmem:[#allocation12] sm:$0xff] %v4808
    // Predicated region
    $region46: #{tpu_custom_call.1} parent=1 // pred_check
      _
    $region47: #{tpu_custom_call.1} parent=1 // pred_check_branch
      %4815 = sbr.rel (0) target = $region49
    $region48: #{tpu_custom_call.1} parent=1 // pred_region
      %s4817 = ssub.s32 128, 128
      %4818 = vsyncadd [#allocation5], %s4817
      %s4820 = sshll.u32 [#allocation12], 4
      %s4821 = int_to_ptr.vmem [resolvable:$true] %s4820
      %4823 = dma.vmem_to_hbm [thread:$0]  %s4821, 128, %s6, [#allocation5]
    $region49: #{tpu_custom_call.1} parent=1 // pred_fallthru
      _
    // Predicated region
    $region50: #{tpu_custom_call.1} parent=1 // pred_check
      _
    $region51: #{tpu_custom_call.1} parent=1 // pred_check_branch
      %4825 = sbr.rel (0) target = $region53
    $region52: #{tpu_custom_call.1} parent=1 // pred_region
      %4826 = dma.done [#allocation5], 128
    $region53: #{tpu_custom_call.1} parent=1 // pred_fallthru
      _
    %4827 = vsyncpa [#allocation4], 1
    %4828 = vsyncpa [#allocation7], 1
    %4829 = vsyncpa [#allocation10], 1
    %4830 = vsyncpa [#allocation5], 1

</llo_original>
